<compile_context>
chip_gen: v7x
topology: tpu7x:2x2x1
jax: 0.10.0
libtpu: 0.0.40
codegen_flags: <defaults>
</compile_context>

<pallas_src>
import math

import jax
import jax.numpy as jnp
from jax.experimental import pallas as pl
from jax.experimental.pallas import tpu as pltpu


def _round_up(x, m):
    return -(-x // m) * m


# ---------------------------------------------------------------------------
# Parameter construction & packing (deterministic xavier-normal-like init)
# ---------------------------------------------------------------------------
def build_params(key, W, KK, KKP):
    """Packed, pre-transposed ("rays-on-lanes") parameter buffers.

    Every matmul in the kernel is  y[out, rays] = Wt[out, in] @ x[in, rays],
    so all weights are stored transposed w.r.t. the (in, out) math layout.

      wsq    : (11, W, W)  bf16  all WxW matrices
      whalf  : (2, H, W)   bf16  sigma_activate[0], murho_activate[0]
      whead  : (2, 8, H)   bf16  sigma_activate[2] (rows 0:2),
                                 murho_activate[2] (rows 0:5), zero padded
      w0     : (2W, W)     bf16  w_activate[0]  (un-split -> single matmul)
      w1     : (KKP, 2W)   bf16  w_activate[2], KK rows zero-padded to KKP
      wsmall : (W, 14)     f32   all 1-3 channel concat chunks (VPU MACs)

    Biases are constant 0 by init_linear_weights, so the bias adds are elided
    (exactly equivalent); re-add a bias operand here if loading trained params.
    """
    H = W // 2
    defs = [  # (name, fan_in, fan_out) of the full nn.Linear, math layout x @ W
        ('l11',    1,     W),
        ('hidden1', W,    W),
        ('hidden2', W,    W),
        ('l12',    W + 1, W),
        ('l13_0',  W + 1, W),
        ('l13_1',  W,     W),
        ('sig_0',  W,     H),
        ('sig_1',  H,     2),
        ('l21',    W + 3, W),
        ('l22',    W + 3, W),
        ('l23_0',  W + 2, W),
        ('l23_1',  W,     W),
        ('mr_0',   W,     H),
        ('mr_1',   H,     5),
        ('l31',    W,     W),
        ('l32',    W + 3, W),
        ('w_0',    W,     2 * W),
        ('w_1',    2 * W, KK),
    ]
    keys = jax.random.split(key, len(defs))
    raw = {}
    for k_i, (name, fi, fo) in zip(keys, defs):
        gain = 0.1 if fo in (2, 3) else 1.0            # init_linear_weights rule
        std = gain * math.sqrt(2.0 / (fi + fo))
        raw[name] = std * jax.random.normal(k_i, (fi, fo), dtype=jnp.float32)

    # ---- square (W, W) matrices (stored transposed) -> one bf16 stack -------
    sq_list, sq_idx = [], {}

    def add_sq(tag, mat):                              # mat: (in, out) math layout
        sq_idx[tag] = len(sq_list)
        sq_list.append(mat.T)                          # store (out, in)

    add_sq('hidden1', raw['hidden1'])
    add_sq('hidden2', raw['hidden2'])
    add_sq('l12a',    raw['l12'][:W])
    add_sq('l13a',    raw['l13_0'][:W])
    add_sq('l13_1',   raw['l13_1'])
    add_sq('l21a',    raw['l21'][:W])
    add_sq('l22a',    raw['l22'][:W])
    add_sq('l23a',    raw['l23_0'][:W])
    add_sq('l23_1',   raw['l23_1'])
    add_sq('l31',     raw['l31'])
    add_sq('l32a',    raw['l32'][:W])
    wsq = jnp.stack(sq_list).astype(jnp.bfloat16)                       # (11, W, W)

    whalf = jnp.stack([raw['sig_0'].T, raw['mr_0'].T]).astype(jnp.bfloat16)  # (2, H, W)

    head = jnp.zeros((2, 8, H), jnp.float32)
    head = head.at[0, :2, :].set(raw['sig_1'].T)
    head = head.at[1, :5, :].set(raw['mr_1'].T)
    whead = head.astype(jnp.bfloat16)                                   # (2, 8, H)

    w0 = raw['w_0'].T.astype(jnp.bfloat16)                              # (2W, W)
    w1 = jnp.zeros((KKP, 2 * W), jnp.float32).at[:KK].set(raw['w_1'].T)
    w1 = w1.astype(jnp.bfloat16)                                        # (KKP, 2W)

    # ---- small fan-in concat chunks (applied as VPU broadcast MACs) ---------
    small_cols, small_idx = [], {}

    def add_small(tag, rows):                          # rows: (k, W) math layout
        start = sum(c.shape[1] for c in small_cols)
        small_idx[tag] = (start, rows.shape[0])
        small_cols.append(rows.T)                      # store as (W, k) columns

    add_small('l11',  raw['l11'])            # depth
    add_small('l12b', raw['l12'][W:])        # depth (short_cut1)
    add_small('l13b', raw['l13_0'][W:])      # fd
    add_small('l21b', raw['l21'][W:])        # imgC
    add_small('l22b', raw['l22'][W:])        # imgC (short_cut2)
    add_small('l23b', raw['l23_0'][W:])      # rays_pos
    add_small('l32b', raw['l32'][W:])        # imgC
    wsmall = jnp.concatenate(small_cols, axis=1)                        # (W, 14)

    params = dict(wsq=wsq, whalf=whalf, whead=whead, w0=w0, w1=w1, wsmall=wsmall)
    index = dict(sq=sq_idx, small=small_idx)
    return params, index


# ---------------------------------------------------------------------------
# Forward math — shared by the Pallas kernel (Refs) and the pure-JAX reference
# (arrays); both are indexed with the same syntax.
# feat:(8,n) rows=[depth,fd,imgC(3),pos(2),pad]; aif:(3,KKP,n); xg/yg:(KKP,1).
# Returns [blur1 (3,n), blur2 (3,n), blur3 (3,n), paras (5,n)].
# ---------------------------------------------------------------------------
def _forward_math(B, IX, feat, aif, xg, yg):
    wsq, whalf, whead, wsmall = B['wsq'], B['whalf'], B['whead'], B['wsmall']
    w0 = B['w0'][...]
    w1 = B['w1'][...]
    SQ, SM = IX['sq'], IX['small']
    bf16, f32 = jnp.bfloat16, jnp.float32
    two_pi = 2.0 * jnp.pi

    depth = feat[0:1, :]
    fd    = feat[1:2, :]
    imgC  = feat[2:5, :]
    pos   = feat[5:7, :]

    def dot_t(w, x_b):                                  # (out,in)@(in,n) on the MXU
        return jnp.dot(w, x_b, preferred_element_type=f32)

    def dot_sq(tag, x_b):
        return dot_t(wsq[SQ[tag]], x_b)

    def mac_small(tag, e):                              # 1-3 ch concat chunk (VPU)
        r, k = SM[tag]
        y = wsmall[:, r:r + 1] * e[0:1, :]
        for c in range(1, k):
            y = y + wsmall[:, r + c:r + c + 1] * e[c:c + 1, :]
        return y

    def relu_b(v):                                      # f32 relu + ONE bf16 cast
        return jnp.maximum(v, 0.0).astype(bf16)

    def trunk(x_b):                                     # shared `hiddens`
        x_b = relu_b(dot_sq('hidden1', x_b))
        return relu_b(dot_sq('hidden2', x_b))

    def blur(kern, denom):                              # kern (KKP,n), denom (1,n)
        inv_d = 1.0 / denom
        num = jnp.concatenate(
            [jnp.sum(aif[c] * kern, axis=0, keepdims=True) for c in range(3)],
            axis=0)
        return num * inv_d                              # (3, n)

    xg2 = xg * xg
    yg2 = yg * yg

    # ----- branch 1: sigma / isotropic gaussian blur -------------------------
    x = relu_b(mac_small('l11', depth))                                  # linears1_1
    x = trunk(x)
    x = relu_b(dot_sq('l12a', x) + mac_small('l12b', depth))             # short_cut1
    x = trunk(x)
    x = relu_b(dot_sq('l13a', x) + mac_small('l13b', fd))                # linears1_3
    x = relu_b(dot_sq('l13_1', x))            # bf16 once: feeds sigma head + branch 2
    h = relu_b(dot_t(whalf[0], x))
    sig = dot_t(whead[0], h)                                             # (8, n)
    s1a = 5.0 * jax.nn.sigmoid(sig[0:1, :]) + 1e-4
    s2a = 5.0 * jax.nn.sigmoid(sig[1:2, :]) + 1e-4
    c1x = -0.5 / (s1a * s1a)
    c1y = -0.5 / (s2a * s2a)
    g1 = jnp.exp(xg2 * c1x + yg2 * c1y)                                  # (KKP, n)
    # 1/(2*pi*s1*s2) prefactor folded into the +1e-5 epsilon (exact algebra).
    den1 = jnp.sum(g1, axis=0, keepdims=True) + (1e-5 * two_pi) * (s1a * s2a)
    blur1 = blur(g1, den1)

    # ----- branch 2: mu/rho anisotropic gaussian blur ------------------------
    x1 = relu_b(dot_sq('l21a', x) + mac_small('l21b', imgC))             # linears2_1
    x1 = trunk(x1)
    x1 = relu_b(dot_sq('l22a', x1) + mac_small('l22b', imgC))            # short_cut2
    x1 = trunk(x1)
    x1 = relu_b(dot_sq('l23a', x1) + mac_small('l23b', pos))             # linears2_3
    x1 = relu_b(dot_sq('l23_1', x1))          # bf16 once: feeds murho head + branch 3
    h1 = relu_b(dot_t(whalf[1], x1))
    mr = dot_t(whead[1], h1)                                             # (8, n)
    s1 = 5.0 * jax.nn.sigmoid(mr[0:1, :]) + 1e-4
    s2 = 5.0 * jax.nn.sigmoid(mr[1:2, :]) + 1e-4
    mu1 = mr[2:3, :] + 1e-4
    mu2 = mr[3:4, :] + 1e-4
    rho = jax.nn.sigmoid(mr[4:5, :]) * 0.1
    omr = 1.0 - rho * rho
    inv_s1 = 1.0 / s1
    inv_s2 = 1.0 / s2
    c0 = -0.5 / omr
    k11 = c0 * inv_s1 * inv_s1
    k12 = c0 * (-2.0 * rho) * inv_s1 * inv_s2
    k22 = c0 * inv_s2 * inv_s2
    dx = xg - mu1
    dy = yg - mu2
    g2 = jnp.exp((dx * dx) * k11 + (dx * dy) * k12 + (dy * dy) * k22)    # (KKP, n)
    # 1/(2*pi*s1*s2*sqrt(1-rho^2)) prefactor folded into the epsilon (exact).
    den2 = (jnp.sum(g2, axis=0, keepdims=True)
            + (1e-5 * two_pi) * (s1 * s2) * jnp.sqrt(omr))
    blur2 = blur(g2, den2)

    # ----- branch 3: learned kernel weights ----------------------------------
    x2 = relu_b(dot_sq('l31', x1))                                       # linears3_1
    x2 = trunk(x2)
    x2 = relu_b(dot_sq('l32a', x2) + mac_small('l32b', imgC))            # linears3_2
    x2 = trunk(x2)
    hw = relu_b(dot_t(w0, x2))                                           # (2W, n)
    w = dot_t(w1, hw)                                                    # (KKP, n)
    den3 = jnp.sum(w, axis=0, keepdims=True) + 1e-5
    blur3 = blur(w, den3)

    # ----- paras = stack([sigma1, sigma2, mu1, mu2, rho]) ---------------------
    paras = jnp.concatenate([s1, s2, mu1, mu2, rho], axis=0)             # (5, n)
    return [blur1, blur2, blur3, paras]


# ---------------------------------------------------------------------------
# VMEM budget from actual byte counts (valid on v7x's 64 MiB physical VMEM)
# ---------------------------------------------------------------------------
def _vmem_budget(tile, KKP, W, plist):
    f32 = 4
    stream = 2 * (8 * tile + 3 * KKP * tile + 16 * tile) * f32   # dbl-buffered in/out
    weights = 2 * sum(int(p.size) * p.dtype.itemsize for p in plist)
    live = (32 * W + 12 * KKP + 64) * tile * f32                 # live intermediates
    budget = int(1.5 * (stream + weights + live))
    return max(16 * 1024 * 1024, min(60 * 1024 * 1024, budget))


# ---------------------------------------------------------------------------
# Pallas wrapper: tiles rays on lanes, keeps packed weights resident per step
# ---------------------------------------------------------------------------
def camera_nerf_pallas(params, index, feat, aif_cm, xg, yg, *, tile=256,
                       vmem_limit_bytes=None):
    """feat (8, N) feature-major; aif_cm (3, KKP, N); xg/yg (KKP, 1).

    Returns a lane-dense (16, N) slab: rows 0:3 blur1, 3:6 blur2, 6:9 blur3,
    9:14 paras, 14:16 zero padding.
    Tile guidance: keep >= 2 grid steps per v7x TensorCore (>= 4 total);
    raise tile to 1024-2048 on single-TC v5e/v6e for large ray batches.
    """
    FC, N = feat.shape
    _, KKP, _ = aif_cm.shape
    OUTC = 16
    assert N % tile == 0, "pad the ray batch to a multiple of the tile"
    assert tile % 128 == 0, "tile must be a multiple of 128 (lane-dense output)"

    pnames = ('wsq', 'whalf', 'whead', 'w0', 'w1', 'wsmall')
    plist = [params[n] for n in pnames]
    W = params['wsq'].shape[-1]
    if vmem_limit_bytes is None:
        vmem_limit_bytes = _vmem_budget(tile, KKP, W, plist)

    def kernel(feat_r, aif_r, xg_r, yg_r,
               wsq_r, whalf_r, whead_r, w0_r, w1_r, wsmall_r, out_r):
        B = dict(wsq=wsq_r, whalf=whalf_r, whead=whead_r,
                 w0=w0_r, w1=w1_r, wsmall=wsmall_r)
        rows = _forward_math(B, index, feat_r[...], aif_r, xg_r[...], yg_r[...])
        used = sum(r.shape[0] for r in rows)
        if used < OUTC:                       # static zero padding rows
            rows = rows + [jnp.zeros((OUTC - used, out_r.shape[1]), jnp.float32)]
        out_r[...] = jnp.concatenate(rows, axis=0)   # one lane-dense (16, tile) store

    def resident(arr):
        # Whole-array weight operand with a constant index map (resident across
        # the grid).  pipeline_mode=pl.Buffered(1) would also drop its unused
        # double buffer (~45 KiB total); omitted for jax-version portability.
        nd = arr.ndim
        return pl.BlockSpec(arr.shape, lambda i, _nd=nd: (0,) * _nd)

    in_specs = [
        pl.BlockSpec((FC, tile), lambda i: (0, i)),          # per-ray features
        pl.BlockSpec((3, KKP, tile), lambda i: (0, 0, i)),   # AIF ROI (ch, kern, rays)
        pl.BlockSpec((KKP, 1), lambda i: (0, 0)),            # X grid column
        pl.BlockSpec((KKP, 1), lambda i: (0, 0)),            # Y grid column
    ] + [resident(p) for p in plist]

    out_specs = pl.BlockSpec((OUTC, tile), lambda i: (0, i))
    out_shape = jax.ShapeDtypeStruct((OUTC, N), jnp.float32)

    return pl.pallas_call(
        kernel,
        out_shape=out_shape,
        grid_spec=pltpu.PrefetchScalarGridSpec(
            num_scalar_prefetch=0,
            grid=(N // tile,),
            in_specs=in_specs,
            out_specs=out_specs),
        compiler_params=pltpu.CompilerParams(
            dimension_semantics=("parallel",),
            vmem_limit_bytes=vmem_limit_bytes),
    )(feat, aif_cm, xg, yg, *plist)


# ---------------------------------------------------------------------------
if __name__ == "__main__":
    # Small shapes consistent with the module's forward pass.
    N_RAYS, NUM_WIDE, KS = 1024, 32, 7          # kernel_size must be odd
    KK = KS * KS
    KKP = _round_up(KK, 8)                      # sublane-aligned padded kernel area
    NUM_IMG, H_IMG, W_IMG = 3, 8, 8
    TILE = 256                                  # 4 grid steps -> >= 2 per v7x TensorCore
    PADV = 1.0e3                                # padded grid coord -> exp underflows to 0

    root = jax.random.PRNGKey(0)
    kp, k1, k2, k3, k4, k5, k6, k7, k8 = jax.random.split(root, 9)

    params, index = build_params(kp, NUM_WIDE, KK, KKP)

    # camera_rays_info
    camera_rays = jax.random.normal(k1, (N_RAYS, 3), dtype=jnp.float32)  # only shape[0] used
    depth = jax.random.uniform(k2, (N_RAYS, 1), dtype=jnp.float32)       # camera_depthsf
    fd = jax.random.uniform(k3, (N_RAYS, 1), dtype=jnp.float32)          # camera_fd
    imgC = jax.random.uniform(k4, (N_RAYS, 3), dtype=jnp.float32)        # camera_AIFsf
    rays_pos = jax.random.uniform(k5, (N_RAYS, 2), dtype=jnp.float32)    # camera_rays_pos
    img_idx = jax.random.randint(k6, (N_RAYS, 1), 0, NUM_IMG)            # camera_focus_images_idx
    pix_pos = jax.random.randint(k7, (N_RAYS, 2), 0, H_IMG)              # camera_pix_pos
    AIF_padding = jax.random.uniform(
        k8, (NUM_IMG, H_IMG, W_IMG, 3, KS, KS), dtype=jnp.float32)       # AIF_padding_ROIs

    # Per-ray ROI gather.
    # TODO(synk): the PyTorch host-side python-dict / .cpu() lookup
    # (AIF_padding_ROIs[str(idx)][py, px]) has no in-kernel equivalent; it is a
    # jnp advanced-index gather in the wrapper instead.
    px, py = pix_pos[:, 0], pix_pos[:, 1]
    aif_roi = AIF_padding[img_idx[:, 0], py, px]                         # (N, 3, KS, KS)
    aif_cm = jnp.transpose(aif_roi.reshape(N_RAYS, 3, KK), (1, 2, 0))    # (3, KK, N)
    aif_cm = jnp.pad(aif_cm, ((0, 0), (0, KKP - KK), (0, 0)))            # zero-pad KK -> KKP

    # Packed per-ray feature slab, feature-major: rows [depth, fd, imgC, pos, pad] -> (8, N)
    feat = jnp.concatenate(
        [depth, fd, imgC, rays_pos, jnp.zeros((N_RAYS, 1), jnp.float32)],
        axis=-1).T

    # Blur-kernel coordinate grids (torch.meshgrid, indexing='ij'), flattened
    # row-major, padded with a huge coordinate so padded rows of exp() are 0.
    coords = jnp.arange(-(KS // 2), KS // 2 + 1, dtype=jnp.float32)
    Xg, Yg = jnp.meshgrid(coords, coords, indexing='ij')
    padc = jnp.full((KKP - KK, 1), PADV, jnp.float32)
    xg = jnp.concatenate([Xg.reshape(KK, 1), padc], axis=0)              # (KKP, 1)
    yg = jnp.concatenate([Yg.reshape(KK, 1), padc], axis=0)              # (KKP, 1)

    packed = camera_nerf_pallas(params, index, feat, aif_cm, xg, yg, tile=TILE)
    packed = jax.block_until_ready(packed)
    result = {'blur_img1': packed[0:3].T, 'blur_img2': packed[3:6].T,
              'blur_img3': packed[6:9].T, 'paras': packed[9:14].T}

    # Pure-JAX reference (same packed params / identical folded-epsilon math).
    ref_rows = _forward_math(params, index, feat, aif_cm, xg, yg)
    ref = jnp.concatenate(ref_rows, axis=0)                              # (14, N)
    got = packed[:ref.shape[0]]
    assert got.shape == ref.shape and got.dtype == ref.dtype
    max_err = float(jnp.max(jnp.abs(got - ref)))
    assert jnp.allclose(got, ref, atol=1e-3, rtol=1e-3), max_err

    print("KERNEL_OK")
</pallas_src>

<mosaic_0001>
module attributes {stable_mosaic.version = 11 : i64} {
  func.func @kernel(%arg0: i32, %arg1: memref<8x256xf32, #tpu.memory_space<vmem>>, %arg2: memref<3x56x256xf32, #tpu.memory_space<vmem>>, %arg3: memref<56x1xf32, #tpu.memory_space<vmem>>, %arg4: memref<56x1xf32, #tpu.memory_space<vmem>>, %arg5: memref<11x32x32xbf16, #tpu.memory_space<vmem>>, %arg6: memref<2x16x32xbf16, #tpu.memory_space<vmem>>, %arg7: memref<2x8x16xbf16, #tpu.memory_space<vmem>>, %arg8: memref<64x32xbf16, #tpu.memory_space<vmem>>, %arg9: memref<56x64xbf16, #tpu.memory_space<vmem>>, %arg10: memref<32x14xf32, #tpu.memory_space<vmem>>, %arg11: memref<16x256xf32, #tpu.memory_space<vmem>>) attributes {dimension_semantics = [#tpu.dimension_semantics<parallel>], iteration_bounds = array<i64: 4>, scalar_prefetch = 0 : i64, scratch_operands = 0 : i64, tpu.core_type = #tpu.core_type<tc>, window_params = [{transform_indices = @transform_0, window_bounds = array<i64: 8, 256>}, {transform_indices = @transform_1, window_bounds = array<i64: 3, 56, 256>}, {pipeline_mode = #tpu.pipeline_mode<synchronous>, transform_indices = @transform_2, window_bounds = array<i64: 56, 1>}, {pipeline_mode = #tpu.pipeline_mode<synchronous>, transform_indices = @transform_3, window_bounds = array<i64: 56, 1>}, {pipeline_mode = #tpu.pipeline_mode<synchronous>, transform_indices = @transform_4, window_bounds = array<i64: 11, 32, 32>}, {pipeline_mode = #tpu.pipeline_mode<synchronous>, transform_indices = @transform_5, window_bounds = array<i64: 2, 16, 32>}, {pipeline_mode = #tpu.pipeline_mode<synchronous>, transform_indices = @transform_6, window_bounds = array<i64: 2, 8, 16>}, {pipeline_mode = #tpu.pipeline_mode<synchronous>, transform_indices = @transform_7, window_bounds = array<i64: 64, 32>}, {pipeline_mode = #tpu.pipeline_mode<synchronous>, transform_indices = @transform_8, window_bounds = array<i64: 56, 64>}, {pipeline_mode = #tpu.pipeline_mode<synchronous>, transform_indices = @transform_9, window_bounds = array<i64: 32, 14>}, {transform_indices = @transform_10, window_bounds = array<i64: 16, 256>}]} {
    %c0 = arith.constant 0 : index
    %c0_0 = arith.constant 0 : index
    %0 = vector.load %arg1[%c0, %c0_0] : memref<8x256xf32, #tpu.memory_space<vmem>>, vector<8x256xf32>
    %c0_1 = arith.constant 0 : index
    %c0_2 = arith.constant 0 : index
    %1 = vector.load %arg3[%c0_1, %c0_2] : memref<56x1xf32, #tpu.memory_space<vmem>>, vector<56x1xf32>
    %c0_3 = arith.constant 0 : index
    %c0_4 = arith.constant 0 : index
    %2 = vector.load %arg4[%c0_3, %c0_4] : memref<56x1xf32, #tpu.memory_space<vmem>>, vector<56x1xf32>
    %c0_5 = arith.constant 0 : index
    %c0_6 = arith.constant 0 : index
    %3 = vector.load %arg8[%c0_5, %c0_6] : memref<64x32xbf16, #tpu.memory_space<vmem>>, vector<64x32xbf16>
    %c0_7 = arith.constant 0 : index
    %c0_8 = arith.constant 0 : index
    %4 = vector.load %arg9[%c0_7, %c0_8] : memref<56x64xbf16, #tpu.memory_space<vmem>>, vector<56x64xbf16>
    %5 = vector.extract_strided_slice %0 {offsets = [0, 0], sizes = [1, 256], strides = [1, 1]} : vector<8x256xf32> to vector<1x256xf32>
    %6 = vector.extract_strided_slice %0 {offsets = [1, 0], sizes = [1, 256], strides = [1, 1]} : vector<8x256xf32> to vector<1x256xf32>
    %7 = vector.extract_strided_slice %0 {offsets = [2, 0], sizes = [3, 256], strides = [1, 1]} : vector<8x256xf32> to vector<3x256xf32>
    %8 = vector.extract_strided_slice %0 {offsets = [5, 0], sizes = [2, 256], strides = [1, 1]} : vector<8x256xf32> to vector<2x256xf32>
    %9 = arith.mulf %1, %1 : vector<56x1xf32>
    %10 = arith.mulf %2, %2 : vector<56x1xf32>
    %c0_9 = arith.constant 0 : index
    %c0_10 = arith.constant 0 : index
    %11 = vector.load %arg10[%c0_9, %c0_10] : memref<32x14xf32, #tpu.memory_space<vmem>>, vector<32x1xf32>
    %12 = vector.broadcast %11 : vector<32x1xf32> to vector<32x256xf32>
    %13 = vector.broadcast %5 : vector<1x256xf32> to vector<32x256xf32>
    %14 = arith.mulf %12, %13 : vector<32x256xf32>
    %cst = arith.constant 0.000000e+00 : f32
    %15 = vector.broadcast %cst : f32 to vector<32x256xf32>
    %16 = arith.maximumf %14, %15 : vector<32x256xf32>
    %17 = arith.truncf %16 : vector<32x256xf32> to vector<32x256xbf16>
    %c0_11 = arith.constant 0 : index
    %c0_12 = arith.constant 0 : index
    %c0_13 = arith.constant 0 : index
    %18 = vector.load %arg5[%c0_11, %c0_12, %c0_13] : memref<11x32x32xbf16, #tpu.memory_space<vmem>>, vector<1x32x32xbf16>
    %19 = vector.shape_cast %18 : vector<1x32x32xbf16> to vector<32x32xbf16>
    %cst_14 = arith.constant dense<0.000000e+00> : vector<32x256xf32>
    %20 = tpu.matmul %19, %17, %cst_14 {dimension_numbers = #tpu.dot_dimension_numbers<[1], [0], [0], [1], [0, 0, 1, 1], [], []>} : vector<32x32xbf16>, vector<32x256xbf16>, vector<32x256xf32> -> vector<32x256xf32>
    %cst_15 = arith.constant 0.000000e+00 : f32
    %21 = vector.broadcast %cst_15 : f32 to vector<32x256xf32>
    %22 = arith.maximumf %20, %21 : vector<32x256xf32>
    %23 = arith.truncf %22 : vector<32x256xf32> to vector<32x256xbf16>
    %c1 = arith.constant 1 : index
    %c0_16 = arith.constant 0 : index
    %c0_17 = arith.constant 0 : index
    %24 = vector.load %arg5[%c1, %c0_16, %c0_17] : memref<11x32x32xbf16, #tpu.memory_space<vmem>>, vector<1x32x32xbf16>
    %25 = vector.shape_cast %24 : vector<1x32x32xbf16> to vector<32x32xbf16>
    %cst_18 = arith.constant dense<0.000000e+00> : vector<32x256xf32>
    %26 = tpu.matmul %25, %23, %cst_18 {dimension_numbers = #tpu.dot_dimension_numbers<[1], [0], [0], [1], [0, 0, 1, 1], [], []>} : vector<32x32xbf16>, vector<32x256xbf16>, vector<32x256xf32> -> vector<32x256xf32>
    %cst_19 = arith.constant 0.000000e+00 : f32
    %27 = vector.broadcast %cst_19 : f32 to vector<32x256xf32>
    %28 = arith.maximumf %26, %27 : vector<32x256xf32>
    %29 = arith.truncf %28 : vector<32x256xf32> to vector<32x256xbf16>
    %c2 = arith.constant 2 : index
    %c0_20 = arith.constant 0 : index
    %c0_21 = arith.constant 0 : index
    %30 = vector.load %arg5[%c2, %c0_20, %c0_21] : memref<11x32x32xbf16, #tpu.memory_space<vmem>>, vector<1x32x32xbf16>
    %31 = vector.shape_cast %30 : vector<1x32x32xbf16> to vector<32x32xbf16>
    %cst_22 = arith.constant dense<0.000000e+00> : vector<32x256xf32>
    %32 = tpu.matmul %31, %29, %cst_22 {dimension_numbers = #tpu.dot_dimension_numbers<[1], [0], [0], [1], [0, 0, 1, 1], [], []>} : vector<32x32xbf16>, vector<32x256xbf16>, vector<32x256xf32> -> vector<32x256xf32>
    %c0_23 = arith.constant 0 : index
    %c1_24 = arith.constant 1 : index
    %33 = vector.load %arg10[%c0_23, %c1_24] : memref<32x14xf32, #tpu.memory_space<vmem>>, vector<32x1xf32>
    %34 = vector.broadcast %33 : vector<32x1xf32> to vector<32x256xf32>
    %35 = vector.broadcast %5 : vector<1x256xf32> to vector<32x256xf32>
    %36 = arith.mulf %34, %35 : vector<32x256xf32>
    %37 = arith.addf %32, %36 : vector<32x256xf32>
    %cst_25 = arith.constant 0.000000e+00 : f32
    %38 = vector.broadcast %cst_25 : f32 to vector<32x256xf32>
    %39 = arith.maximumf %37, %38 : vector<32x256xf32>
    %40 = arith.truncf %39 : vector<32x256xf32> to vector<32x256xbf16>
    %c0_26 = arith.constant 0 : index
    %c0_27 = arith.constant 0 : index
    %c0_28 = arith.constant 0 : index
    %41 = vector.load %arg5[%c0_26, %c0_27, %c0_28] : memref<11x32x32xbf16, #tpu.memory_space<vmem>>, vector<1x32x32xbf16>
    %42 = vector.shape_cast %41 : vector<1x32x32xbf16> to vector<32x32xbf16>
    %cst_29 = arith.constant dense<0.000000e+00> : vector<32x256xf32>
    %43 = tpu.matmul %42, %40, %cst_29 {dimension_numbers = #tpu.dot_dimension_numbers<[1], [0], [0], [1], [0, 0, 1, 1], [], []>} : vector<32x32xbf16>, vector<32x256xbf16>, vector<32x256xf32> -> vector<32x256xf32>
    %cst_30 = arith.constant 0.000000e+00 : f32
    %44 = vector.broadcast %cst_30 : f32 to vector<32x256xf32>
    %45 = arith.maximumf %43, %44 : vector<32x256xf32>
    %46 = arith.truncf %45 : vector<32x256xf32> to vector<32x256xbf16>
    %c1_31 = arith.constant 1 : index
    %c0_32 = arith.constant 0 : index
    %c0_33 = arith.constant 0 : index
    %47 = vector.load %arg5[%c1_31, %c0_32, %c0_33] : memref<11x32x32xbf16, #tpu.memory_space<vmem>>, vector<1x32x32xbf16>
    %48 = vector.shape_cast %47 : vector<1x32x32xbf16> to vector<32x32xbf16>
    %cst_34 = arith.constant dense<0.000000e+00> : vector<32x256xf32>
    %49 = tpu.matmul %48, %46, %cst_34 {dimension_numbers = #tpu.dot_dimension_numbers<[1], [0], [0], [1], [0, 0, 1, 1], [], []>} : vector<32x32xbf16>, vector<32x256xbf16>, vector<32x256xf32> -> vector<32x256xf32>
    %cst_35 = arith.constant 0.000000e+00 : f32
    %50 = vector.broadcast %cst_35 : f32 to vector<32x256xf32>
    %51 = arith.maximumf %49, %50 : vector<32x256xf32>
    %52 = arith.truncf %51 : vector<32x256xf32> to vector<32x256xbf16>
    %c3 = arith.constant 3 : index
    %c0_36 = arith.constant 0 : index
    %c0_37 = arith.constant 0 : index
    %53 = vector.load %arg5[%c3, %c0_36, %c0_37] : memref<11x32x32xbf16, #tpu.memory_space<vmem>>, vector<1x32x32xbf16>
    %54 = vector.shape_cast %53 : vector<1x32x32xbf16> to vector<32x32xbf16>
    %cst_38 = arith.constant dense<0.000000e+00> : vector<32x256xf32>
    %55 = tpu.matmul %54, %52, %cst_38 {dimension_numbers = #tpu.dot_dimension_numbers<[1], [0], [0], [1], [0, 0, 1, 1], [], []>} : vector<32x32xbf16>, vector<32x256xbf16>, vector<32x256xf32> -> vector<32x256xf32>
    %c0_39 = arith.constant 0 : index
    %c2_40 = arith.constant 2 : index
    %56 = vector.load %arg10[%c0_39, %c2_40] : memref<32x14xf32, #tpu.memory_space<vmem>>, vector<32x1xf32>
    %57 = vector.broadcast %56 : vector<32x1xf32> to vector<32x256xf32>
    %58 = vector.broadcast %6 : vector<1x256xf32> to vector<32x256xf32>
    %59 = arith.mulf %57, %58 : vector<32x256xf32>
    %60 = arith.addf %55, %59 : vector<32x256xf32>
    %cst_41 = arith.constant 0.000000e+00 : f32
    %61 = vector.broadcast %cst_41 : f32 to vector<32x256xf32>
    %62 = arith.maximumf %60, %61 : vector<32x256xf32>
    %63 = arith.truncf %62 : vector<32x256xf32> to vector<32x256xbf16>
    %c4 = arith.constant 4 : index
    %c0_42 = arith.constant 0 : index
    %c0_43 = arith.constant 0 : index
    %64 = vector.load %arg5[%c4, %c0_42, %c0_43] : memref<11x32x32xbf16, #tpu.memory_space<vmem>>, vector<1x32x32xbf16>
    %65 = vector.shape_cast %64 : vector<1x32x32xbf16> to vector<32x32xbf16>
    %cst_44 = arith.constant dense<0.000000e+00> : vector<32x256xf32>
    %66 = tpu.matmul %65, %63, %cst_44 {dimension_numbers = #tpu.dot_dimension_numbers<[1], [0], [0], [1], [0, 0, 1, 1], [], []>} : vector<32x32xbf16>, vector<32x256xbf16>, vector<32x256xf32> -> vector<32x256xf32>
    %cst_45 = arith.constant 0.000000e+00 : f32
    %67 = vector.broadcast %cst_45 : f32 to vector<32x256xf32>
    %68 = arith.maximumf %66, %67 : vector<32x256xf32>
    %69 = arith.truncf %68 : vector<32x256xf32> to vector<32x256xbf16>
    %c0_46 = arith.constant 0 : index
    %c0_47 = arith.constant 0 : index
    %c0_48 = arith.constant 0 : index
    %70 = vector.load %arg6[%c0_46, %c0_47, %c0_48] : memref<2x16x32xbf16, #tpu.memory_space<vmem>>, vector<1x16x32xbf16>
    %71 = vector.shape_cast %70 : vector<1x16x32xbf16> to vector<16x32xbf16>
    %cst_49 = arith.constant dense<0.000000e+00> : vector<16x256xf32>
    %72 = tpu.matmul %71, %69, %cst_49 {dimension_numbers = #tpu.dot_dimension_numbers<[1], [0], [0], [1], [0, 0, 1, 1], [], []>} : vector<16x32xbf16>, vector<32x256xbf16>, vector<16x256xf32> -> vector<16x256xf32>
    %cst_50 = arith.constant 0.000000e+00 : f32
    %73 = vector.broadcast %cst_50 : f32 to vector<16x256xf32>
    %74 = arith.maximumf %72, %73 : vector<16x256xf32>
    %75 = arith.truncf %74 : vector<16x256xf32> to vector<16x256xbf16>
    %c0_51 = arith.constant 0 : index
    %c0_52 = arith.constant 0 : index
    %c0_53 = arith.constant 0 : index
    %76 = vector.load %arg7[%c0_51, %c0_52, %c0_53] : memref<2x8x16xbf16, #tpu.memory_space<vmem>>, vector<1x8x16xbf16>
    %77 = vector.shape_cast %76 : vector<1x8x16xbf16> to vector<8x16xbf16>
    %cst_54 = arith.constant dense<0.000000e+00> : vector<8x256xf32>
    %78 = tpu.matmul %77, %75, %cst_54 {dimension_numbers = #tpu.dot_dimension_numbers<[1], [0], [0], [1], [0, 0, 1, 1], [], []>} : vector<8x16xbf16>, vector<16x256xbf16>, vector<8x256xf32> -> vector<8x256xf32>
    %79 = vector.extract_strided_slice %78 {offsets = [0, 0], sizes = [1, 256], strides = [1, 1]} : vector<8x256xf32> to vector<1x256xf32>
    %80 = arith.negf %79 : vector<1x256xf32>
    %81 = math.exp %80 : vector<1x256xf32>
    %cst_55 = arith.constant 1.000000e+00 : f32
    %82 = vector.broadcast %cst_55 : f32 to vector<1x256xf32>
    %83 = arith.addf %82, %81 : vector<1x256xf32>
    %84 = arith.divf %82, %83 : vector<1x256xf32>
    %cst_56 = arith.constant 5.000000e+00 : f32
    %85 = vector.broadcast %cst_56 : f32 to vector<1x256xf32>
    %86 = arith.mulf %85, %84 : vector<1x256xf32>
    %cst_57 = arith.constant 9.99999974E-5 : f32
    %87 = vector.broadcast %cst_57 : f32 to vector<1x256xf32>
    %88 = arith.addf %86, %87 : vector<1x256xf32>
    %89 = vector.extract_strided_slice %78 {offsets = [1, 0], sizes = [1, 256], strides = [1, 1]} : vector<8x256xf32> to vector<1x256xf32>
    %90 = arith.negf %89 : vector<1x256xf32>
    %91 = math.exp %90 : vector<1x256xf32>
    %cst_58 = arith.constant 1.000000e+00 : f32
    %92 = vector.broadcast %cst_58 : f32 to vector<1x256xf32>
    %93 = arith.addf %92, %91 : vector<1x256xf32>
    %94 = arith.divf %92, %93 : vector<1x256xf32>
    %cst_59 = arith.constant 5.000000e+00 : f32
    %95 = vector.broadcast %cst_59 : f32 to vector<1x256xf32>
    %96 = arith.mulf %95, %94 : vector<1x256xf32>
    %cst_60 = arith.constant 9.99999974E-5 : f32
    %97 = vector.broadcast %cst_60 : f32 to vector<1x256xf32>
    %98 = arith.addf %96, %97 : vector<1x256xf32>
    %99 = arith.mulf %88, %88 : vector<1x256xf32>
    %cst_61 = arith.constant -5.000000e-01 : f32
    %100 = vector.broadcast %cst_61 : f32 to vector<1x256xf32>
    %101 = arith.divf %100, %99 : vector<1x256xf32>
    %102 = arith.mulf %98, %98 : vector<1x256xf32>
    %cst_62 = arith.constant -5.000000e-01 : f32
    %103 = vector.broadcast %cst_62 : f32 to vector<1x256xf32>
    %104 = arith.divf %103, %102 : vector<1x256xf32>
    %105 = vector.broadcast %9 : vector<56x1xf32> to vector<56x256xf32>
    %106 = vector.broadcast %101 : vector<1x256xf32> to vector<56x256xf32>
    %107 = arith.mulf %105, %106 : vector<56x256xf32>
    %108 = vector.broadcast %10 : vector<56x1xf32> to vector<56x256xf32>
    %109 = vector.broadcast %104 : vector<1x256xf32> to vector<56x256xf32>
    %110 = arith.mulf %108, %109 : vector<56x256xf32>
    %111 = arith.addf %107, %110 : vector<56x256xf32>
    %112 = math.exp %111 : vector<56x256xf32>
    %cst_63 = arith.constant dense<0.000000e+00> : vector<256xf32>
    %113 = vector.multi_reduction <add>, %112, %cst_63 [0] : vector<56x256xf32> to vector<256xf32>
    %114 = vector.shape_cast %113 : vector<256xf32> to vector<1x256xf32>
    %115 = arith.mulf %88, %98 : vector<1x256xf32>
    %cst_64 = arith.constant 6.28318521E-5 : f32
    %116 = vector.broadcast %cst_64 : f32 to vector<1x256xf32>
    %117 = arith.mulf %116, %115 : vector<1x256xf32>
    %118 = arith.addf %114, %117 : vector<1x256xf32>
    %cst_65 = arith.constant 1.000000e+00 : f32
    %119 = vector.broadcast %cst_65 : f32 to vector<1x256xf32>
    %120 = arith.divf %119, %118 : vector<1x256xf32>
    %c0_66 = arith.constant 0 : index
    %c0_67 = arith.constant 0 : index
    %c0_68 = arith.constant 0 : index
    %121 = vector.load %arg2[%c0_66, %c0_67, %c0_68] : memref<3x56x256xf32, #tpu.memory_space<vmem>>, vector<1x56x256xf32>
    %122 = vector.shape_cast %121 : vector<1x56x256xf32> to vector<56x256xf32>
    %123 = arith.mulf %122, %112 : vector<56x256xf32>
    %cst_69 = arith.constant dense<0.000000e+00> : vector<256xf32>
    %124 = vector.multi_reduction <add>, %123, %cst_69 [0] : vector<56x256xf32> to vector<256xf32>
    %125 = vector.shape_cast %124 : vector<256xf32> to vector<1x256xf32>
    %c1_70 = arith.constant 1 : index
    %c0_71 = arith.constant 0 : index
    %c0_72 = arith.constant 0 : index
    %126 = vector.load %arg2[%c1_70, %c0_71, %c0_72] : memref<3x56x256xf32, #tpu.memory_space<vmem>>, vector<1x56x256xf32>
    %127 = vector.shape_cast %126 : vector<1x56x256xf32> to vector<56x256xf32>
    %128 = arith.mulf %127, %112 : vector<56x256xf32>
    %cst_73 = arith.constant dense<0.000000e+00> : vector<256xf32>
    %129 = vector.multi_reduction <add>, %128, %cst_73 [0] : vector<56x256xf32> to vector<256xf32>
    %130 = vector.shape_cast %129 : vector<256xf32> to vector<1x256xf32>
    %c2_74 = arith.constant 2 : index
    %c0_75 = arith.constant 0 : index
    %c0_76 = arith.constant 0 : index
    %131 = vector.load %arg2[%c2_74, %c0_75, %c0_76] : memref<3x56x256xf32, #tpu.memory_space<vmem>>, vector<1x56x256xf32>
    %132 = vector.shape_cast %131 : vector<1x56x256xf32> to vector<56x256xf32>
    %133 = arith.mulf %132, %112 : vector<56x256xf32>
    %cst_77 = arith.constant dense<0.000000e+00> : vector<256xf32>
    %134 = vector.multi_reduction <add>, %133, %cst_77 [0] : vector<56x256xf32> to vector<256xf32>
    %135 = vector.shape_cast %134 : vector<256xf32> to vector<1x256xf32>
    %136 = tpu.concatenate %125, %130, %135 in 0 : vector<1x256xf32>, vector<1x256xf32>, vector<1x256xf32> -> vector<3x256xf32>
    %137 = vector.broadcast %120 : vector<1x256xf32> to vector<3x256xf32>
    %138 = arith.mulf %136, %137 : vector<3x256xf32>
    %c5 = arith.constant 5 : index
    %c0_78 = arith.constant 0 : index
    %c0_79 = arith.constant 0 : index
    %139 = vector.load %arg5[%c5, %c0_78, %c0_79] : memref<11x32x32xbf16, #tpu.memory_space<vmem>>, vector<1x32x32xbf16>
    %140 = vector.shape_cast %139 : vector<1x32x32xbf16> to vector<32x32xbf16>
    %cst_80 = arith.constant dense<0.000000e+00> : vector<32x256xf32>
    %141 = tpu.matmul %140, %69, %cst_80 {dimension_numbers = #tpu.dot_dimension_numbers<[1], [0], [0], [1], [0, 0, 1, 1], [], []>} : vector<32x32xbf16>, vector<32x256xbf16>, vector<32x256xf32> -> vector<32x256xf32>
    %c0_81 = arith.constant 0 : index
    %c3_82 = arith.constant 3 : index
    %142 = vector.load %arg10[%c0_81, %c3_82] : memref<32x14xf32, #tpu.memory_space<vmem>>, vector<32x1xf32>
    %143 = vector.extract_strided_slice %7 {offsets = [0, 0], sizes = [1, 256], strides = [1, 1]} : vector<3x256xf32> to vector<1x256xf32>
    %144 = vector.broadcast %142 : vector<32x1xf32> to vector<32x256xf32>
    %145 = vector.broadcast %143 : vector<1x256xf32> to vector<32x256xf32>
    %146 = arith.mulf %144, %145 : vector<32x256xf32>
    %c0_83 = arith.constant 0 : index
    %c4_84 = arith.constant 4 : index
    %147 = vector.load %arg10[%c0_83, %c4_84] : memref<32x14xf32, #tpu.memory_space<vmem>>, vector<32x1xf32>
    %148 = vector.extract_strided_slice %7 {offsets = [1, 0], sizes = [1, 256], strides = [1, 1]} : vector<3x256xf32> to vector<1x256xf32>
    %149 = vector.broadcast %147 : vector<32x1xf32> to vector<32x256xf32>
    %150 = vector.broadcast %148 : vector<1x256xf32> to vector<32x256xf32>
    %151 = arith.mulf %149, %150 : vector<32x256xf32>
    %152 = arith.addf %146, %151 : vector<32x256xf32>
    %c0_85 = arith.constant 0 : index
    %c5_86 = arith.constant 5 : index
    %153 = vector.load %arg10[%c0_85, %c5_86] : memref<32x14xf32, #tpu.memory_space<vmem>>, vector<32x1xf32>
    %154 = vector.extract_strided_slice %7 {offsets = [2, 0], sizes = [1, 256], strides = [1, 1]} : vector<3x256xf32> to vector<1x256xf32>
    %155 = vector.broadcast %153 : vector<32x1xf32> to vector<32x256xf32>
    %156 = vector.broadcast %154 : vector<1x256xf32> to vector<32x256xf32>
    %157 = arith.mulf %155, %156 : vector<32x256xf32>
    %158 = arith.addf %152, %157 : vector<32x256xf32>
    %159 = arith.addf %141, %158 : vector<32x256xf32>
    %cst_87 = arith.constant 0.000000e+00 : f32
    %160 = vector.broadcast %cst_87 : f32 to vector<32x256xf32>
    %161 = arith.maximumf %159, %160 : vector<32x256xf32>
    %162 = arith.truncf %161 : vector<32x256xf32> to vector<32x256xbf16>
    %c0_88 = arith.constant 0 : index
    %c0_89 = arith.constant 0 : index
    %c0_90 = arith.constant 0 : index
    %163 = vector.load %arg5[%c0_88, %c0_89, %c0_90] : memref<11x32x32xbf16, #tpu.memory_space<vmem>>, vector<1x32x32xbf16>
    %164 = vector.shape_cast %163 : vector<1x32x32xbf16> to vector<32x32xbf16>
    %cst_91 = arith.constant dense<0.000000e+00> : vector<32x256xf32>
    %165 = tpu.matmul %164, %162, %cst_91 {dimension_numbers = #tpu.dot_dimension_numbers<[1], [0], [0], [1], [0, 0, 1, 1], [], []>} : vector<32x32xbf16>, vector<32x256xbf16>, vector<32x256xf32> -> vector<32x256xf32>
    %cst_92 = arith.constant 0.000000e+00 : f32
    %166 = vector.broadcast %cst_92 : f32 to vector<32x256xf32>
    %167 = arith.maximumf %165, %166 : vector<32x256xf32>
    %168 = arith.truncf %167 : vector<32x256xf32> to vector<32x256xbf16>
    %c1_93 = arith.constant 1 : index
    %c0_94 = arith.constant 0 : index
    %c0_95 = arith.constant 0 : index
    %169 = vector.load %arg5[%c1_93, %c0_94, %c0_95] : memref<11x32x32xbf16, #tpu.memory_space<vmem>>, vector<1x32x32xbf16>
    %170 = vector.shape_cast %169 : vector<1x32x32xbf16> to vector<32x32xbf16>
    %cst_96 = arith.constant dense<0.000000e+00> : vector<32x256xf32>
    %171 = tpu.matmul %170, %168, %cst_96 {dimension_numbers = #tpu.dot_dimension_numbers<[1], [0], [0], [1], [0, 0, 1, 1], [], []>} : vector<32x32xbf16>, vector<32x256xbf16>, vector<32x256xf32> -> vector<32x256xf32>
    %cst_97 = arith.constant 0.000000e+00 : f32
    %172 = vector.broadcast %cst_97 : f32 to vector<32x256xf32>
    %173 = arith.maximumf %171, %172 : vector<32x256xf32>
    %174 = arith.truncf %173 : vector<32x256xf32> to vector<32x256xbf16>
    %c6 = arith.constant 6 : index
    %c0_98 = arith.constant 0 : index
    %c0_99 = arith.constant 0 : index
    %175 = vector.load %arg5[%c6, %c0_98, %c0_99] : memref<11x32x32xbf16, #tpu.memory_space<vmem>>, vector<1x32x32xbf16>
    %176 = vector.shape_cast %175 : vector<1x32x32xbf16> to vector<32x32xbf16>
    %cst_100 = arith.constant dense<0.000000e+00> : vector<32x256xf32>
    %177 = tpu.matmul %176, %174, %cst_100 {dimension_numbers = #tpu.dot_dimension_numbers<[1], [0], [0], [1], [0, 0, 1, 1], [], []>} : vector<32x32xbf16>, vector<32x256xbf16>, vector<32x256xf32> -> vector<32x256xf32>
    %c0_101 = arith.constant 0 : index
    %c6_102 = arith.constant 6 : index
    %178 = vector.load %arg10[%c0_101, %c6_102] : memref<32x14xf32, #tpu.memory_space<vmem>>, vector<32x1xf32>
    %179 = vector.extract_strided_slice %7 {offsets = [0, 0], sizes = [1, 256], strides = [1, 1]} : vector<3x256xf32> to vector<1x256xf32>
    %180 = vector.broadcast %178 : vector<32x1xf32> to vector<32x256xf32>
    %181 = vector.broadcast %179 : vector<1x256xf32> to vector<32x256xf32>
    %182 = arith.mulf %180, %181 : vector<32x256xf32>
    %c0_103 = arith.constant 0 : index
    %c7 = arith.constant 7 : index
    %183 = vector.load %arg10[%c0_103, %c7] : memref<32x14xf32, #tpu.memory_space<vmem>>, vector<32x1xf32>
    %184 = vector.extract_strided_slice %7 {offsets = [1, 0], sizes = [1, 256], strides = [1, 1]} : vector<3x256xf32> to vector<1x256xf32>
    %185 = vector.broadcast %183 : vector<32x1xf32> to vector<32x256xf32>
    %186 = vector.broadcast %184 : vector<1x256xf32> to vector<32x256xf32>
    %187 = arith.mulf %185, %186 : vector<32x256xf32>
    %188 = arith.addf %182, %187 : vector<32x256xf32>
    %c0_104 = arith.constant 0 : index
    %c8 = arith.constant 8 : index
    %189 = vector.load %arg10[%c0_104, %c8] : memref<32x14xf32, #tpu.memory_space<vmem>>, vector<32x1xf32>
    %190 = vector.extract_strided_slice %7 {offsets = [2, 0], sizes = [1, 256], strides = [1, 1]} : vector<3x256xf32> to vector<1x256xf32>
    %191 = vector.broadcast %189 : vector<32x1xf32> to vector<32x256xf32>
    %192 = vector.broadcast %190 : vector<1x256xf32> to vector<32x256xf32>
    %193 = arith.mulf %191, %192 : vector<32x256xf32>
    %194 = arith.addf %188, %193 : vector<32x256xf32>
    %195 = arith.addf %177, %194 : vector<32x256xf32>
    %cst_105 = arith.constant 0.000000e+00 : f32
    %196 = vector.broadcast %cst_105 : f32 to vector<32x256xf32>
    %197 = arith.maximumf %195, %196 : vector<32x256xf32>
    %198 = arith.truncf %197 : vector<32x256xf32> to vector<32x256xbf16>
    %c0_106 = arith.constant 0 : index
    %c0_107 = arith.constant 0 : index
    %c0_108 = arith.constant 0 : index
    %199 = vector.load %arg5[%c0_106, %c0_107, %c0_108] : memref<11x32x32xbf16, #tpu.memory_space<vmem>>, vector<1x32x32xbf16>
    %200 = vector.shape_cast %199 : vector<1x32x32xbf16> to vector<32x32xbf16>
    %cst_109 = arith.constant dense<0.000000e+00> : vector<32x256xf32>
    %201 = tpu.matmul %200, %198, %cst_109 {dimension_numbers = #tpu.dot_dimension_numbers<[1], [0], [0], [1], [0, 0, 1, 1], [], []>} : vector<32x32xbf16>, vector<32x256xbf16>, vector<32x256xf32> -> vector<32x256xf32>
    %cst_110 = arith.constant 0.000000e+00 : f32
    %202 = vector.broadcast %cst_110 : f32 to vector<32x256xf32>
    %203 = arith.maximumf %201, %202 : vector<32x256xf32>
    %204 = arith.truncf %203 : vector<32x256xf32> to vector<32x256xbf16>
    %c1_111 = arith.constant 1 : index
    %c0_112 = arith.constant 0 : index
    %c0_113 = arith.constant 0 : index
    %205 = vector.load %arg5[%c1_111, %c0_112, %c0_113] : memref<11x32x32xbf16, #tpu.memory_space<vmem>>, vector<1x32x32xbf16>
    %206 = vector.shape_cast %205 : vector<1x32x32xbf16> to vector<32x32xbf16>
    %cst_114 = arith.constant dense<0.000000e+00> : vector<32x256xf32>
    %207 = tpu.matmul %206, %204, %cst_114 {dimension_numbers = #tpu.dot_dimension_numbers<[1], [0], [0], [1], [0, 0, 1, 1], [], []>} : vector<32x32xbf16>, vector<32x256xbf16>, vector<32x256xf32> -> vector<32x256xf32>
    %cst_115 = arith.constant 0.000000e+00 : f32
    %208 = vector.broadcast %cst_115 : f32 to vector<32x256xf32>
    %209 = arith.maximumf %207, %208 : vector<32x256xf32>
    %210 = arith.truncf %209 : vector<32x256xf32> to vector<32x256xbf16>
    %c7_116 = arith.constant 7 : index
    %c0_117 = arith.constant 0 : index
    %c0_118 = arith.constant 0 : index
    %211 = vector.load %arg5[%c7_116, %c0_117, %c0_118] : memref<11x32x32xbf16, #tpu.memory_space<vmem>>, vector<1x32x32xbf16>
    %212 = vector.shape_cast %211 : vector<1x32x32xbf16> to vector<32x32xbf16>
    %cst_119 = arith.constant dense<0.000000e+00> : vector<32x256xf32>
    %213 = tpu.matmul %212, %210, %cst_119 {dimension_numbers = #tpu.dot_dimension_numbers<[1], [0], [0], [1], [0, 0, 1, 1], [], []>} : vector<32x32xbf16>, vector<32x256xbf16>, vector<32x256xf32> -> vector<32x256xf32>
    %c0_120 = arith.constant 0 : index
    %c9 = arith.constant 9 : index
    %214 = vector.load %arg10[%c0_120, %c9] : memref<32x14xf32, #tpu.memory_space<vmem>>, vector<32x1xf32>
    %215 = vector.extract_strided_slice %8 {offsets = [0, 0], sizes = [1, 256], strides = [1, 1]} : vector<2x256xf32> to vector<1x256xf32>
    %216 = vector.broadcast %214 : vector<32x1xf32> to vector<32x256xf32>
    %217 = vector.broadcast %215 : vector<1x256xf32> to vector<32x256xf32>
    %218 = arith.mulf %216, %217 : vector<32x256xf32>
    %c0_121 = arith.constant 0 : index
    %c10 = arith.constant 10 : index
    %219 = vector.load %arg10[%c0_121, %c10] : memref<32x14xf32, #tpu.memory_space<vmem>>, vector<32x1xf32>
    %220 = vector.extract_strided_slice %8 {offsets = [1, 0], sizes = [1, 256], strides = [1, 1]} : vector<2x256xf32> to vector<1x256xf32>
    %221 = vector.broadcast %219 : vector<32x1xf32> to vector<32x256xf32>
    %222 = vector.broadcast %220 : vector<1x256xf32> to vector<32x256xf32>
    %223 = arith.mulf %221, %222 : vector<32x256xf32>
    %224 = arith.addf %218, %223 : vector<32x256xf32>
    %225 = arith.addf %213, %224 : vector<32x256xf32>
    %cst_122 = arith.constant 0.000000e+00 : f32
    %226 = vector.broadcast %cst_122 : f32 to vector<32x256xf32>
    %227 = arith.maximumf %225, %226 : vector<32x256xf32>
    %228 = arith.truncf %227 : vector<32x256xf32> to vector<32x256xbf16>
    %c8_123 = arith.constant 8 : index
    %c0_124 = arith.constant 0 : index
    %c0_125 = arith.constant 0 : index
    %229 = vector.load %arg5[%c8_123, %c0_124, %c0_125] : memref<11x32x32xbf16, #tpu.memory_space<vmem>>, vector<1x32x32xbf16>
    %230 = vector.shape_cast %229 : vector<1x32x32xbf16> to vector<32x32xbf16>
    %cst_126 = arith.constant dense<0.000000e+00> : vector<32x256xf32>
    %231 = tpu.matmul %230, %228, %cst_126 {dimension_numbers = #tpu.dot_dimension_numbers<[1], [0], [0], [1], [0, 0, 1, 1], [], []>} : vector<32x32xbf16>, vector<32x256xbf16>, vector<32x256xf32> -> vector<32x256xf32>
    %cst_127 = arith.constant 0.000000e+00 : f32
    %232 = vector.broadcast %cst_127 : f32 to vector<32x256xf32>
    %233 = arith.maximumf %231, %232 : vector<32x256xf32>
    %234 = arith.truncf %233 : vector<32x256xf32> to vector<32x256xbf16>
    %c1_128 = arith.constant 1 : index
    %c0_129 = arith.constant 0 : index
    %c0_130 = arith.constant 0 : index
    %235 = vector.load %arg6[%c1_128, %c0_129, %c0_130] : memref<2x16x32xbf16, #tpu.memory_space<vmem>>, vector<1x16x32xbf16>
    %236 = vector.shape_cast %235 : vector<1x16x32xbf16> to vector<16x32xbf16>
    %cst_131 = arith.constant dense<0.000000e+00> : vector<16x256xf32>
    %237 = tpu.matmul %236, %234, %cst_131 {dimension_numbers = #tpu.dot_dimension_numbers<[1], [0], [0], [1], [0, 0, 1, 1], [], []>} : vector<16x32xbf16>, vector<32x256xbf16>, vector<16x256xf32> -> vector<16x256xf32>
    %cst_132 = arith.constant 0.000000e+00 : f32
    %238 = vector.broadcast %cst_132 : f32 to vector<16x256xf32>
    %239 = arith.maximumf %237, %238 : vector<16x256xf32>
    %240 = arith.truncf %239 : vector<16x256xf32> to vector<16x256xbf16>
    %c1_133 = arith.constant 1 : index
    %c0_134 = arith.constant 0 : index
    %c0_135 = arith.constant 0 : index
    %241 = vector.load %arg7[%c1_133, %c0_134, %c0_135] : memref<2x8x16xbf16, #tpu.memory_space<vmem>>, vector<1x8x16xbf16>
    %242 = vector.shape_cast %241 : vector<1x8x16xbf16> to vector<8x16xbf16>
    %cst_136 = arith.constant dense<0.000000e+00> : vector<8x256xf32>
    %243 = tpu.matmul %242, %240, %cst_136 {dimension_numbers = #tpu.dot_dimension_numbers<[1], [0], [0], [1], [0, 0, 1, 1], [], []>} : vector<8x16xbf16>, vector<16x256xbf16>, vector<8x256xf32> -> vector<8x256xf32>
    %244 = vector.extract_strided_slice %243 {offsets = [0, 0], sizes = [1, 256], strides = [1, 1]} : vector<8x256xf32> to vector<1x256xf32>
    %245 = arith.negf %244 : vector<1x256xf32>
    %246 = math.exp %245 : vector<1x256xf32>
    %cst_137 = arith.constant 1.000000e+00 : f32
    %247 = vector.broadcast %cst_137 : f32 to vector<1x256xf32>
    %248 = arith.addf %247, %246 : vector<1x256xf32>
    %249 = arith.divf %247, %248 : vector<1x256xf32>
    %cst_138 = arith.constant 5.000000e+00 : f32
    %250 = vector.broadcast %cst_138 : f32 to vector<1x256xf32>
    %251 = arith.mulf %250, %249 : vector<1x256xf32>
    %cst_139 = arith.constant 9.99999974E-5 : f32
    %252 = vector.broadcast %cst_139 : f32 to vector<1x256xf32>
    %253 = arith.addf %251, %252 : vector<1x256xf32>
    %254 = vector.extract_strided_slice %243 {offsets = [1, 0], sizes = [1, 256], strides = [1, 1]} : vector<8x256xf32> to vector<1x256xf32>
    %255 = arith.negf %254 : vector<1x256xf32>
    %256 = math.exp %255 : vector<1x256xf32>
    %cst_140 = arith.constant 1.000000e+00 : f32
    %257 = vector.broadcast %cst_140 : f32 to vector<1x256xf32>
    %258 = arith.addf %257, %256 : vector<1x256xf32>
    %259 = arith.divf %257, %258 : vector<1x256xf32>
    %cst_141 = arith.constant 5.000000e+00 : f32
    %260 = vector.broadcast %cst_141 : f32 to vector<1x256xf32>
    %261 = arith.mulf %260, %259 : vector<1x256xf32>
    %cst_142 = arith.constant 9.99999974E-5 : f32
    %262 = vector.broadcast %cst_142 : f32 to vector<1x256xf32>
    %263 = arith.addf %261, %262 : vector<1x256xf32>
    %264 = vector.extract_strided_slice %243 {offsets = [2, 0], sizes = [1, 256], strides = [1, 1]} : vector<8x256xf32> to vector<1x256xf32>
    %cst_143 = arith.constant 9.99999974E-5 : f32
    %265 = vector.broadcast %cst_143 : f32 to vector<1x256xf32>
    %266 = arith.addf %264, %265 : vector<1x256xf32>
    %267 = vector.extract_strided_slice %243 {offsets = [3, 0], sizes = [1, 256], strides = [1, 1]} : vector<8x256xf32> to vector<1x256xf32>
    %cst_144 = arith.constant 9.99999974E-5 : f32
    %268 = vector.broadcast %cst_144 : f32 to vector<1x256xf32>
    %269 = arith.addf %267, %268 : vector<1x256xf32>
    %270 = vector.extract_strided_slice %243 {offsets = [4, 0], sizes = [1, 256], strides = [1, 1]} : vector<8x256xf32> to vector<1x256xf32>
    %271 = arith.negf %270 : vector<1x256xf32>
    %272 = math.exp %271 : vector<1x256xf32>
    %cst_145 = arith.constant 1.000000e+00 : f32
    %273 = vector.broadcast %cst_145 : f32 to vector<1x256xf32>
    %274 = arith.addf %273, %272 : vector<1x256xf32>
    %275 = arith.divf %273, %274 : vector<1x256xf32>
    %cst_146 = arith.constant 1.000000e-01 : f32
    %276 = vector.broadcast %cst_146 : f32 to vector<1x256xf32>
    %277 = arith.mulf %275, %276 : vector<1x256xf32>
    %278 = arith.mulf %277, %277 : vector<1x256xf32>
    %cst_147 = arith.constant 1.000000e+00 : f32
    %279 = vector.broadcast %cst_147 : f32 to vector<1x256xf32>
    %280 = arith.subf %279, %278 : vector<1x256xf32>
    %cst_148 = arith.constant 1.000000e+00 : f32
    %281 = vector.broadcast %cst_148 : f32 to vector<1x256xf32>
    %282 = arith.divf %281, %253 : vector<1x256xf32>
    %cst_149 = arith.constant 1.000000e+00 : f32
    %283 = vector.broadcast %cst_149 : f32 to vector<1x256xf32>
    %284 = arith.divf %283, %263 : vector<1x256xf32>
    %cst_150 = arith.constant -5.000000e-01 : f32
    %285 = vector.broadcast %cst_150 : f32 to vector<1x256xf32>
    %286 = arith.divf %285, %280 : vector<1x256xf32>
    %287 = arith.mulf %286, %282 : vector<1x256xf32>
    %288 = arith.mulf %287, %282 : vector<1x256xf32>
    %cst_151 = arith.constant -2.000000e+00 : f32
    %289 = vector.broadcast %cst_151 : f32 to vector<1x256xf32>
    %290 = arith.mulf %289, %277 : vector<1x256xf32>
    %291 = arith.mulf %286, %290 : vector<1x256xf32>
    %292 = arith.mulf %291, %282 : vector<1x256xf32>
    %293 = arith.mulf %292, %284 : vector<1x256xf32>
    %294 = arith.mulf %286, %284 : vector<1x256xf32>
    %295 = arith.mulf %294, %284 : vector<1x256xf32>
    %296 = vector.broadcast %1 : vector<56x1xf32> to vector<56x256xf32>
    %297 = vector.broadcast %266 : vector<1x256xf32> to vector<56x256xf32>
    %298 = arith.subf %296, %297 : vector<56x256xf32>
    %299 = vector.broadcast %2 : vector<56x1xf32> to vector<56x256xf32>
    %300 = vector.broadcast %269 : vector<1x256xf32> to vector<56x256xf32>
    %301 = arith.subf %299, %300 : vector<56x256xf32>
    %302 = arith.mulf %298, %298 : vector<56x256xf32>
    %303 = vector.broadcast %288 : vector<1x256xf32> to vector<56x256xf32>
    %304 = arith.mulf %302, %303 : vector<56x256xf32>
    %305 = arith.mulf %298, %301 : vector<56x256xf32>
    %306 = vector.broadcast %293 : vector<1x256xf32> to vector<56x256xf32>
    %307 = arith.mulf %305, %306 : vector<56x256xf32>
    %308 = arith.addf %304, %307 : vector<56x256xf32>
    %309 = arith.mulf %301, %301 : vector<56x256xf32>
    %310 = vector.broadcast %295 : vector<1x256xf32> to vector<56x256xf32>
    %311 = arith.mulf %309, %310 : vector<56x256xf32>
    %312 = arith.addf %308, %311 : vector<56x256xf32>
    %313 = math.exp %312 : vector<56x256xf32>
    %cst_152 = arith.constant dense<0.000000e+00> : vector<256xf32>
    %314 = vector.multi_reduction <add>, %313, %cst_152 [0] : vector<56x256xf32> to vector<256xf32>
    %315 = vector.shape_cast %314 : vector<256xf32> to vector<1x256xf32>
    %316 = arith.mulf %253, %263 : vector<1x256xf32>
    %cst_153 = arith.constant 6.28318521E-5 : f32
    %317 = vector.broadcast %cst_153 : f32 to vector<1x256xf32>
    %318 = arith.mulf %317, %316 : vector<1x256xf32>
    %319 = math.sqrt %280 : vector<1x256xf32>
    %320 = arith.mulf %318, %319 : vector<1x256xf32>
    %321 = arith.addf %315, %320 : vector<1x256xf32>
    %cst_154 = arith.constant 1.000000e+00 : f32
    %322 = vector.broadcast %cst_154 : f32 to vector<1x256xf32>
    %323 = arith.divf %322, %321 : vector<1x256xf32>
    %c0_155 = arith.constant 0 : index
    %c0_156 = arith.constant 0 : index
    %c0_157 = arith.constant 0 : index
    %324 = vector.load %arg2[%c0_155, %c0_156, %c0_157] : memref<3x56x256xf32, #tpu.memory_space<vmem>>, vector<1x56x256xf32>
    %325 = vector.shape_cast %324 : vector<1x56x256xf32> to vector<56x256xf32>
    %326 = arith.mulf %325, %313 : vector<56x256xf32>
    %cst_158 = arith.constant dense<0.000000e+00> : vector<256xf32>
    %327 = vector.multi_reduction <add>, %326, %cst_158 [0] : vector<56x256xf32> to vector<256xf32>
    %328 = vector.shape_cast %327 : vector<256xf32> to vector<1x256xf32>
    %c1_159 = arith.constant 1 : index
    %c0_160 = arith.constant 0 : index
    %c0_161 = arith.constant 0 : index
    %329 = vector.load %arg2[%c1_159, %c0_160, %c0_161] : memref<3x56x256xf32, #tpu.memory_space<vmem>>, vector<1x56x256xf32>
    %330 = vector.shape_cast %329 : vector<1x56x256xf32> to vector<56x256xf32>
    %331 = arith.mulf %330, %313 : vector<56x256xf32>
    %cst_162 = arith.constant dense<0.000000e+00> : vector<256xf32>
    %332 = vector.multi_reduction <add>, %331, %cst_162 [0] : vector<56x256xf32> to vector<256xf32>
    %333 = vector.shape_cast %332 : vector<256xf32> to vector<1x256xf32>
    %c2_163 = arith.constant 2 : index
    %c0_164 = arith.constant 0 : index
    %c0_165 = arith.constant 0 : index
    %334 = vector.load %arg2[%c2_163, %c0_164, %c0_165] : memref<3x56x256xf32, #tpu.memory_space<vmem>>, vector<1x56x256xf32>
    %335 = vector.shape_cast %334 : vector<1x56x256xf32> to vector<56x256xf32>
    %336 = arith.mulf %335, %313 : vector<56x256xf32>
    %cst_166 = arith.constant dense<0.000000e+00> : vector<256xf32>
    %337 = vector.multi_reduction <add>, %336, %cst_166 [0] : vector<56x256xf32> to vector<256xf32>
    %338 = vector.shape_cast %337 : vector<256xf32> to vector<1x256xf32>
    %339 = tpu.concatenate %328, %333, %338 in 0 : vector<1x256xf32>, vector<1x256xf32>, vector<1x256xf32> -> vector<3x256xf32>
    %340 = vector.broadcast %323 : vector<1x256xf32> to vector<3x256xf32>
    %341 = arith.mulf %339, %340 : vector<3x256xf32>
    %c9_167 = arith.constant 9 : index
    %c0_168 = arith.constant 0 : index
    %c0_169 = arith.constant 0 : index
    %342 = vector.load %arg5[%c9_167, %c0_168, %c0_169] : memref<11x32x32xbf16, #tpu.memory_space<vmem>>, vector<1x32x32xbf16>
    %343 = vector.shape_cast %342 : vector<1x32x32xbf16> to vector<32x32xbf16>
    %cst_170 = arith.constant dense<0.000000e+00> : vector<32x256xf32>
    %344 = tpu.matmul %343, %234, %cst_170 {dimension_numbers = #tpu.dot_dimension_numbers<[1], [0], [0], [1], [0, 0, 1, 1], [], []>} : vector<32x32xbf16>, vector<32x256xbf16>, vector<32x256xf32> -> vector<32x256xf32>
    %cst_171 = arith.constant 0.000000e+00 : f32
    %345 = vector.broadcast %cst_171 : f32 to vector<32x256xf32>
    %346 = arith.maximumf %344, %345 : vector<32x256xf32>
    %347 = arith.truncf %346 : vector<32x256xf32> to vector<32x256xbf16>
    %c0_172 = arith.constant 0 : index
    %c0_173 = arith.constant 0 : index
    %c0_174 = arith.constant 0 : index
    %348 = vector.load %arg5[%c0_172, %c0_173, %c0_174] : memref<11x32x32xbf16, #tpu.memory_space<vmem>>, vector<1x32x32xbf16>
    %349 = vector.shape_cast %348 : vector<1x32x32xbf16> to vector<32x32xbf16>
    %cst_175 = arith.constant dense<0.000000e+00> : vector<32x256xf32>
    %350 = tpu.matmul %349, %347, %cst_175 {dimension_numbers = #tpu.dot_dimension_numbers<[1], [0], [0], [1], [0, 0, 1, 1], [], []>} : vector<32x32xbf16>, vector<32x256xbf16>, vector<32x256xf32> -> vector<32x256xf32>
    %cst_176 = arith.constant 0.000000e+00 : f32
    %351 = vector.broadcast %cst_176 : f32 to vector<32x256xf32>
    %352 = arith.maximumf %350, %351 : vector<32x256xf32>
    %353 = arith.truncf %352 : vector<32x256xf32> to vector<32x256xbf16>
    %c1_177 = arith.constant 1 : index
    %c0_178 = arith.constant 0 : index
    %c0_179 = arith.constant 0 : index
    %354 = vector.load %arg5[%c1_177, %c0_178, %c0_179] : memref<11x32x32xbf16, #tpu.memory_space<vmem>>, vector<1x32x32xbf16>
    %355 = vector.shape_cast %354 : vector<1x32x32xbf16> to vector<32x32xbf16>
    %cst_180 = arith.constant dense<0.000000e+00> : vector<32x256xf32>
    %356 = tpu.matmul %355, %353, %cst_180 {dimension_numbers = #tpu.dot_dimension_numbers<[1], [0], [0], [1], [0, 0, 1, 1], [], []>} : vector<32x32xbf16>, vector<32x256xbf16>, vector<32x256xf32> -> vector<32x256xf32>
    %cst_181 = arith.constant 0.000000e+00 : f32
    %357 = vector.broadcast %cst_181 : f32 to vector<32x256xf32>
    %358 = arith.maximumf %356, %357 : vector<32x256xf32>
    %359 = arith.truncf %358 : vector<32x256xf32> to vector<32x256xbf16>
    %c10_182 = arith.constant 10 : index
    %c0_183 = arith.constant 0 : index
    %c0_184 = arith.constant 0 : index
    %360 = vector.load %arg5[%c10_182, %c0_183, %c0_184] : memref<11x32x32xbf16, #tpu.memory_space<vmem>>, vector<1x32x32xbf16>
    %361 = vector.shape_cast %360 : vector<1x32x32xbf16> to vector<32x32xbf16>
    %cst_185 = arith.constant dense<0.000000e+00> : vector<32x256xf32>
    %362 = tpu.matmul %361, %359, %cst_185 {dimension_numbers = #tpu.dot_dimension_numbers<[1], [0], [0], [1], [0, 0, 1, 1], [], []>} : vector<32x32xbf16>, vector<32x256xbf16>, vector<32x256xf32> -> vector<32x256xf32>
    %c0_186 = arith.constant 0 : index
    %c11 = arith.constant 11 : index
    %363 = vector.load %arg10[%c0_186, %c11] : memref<32x14xf32, #tpu.memory_space<vmem>>, vector<32x1xf32>
    %364 = vector.extract_strided_slice %7 {offsets = [0, 0], sizes = [1, 256], strides = [1, 1]} : vector<3x256xf32> to vector<1x256xf32>
    %365 = vector.broadcast %363 : vector<32x1xf32> to vector<32x256xf32>
    %366 = vector.broadcast %364 : vector<1x256xf32> to vector<32x256xf32>
    %367 = arith.mulf %365, %366 : vector<32x256xf32>
    %c0_187 = arith.constant 0 : index
    %c12 = arith.constant 12 : index
    %368 = vector.load %arg10[%c0_187, %c12] : memref<32x14xf32, #tpu.memory_space<vmem>>, vector<32x1xf32>
    %369 = vector.extract_strided_slice %7 {offsets = [1, 0], sizes = [1, 256], strides = [1, 1]} : vector<3x256xf32> to vector<1x256xf32>
    %370 = vector.broadcast %368 : vector<32x1xf32> to vector<32x256xf32>
    %371 = vector.broadcast %369 : vector<1x256xf32> to vector<32x256xf32>
    %372 = arith.mulf %370, %371 : vector<32x256xf32>
    %373 = arith.addf %367, %372 : vector<32x256xf32>
    %c0_188 = arith.constant 0 : index
    %c13 = arith.constant 13 : index
    %374 = vector.load %arg10[%c0_188, %c13] : memref<32x14xf32, #tpu.memory_space<vmem>>, vector<32x1xf32>
    %375 = vector.extract_strided_slice %7 {offsets = [2, 0], sizes = [1, 256], strides = [1, 1]} : vector<3x256xf32> to vector<1x256xf32>
    %376 = vector.broadcast %374 : vector<32x1xf32> to vector<32x256xf32>
    %377 = vector.broadcast %375 : vector<1x256xf32> to vector<32x256xf32>
    %378 = arith.mulf %376, %377 : vector<32x256xf32>
    %379 = arith.addf %373, %378 : vector<32x256xf32>
    %380 = arith.addf %362, %379 : vector<32x256xf32>
    %cst_189 = arith.constant 0.000000e+00 : f32
    %381 = vector.broadcast %cst_189 : f32 to vector<32x256xf32>
    %382 = arith.maximumf %380, %381 : vector<32x256xf32>
    %383 = arith.truncf %382 : vector<32x256xf32> to vector<32x256xbf16>
    %c0_190 = arith.constant 0 : index
    %c0_191 = arith.constant 0 : index
    %c0_192 = arith.constant 0 : index
    %384 = vector.load %arg5[%c0_190, %c0_191, %c0_192] : memref<11x32x32xbf16, #tpu.memory_space<vmem>>, vector<1x32x32xbf16>
    %385 = vector.shape_cast %384 : vector<1x32x32xbf16> to vector<32x32xbf16>
    %cst_193 = arith.constant dense<0.000000e+00> : vector<32x256xf32>
    %386 = tpu.matmul %385, %383, %cst_193 {dimension_numbers = #tpu.dot_dimension_numbers<[1], [0], [0], [1], [0, 0, 1, 1], [], []>} : vector<32x32xbf16>, vector<32x256xbf16>, vector<32x256xf32> -> vector<32x256xf32>
    %cst_194 = arith.constant 0.000000e+00 : f32
    %387 = vector.broadcast %cst_194 : f32 to vector<32x256xf32>
    %388 = arith.maximumf %386, %387 : vector<32x256xf32>
    %389 = arith.truncf %388 : vector<32x256xf32> to vector<32x256xbf16>
    %c1_195 = arith.constant 1 : index
    %c0_196 = arith.constant 0 : index
    %c0_197 = arith.constant 0 : index
    %390 = vector.load %arg5[%c1_195, %c0_196, %c0_197] : memref<11x32x32xbf16, #tpu.memory_space<vmem>>, vector<1x32x32xbf16>
    %391 = vector.shape_cast %390 : vector<1x32x32xbf16> to vector<32x32xbf16>
    %cst_198 = arith.constant dense<0.000000e+00> : vector<32x256xf32>
    %392 = tpu.matmul %391, %389, %cst_198 {dimension_numbers = #tpu.dot_dimension_numbers<[1], [0], [0], [1], [0, 0, 1, 1], [], []>} : vector<32x32xbf16>, vector<32x256xbf16>, vector<32x256xf32> -> vector<32x256xf32>
    %cst_199 = arith.constant 0.000000e+00 : f32
    %393 = vector.broadcast %cst_199 : f32 to vector<32x256xf32>
    %394 = arith.maximumf %392, %393 : vector<32x256xf32>
    %395 = arith.truncf %394 : vector<32x256xf32> to vector<32x256xbf16>
    %cst_200 = arith.constant dense<0.000000e+00> : vector<64x256xf32>
    %396 = tpu.matmul %3, %395, %cst_200 {dimension_numbers = #tpu.dot_dimension_numbers<[1], [0], [0], [1], [0, 0, 1, 1], [], []>} : vector<64x32xbf16>, vector<32x256xbf16>, vector<64x256xf32> -> vector<64x256xf32>
    %cst_201 = arith.constant 0.000000e+00 : f32
    %397 = vector.broadcast %cst_201 : f32 to vector<64x256xf32>
    %398 = arith.maximumf %396, %397 : vector<64x256xf32>
    %399 = arith.truncf %398 : vector<64x256xf32> to vector<64x256xbf16>
    %cst_202 = arith.constant dense<0.000000e+00> : vector<56x256xf32>
    %400 = tpu.matmul %4, %399, %cst_202 {dimension_numbers = #tpu.dot_dimension_numbers<[1], [0], [0], [1], [0, 0, 1, 1], [], []>} : vector<56x64xbf16>, vector<64x256xbf16>, vector<56x256xf32> -> vector<56x256xf32>
    %cst_203 = arith.constant dense<0.000000e+00> : vector<256xf32>
    %401 = vector.multi_reduction <add>, %400, %cst_203 [0] : vector<56x256xf32> to vector<256xf32>
    %402 = vector.shape_cast %401 : vector<256xf32> to vector<1x256xf32>
    %cst_204 = arith.constant 9.99999974E-6 : f32
    %403 = vector.broadcast %cst_204 : f32 to vector<1x256xf32>
    %404 = arith.addf %402, %403 : vector<1x256xf32>
    %cst_205 = arith.constant 1.000000e+00 : f32
    %405 = vector.broadcast %cst_205 : f32 to vector<1x256xf32>
    %406 = arith.divf %405, %404 : vector<1x256xf32>
    %c0_206 = arith.constant 0 : index
    %c0_207 = arith.constant 0 : index
    %c0_208 = arith.constant 0 : index
    %407 = vector.load %arg2[%c0_206, %c0_207, %c0_208] : memref<3x56x256xf32, #tpu.memory_space<vmem>>, vector<1x56x256xf32>
    %408 = vector.shape_cast %407 : vector<1x56x256xf32> to vector<56x256xf32>
    %409 = arith.mulf %408, %400 : vector<56x256xf32>
    %cst_209 = arith.constant dense<0.000000e+00> : vector<256xf32>
    %410 = vector.multi_reduction <add>, %409, %cst_209 [0] : vector<56x256xf32> to vector<256xf32>
    %411 = vector.shape_cast %410 : vector<256xf32> to vector<1x256xf32>
    %c1_210 = arith.constant 1 : index
    %c0_211 = arith.constant 0 : index
    %c0_212 = arith.constant 0 : index
    %412 = vector.load %arg2[%c1_210, %c0_211, %c0_212] : memref<3x56x256xf32, #tpu.memory_space<vmem>>, vector<1x56x256xf32>
    %413 = vector.shape_cast %412 : vector<1x56x256xf32> to vector<56x256xf32>
    %414 = arith.mulf %413, %400 : vector<56x256xf32>
    %cst_213 = arith.constant dense<0.000000e+00> : vector<256xf32>
    %415 = vector.multi_reduction <add>, %414, %cst_213 [0] : vector<56x256xf32> to vector<256xf32>
    %416 = vector.shape_cast %415 : vector<256xf32> to vector<1x256xf32>
    %c2_214 = arith.constant 2 : index
    %c0_215 = arith.constant 0 : index
    %c0_216 = arith.constant 0 : index
    %417 = vector.load %arg2[%c2_214, %c0_215, %c0_216] : memref<3x56x256xf32, #tpu.memory_space<vmem>>, vector<1x56x256xf32>
    %418 = vector.shape_cast %417 : vector<1x56x256xf32> to vector<56x256xf32>
    %419 = arith.mulf %418, %400 : vector<56x256xf32>
    %cst_217 = arith.constant dense<0.000000e+00> : vector<256xf32>
    %420 = vector.multi_reduction <add>, %419, %cst_217 [0] : vector<56x256xf32> to vector<256xf32>
    %421 = vector.shape_cast %420 : vector<256xf32> to vector<1x256xf32>
    %422 = tpu.concatenate %411, %416, %421 in 0 : vector<1x256xf32>, vector<1x256xf32>, vector<1x256xf32> -> vector<3x256xf32>
    %423 = vector.broadcast %406 : vector<1x256xf32> to vector<3x256xf32>
    %424 = arith.mulf %422, %423 : vector<3x256xf32>
    %425 = tpu.concatenate %253, %263, %266, %269, %277 in 0 : vector<1x256xf32>, vector<1x256xf32>, vector<1x256xf32>, vector<1x256xf32>, vector<1x256xf32> -> vector<5x256xf32>
    %cst_218 = arith.constant 0.000000e+00 : f32
    %426 = vector.broadcast %cst_218 : f32 to vector<2x256xf32>
    %427 = tpu.concatenate %138, %341, %424, %425, %426 in 0 : vector<3x256xf32>, vector<3x256xf32>, vector<3x256xf32>, vector<5x256xf32>, vector<2x256xf32> -> vector<16x256xf32>
    %c0_219 = arith.constant 0 : index
    %c0_220 = arith.constant 0 : index
    %428 = vector.load %arg11[%c0_219, %c0_220] : memref<16x256xf32, #tpu.memory_space<vmem>>, vector<16x256xf32>
    tpu.vector_store %arg11[%c0_219, %c0_220], %427 {strides = array<i32>} : memref<16x256xf32, #tpu.memory_space<vmem>>, vector<16x256xf32>,
    return
  }
  func.func @transform_0(%arg0: i32) -> (i32, i32) {
    %c0_i32 = arith.constant 0 : i32
    %c0_i32_0 = arith.constant 0 : i32
    return %c0_i32, %arg0 : i32, i32
  }
  func.func @transform_1(%arg0: i32) -> (i32, i32, i32) {
    %c0_i32 = arith.constant 0 : i32
    %c0_i32_0 = arith.constant 0 : i32
    %c0_i32_1 = arith.constant 0 : i32
    return %c0_i32, %c0_i32_0, %arg0 : i32, i32, i32
  }
  func.func @transform_2(%arg0: i32) -> (i32, i32) {
    %c0_i32 = arith.constant 0 : i32
    %c0_i32_0 = arith.constant 0 : i32
    %c0_i32_1 = arith.constant 0 : i32
    return %c0_i32, %c0_i32_0 : i32, i32
  }
  func.func @transform_3(%arg0: i32) -> (i32, i32) {
    %c0_i32 = arith.constant 0 : i32
    %c0_i32_0 = arith.constant 0 : i32
    %c0_i32_1 = arith.constant 0 : i32
    return %c0_i32, %c0_i32_0 : i32, i32
  }
  func.func @transform_4(%arg0: i32) -> (i32, i32, i32) {
    %c0_i32 = arith.constant 0 : i32
    %c0_i32_0 = arith.constant 0 : i32
    %c0_i32_1 = arith.constant 0 : i32
    %c0_i32_2 = arith.constant 0 : i32
    return %c0_i32, %c0_i32_0, %c0_i32_1 : i32, i32, i32
  }
  func.func @transform_5(%arg0: i32) -> (i32, i32, i32) {
    %c0_i32 = arith.constant 0 : i32
    %c0_i32_0 = arith.constant 0 : i32
    %c0_i32_1 = arith.constant 0 : i32
    %c0_i32_2 = arith.constant 0 : i32
    return %c0_i32, %c0_i32_0, %c0_i32_1 : i32, i32, i32
  }
  func.func @transform_6(%arg0: i32) -> (i32, i32, i32) {
    %c0_i32 = arith.constant 0 : i32
    %c0_i32_0 = arith.constant 0 : i32
    %c0_i32_1 = arith.constant 0 : i32
    %c0_i32_2 = arith.constant 0 : i32
    return %c0_i32, %c0_i32_0, %c0_i32_1 : i32, i32, i32
  }
  func.func @transform_7(%arg0: i32) -> (i32, i32) {
    %c0_i32 = arith.constant 0 : i32
    %c0_i32_0 = arith.constant 0 : i32
    %c0_i32_1 = arith.constant 0 : i32
    return %c0_i32, %c0_i32_0 : i32, i32
  }
  func.func @transform_8(%arg0: i32) -> (i32, i32) {
    %c0_i32 = arith.constant 0 : i32
    %c0_i32_0 = arith.constant 0 : i32
    %c0_i32_1 = arith.constant 0 : i32
    return %c0_i32, %c0_i32_0 : i32, i32
  }
  func.func @transform_9(%arg0: i32) -> (i32, i32) {
    %c0_i32 = arith.constant 0 : i32
    %c0_i32_0 = arith.constant 0 : i32
    %c0_i32_1 = arith.constant 0 : i32
    return %c0_i32, %c0_i32_0 : i32, i32
  }
  func.func @transform_10(%arg0: i32) -> (i32, i32) {
    %c0_i32 = arith.constant 0 : i32
    %c0_i32_0 = arith.constant 0 : i32
    return %c0_i32, %arg0 : i32, i32
  }
}

</mosaic_0001>

<llo_original>
// kernel: tpu_custom_call.1
$region0: #{tpu_custom_call.1}
  #allocation0 [shape = 'u32[]', space=smem, size = 0x4, offset = 0x4, fixed_abs, tag = 'smem constant byte address 0x4 - core index']
  #allocation1 [shape = 'u32[144,128]{1,0:T(1,128)}', space=vmem, size = 0x12000, scoped, tag = 'internal scratch']
  %s0 = inlined_call_operand.hbm [shape: f32[8,1024], index: 0, kind: input, shape index: {}]
  %s1 = inlined_call_operand.hbm [shape: f32[3,56,1024], index: 1, kind: input, shape index: {}]
  %s2 = inlined_call_operand.vmem [shape: f32[56,1], index: 2, kind: input, shape index: {}]
  %s3 = inlined_call_operand.vmem [shape: f32[56,1], index: 3, kind: input, shape index: {}]
  %s4 = inlined_call_operand.vmem [shape: bf16[11,32,32], index: 4, kind: input, shape index: {}]
  %s5 = inlined_call_operand.vmem [shape: bf16[2,16,32], index: 5, kind: input, shape index: {}]
  %s6 = inlined_call_operand.hbm [shape: bf16[2,8,16], index: 6, kind: input, shape index: {}]
  %s7 = inlined_call_operand.vmem [shape: bf16[64,32], index: 7, kind: input, shape index: {}]
  %s8 = inlined_call_operand.vmem [shape: bf16[56,64], index: 8, kind: input, shape index: {}]
  %s9 = inlined_call_operand.vmem [shape: f32[32,14], index: 9, kind: input, shape index: {}]
  %s10 = inlined_call_operand.hbm [shape: f32[16,1024], index: 10, kind: output, shape index: {}]
  %s11 = sld [smem:[#allocation0]]
  $region85: #{tpu_custom_call.1} parent=0
    _
  %s13 = ssub.s32 1, %s11
  %s14 = scalar_select 0, %s13, %s11
  $region1: #{tpu_custom_call.1} parent=0
    #allocation2 [shape = 'u8[16384]{0}', space=vmem, size = 0x4000, scoped, tag = 'input window, operand 0']
    #allocation3 [shape = 's32[2]{0}', space=sflag, size = 0x8, scoped, tag = 'scoped memory for tpu_custom_call.1']
    #allocation4 [shape = 's32[2]{0}', space=sflag, size = 0x8, scoped, tag = 'scoped memory for tpu_custom_call.1']
    #allocation5 [shape = 'u8[344064]{0}', space=vmem, size = 0x54000, scoped, tag = 'input window, operand 1']
    #allocation6 [shape = 's32[2]{0}', space=sflag, size = 0x8, scoped, tag = 'scoped memory for tpu_custom_call.1']
    #allocation7 [shape = 'u8[4096]{0}', space=vmem, size = 0x1000, scoped, tag = 'input window, operand 6, single buffered']
    #allocation8 [shape = 'u8[32768]{0}', space=vmem, size = 0x8000, scoped, tag = 'output window, operand 0']
    %15 = vsyncpa [#allocation3], 0
    %s16 = scalar_lea.sflag [#allocation3], 1
    %17 = vsyncpa %s16, 0
    %18 = vsyncpa [#allocation6], 0
    %s19 = scalar_lea.sflag [#allocation6], 1
    %20 = vsyncpa %s19, 0
    %21 = vsyncpa [#allocation4], 0
    %s22 = scalar_lea.sflag [#allocation4], 1
    %23 = vsyncpa %s22, 0
    loop: start=0, step=1, limit=6
    $region2: #{tpu_custom_call.1} parent=1 // loop_pre_header
      _
    $region3: #{tpu_custom_call.1} parent=1 // loop_header
      %s25 = sphi 0, %s29
      %p26 = scmp.ge.s32.totalorder %s25, 6
      %s35 = sphi 0, %s37
      %s38 = sphi 0, %s35
      %s39 = sphi 0, %s38
      %s55 = sphi 0, %s39
      %s61 = sphi 0, %s63
      %s64 = sphi 0, %s61
      %s65 = sphi 0, %s64
      %s81 = sphi 0, %s65
      %s85 = sphi 0, %s85
      %s87 = sphi 0, %s85
      %s88 = sphi 0, %s87
      %s102 = sphi 0, %s88
      %s106 = sphi 0, %s106
      %s108 = sphi 0, %s106
      %s109 = sphi 0, %s108
      %s123 = sphi 0, %s109
      %s127 = sphi 0, %s127
      %s129 = sphi 0, %s127
      %s130 = sphi 0, %s129
      %s144 = sphi 0, %s130
      %s148 = sphi 0, %s148
      %s150 = sphi 0, %s148
      %s151 = sphi 0, %s150
      %s165 = sphi 0, %s151
      %s169 = sphi 0, %s169
      %s171 = sphi 0, %s169
      %s172 = sphi 0, %s171
      %s186 = sphi 0, %s172
      %s190 = sphi 0, %s190
      %s192 = sphi 0, %s190
      %s193 = sphi 0, %s192
      %s207 = sphi 0, %s193
      %s211 = sphi 0, %s211
      %s213 = sphi 0, %s211
      %s214 = sphi 0, %s213
      %s228 = sphi 0, %s214
      %s232 = sphi 0, %s232
      %s234 = sphi 0, %s232
      %s235 = sphi 0, %s234
      %s249 = sphi 0, %s235
      %s255 = sphi 0, %s257
      %s258 = sphi 0, %s255
      %s259 = sphi 0, %s258
      %s275 = sphi 0, %s259
    $region4: #{tpu_custom_call.1} parent=1 // loop_header_branch
      %28 = sbr.rel (%p26) target = $region8
    $region5: #{tpu_custom_call.1} parent=1 // loop_body
      %s30 = ssub.s32 %s25, 1
      %s31 = ssub.s32 %s25, 2
      %s32 = sadd.s32 %s25, 1
      %s33 = ssub.s32 %s25, %s32
      %p34 = scmp.eq.s32.totalorder %s33, 0
      %s36 = sadd.s32 %s35, 1
      %s37 = scalar_select %p34, %s35, %s36
      %p40 = pneg %p34
      %p41 = scmp.eq.s32.totalorder %s25, 3
      %p42 = por %p40, %p41
      %p43 = scmp.ne.s32.totalorder %s35, %s38
      %p44 = scmp.eq.s32.totalorder %s25, 0
      %p45 = por %p43, %p44
      %p46 = scmp.ne.s32.totalorder %s35, %s38
      %p47 = scmp.eq.s32.totalorder %s30, 3
      %p48 = por %p46, %p47
      %p49 = scmp.ne.s32.totalorder %s38, %s39
      %p50 = scmp.eq.s32.totalorder %s30, 0
      %p51 = por %p49, %p50
      %p52 = scmp.ne.s32.totalorder %s38, %s39
      %p53 = scmp.eq.s32.totalorder %s31, 3
      %p54 = por %p52, %p53
      %p56 = scmp.ne.s32.totalorder %s39, %s55
      %p57 = scmp.eq.s32.totalorder %s31, 0
      %p58 = por %p56, %p57
      %s59 = ssub.s32 %s25, %s32
      %p60 = scmp.eq.s32.totalorder %s59, 0
      %s62 = sadd.s32 %s61, 1
      %s63 = scalar_select %p60, %s61, %s62
      %p66 = pneg %p60
      %p67 = scmp.eq.s32.totalorder %s25, 3
      %p68 = por %p66, %p67
      %p69 = scmp.ne.s32.totalorder %s61, %s64
      %p70 = scmp.eq.s32.totalorder %s25, 0
      %p71 = por %p69, %p70
      %p72 = scmp.ne.s32.totalorder %s61, %s64
      %p73 = scmp.eq.s32.totalorder %s30, 3
      %p74 = por %p72, %p73
      %p75 = scmp.ne.s32.totalorder %s64, %s65
      %p76 = scmp.eq.s32.totalorder %s30, 0
      %p77 = por %p75, %p76
      %p78 = scmp.ne.s32.totalorder %s64, %s65
      %p79 = scmp.eq.s32.totalorder %s31, 3
      %p80 = por %p78, %p79
      %p82 = scmp.ne.s32.totalorder %s65, %s81
      %p83 = scmp.eq.s32.totalorder %s31, 0
      %p84 = por %p82, %p83
      %s86 = sadd.s32 %s85, 1
      %p89 = scmp.eq.s32.totalorder %s25, 3
      %p90 = scmp.ne.s32.totalorder %s85, %s87
      %p91 = scmp.eq.s32.totalorder %s25, 0
      %p92 = por %p90, %p91
      %p93 = scmp.ne.s32.totalorder %s85, %s87
      %p94 = scmp.eq.s32.totalorder %s30, 3
      %p95 = por %p93, %p94
      %p96 = scmp.ne.s32.totalorder %s87, %s88
      %p97 = scmp.eq.s32.totalorder %s30, 0
      %p98 = por %p96, %p97
      %p99 = scmp.ne.s32.totalorder %s87, %s88
      %p100 = scmp.eq.s32.totalorder %s31, 3
      %p101 = por %p99, %p100
      %p103 = scmp.ne.s32.totalorder %s88, %s102
      %p104 = scmp.eq.s32.totalorder %s31, 0
      %p105 = por %p103, %p104
      %s107 = sadd.s32 %s106, 1
      %p110 = scmp.eq.s32.totalorder %s25, 3
      %p111 = scmp.ne.s32.totalorder %s106, %s108
      %p112 = scmp.eq.s32.totalorder %s25, 0
      %p113 = por %p111, %p112
      %p114 = scmp.ne.s32.totalorder %s106, %s108
      %p115 = scmp.eq.s32.totalorder %s30, 3
      %p116 = por %p114, %p115
      %p117 = scmp.ne.s32.totalorder %s108, %s109
      %p118 = scmp.eq.s32.totalorder %s30, 0
      %p119 = por %p117, %p118
      %p120 = scmp.ne.s32.totalorder %s108, %s109
      %p121 = scmp.eq.s32.totalorder %s31, 3
      %p122 = por %p120, %p121
      %p124 = scmp.ne.s32.totalorder %s109, %s123
      %p125 = scmp.eq.s32.totalorder %s31, 0
      %p126 = por %p124, %p125
      %s128 = sadd.s32 %s127, 1
      %p131 = scmp.eq.s32.totalorder %s25, 3
      %p132 = scmp.ne.s32.totalorder %s127, %s129
      %p133 = scmp.eq.s32.totalorder %s25, 0
      %p134 = por %p132, %p133
      %p135 = scmp.ne.s32.totalorder %s127, %s129
      %p136 = scmp.eq.s32.totalorder %s30, 3
      %p137 = por %p135, %p136
      %p138 = scmp.ne.s32.totalorder %s129, %s130
      %p139 = scmp.eq.s32.totalorder %s30, 0
      %p140 = por %p138, %p139
      %p141 = scmp.ne.s32.totalorder %s129, %s130
      %p142 = scmp.eq.s32.totalorder %s31, 3
      %p143 = por %p141, %p142
      %p145 = scmp.ne.s32.totalorder %s130, %s144
      %p146 = scmp.eq.s32.totalorder %s31, 0
      %p147 = por %p145, %p146
      %s149 = sadd.s32 %s148, 1
      %p152 = scmp.eq.s32.totalorder %s25, 3
      %p153 = scmp.ne.s32.totalorder %s148, %s150
      %p154 = scmp.eq.s32.totalorder %s25, 0
      %p155 = por %p153, %p154
      %p156 = scmp.ne.s32.totalorder %s148, %s150
      %p157 = scmp.eq.s32.totalorder %s30, 3
      %p158 = por %p156, %p157
      %p159 = scmp.ne.s32.totalorder %s150, %s151
      %p160 = scmp.eq.s32.totalorder %s30, 0
      %p161 = por %p159, %p160
      %p162 = scmp.ne.s32.totalorder %s150, %s151
      %p163 = scmp.eq.s32.totalorder %s31, 3
      %p164 = por %p162, %p163
      %p166 = scmp.ne.s32.totalorder %s151, %s165
      %p167 = scmp.eq.s32.totalorder %s31, 0
      %p168 = por %p166, %p167
      %s170 = sadd.s32 %s169, 1
      %p173 = scmp.eq.s32.totalorder %s25, 3
      %p174 = scmp.ne.s32.totalorder %s169, %s171
      %p175 = scmp.eq.s32.totalorder %s25, 0
      %p176 = por %p174, %p175
      %p177 = scmp.ne.s32.totalorder %s169, %s171
      %p178 = scmp.eq.s32.totalorder %s30, 3
      %p179 = por %p177, %p178
      %p180 = scmp.ne.s32.totalorder %s171, %s172
      %p181 = scmp.eq.s32.totalorder %s30, 0
      %p182 = por %p180, %p181
      %p183 = scmp.ne.s32.totalorder %s171, %s172
      %p184 = scmp.eq.s32.totalorder %s31, 3
      %p185 = por %p183, %p184
      %p187 = scmp.ne.s32.totalorder %s172, %s186
      %p188 = scmp.eq.s32.totalorder %s31, 0
      %p189 = por %p187, %p188
      %s191 = sadd.s32 %s190, 1
      %p194 = scmp.eq.s32.totalorder %s25, 3
      %p195 = scmp.ne.s32.totalorder %s190, %s192
      %p196 = scmp.eq.s32.totalorder %s25, 0
      %p197 = por %p195, %p196
      %p198 = scmp.ne.s32.totalorder %s190, %s192
      %p199 = scmp.eq.s32.totalorder %s30, 3
      %p200 = por %p198, %p199
      %p201 = scmp.ne.s32.totalorder %s192, %s193
      %p202 = scmp.eq.s32.totalorder %s30, 0
      %p203 = por %p201, %p202
      %p204 = scmp.ne.s32.totalorder %s192, %s193
      %p205 = scmp.eq.s32.totalorder %s31, 3
      %p206 = por %p204, %p205
      %p208 = scmp.ne.s32.totalorder %s193, %s207
      %p209 = scmp.eq.s32.totalorder %s31, 0
      %p210 = por %p208, %p209
      %s212 = sadd.s32 %s211, 1
      %p215 = scmp.eq.s32.totalorder %s25, 3
      %p216 = scmp.ne.s32.totalorder %s211, %s213
      %p217 = scmp.eq.s32.totalorder %s25, 0
      %p218 = por %p216, %p217
      %p219 = scmp.ne.s32.totalorder %s211, %s213
      %p220 = scmp.eq.s32.totalorder %s30, 3
      %p221 = por %p219, %p220
      %p222 = scmp.ne.s32.totalorder %s213, %s214
      %p223 = scmp.eq.s32.totalorder %s30, 0
      %p224 = por %p222, %p223
      %p225 = scmp.ne.s32.totalorder %s213, %s214
      %p226 = scmp.eq.s32.totalorder %s31, 3
      %p227 = por %p225, %p226
      %p229 = scmp.ne.s32.totalorder %s214, %s228
      %p230 = scmp.eq.s32.totalorder %s31, 0
      %p231 = por %p229, %p230
      %s233 = sadd.s32 %s232, 1
      %p236 = scmp.eq.s32.totalorder %s25, 3
      %p237 = scmp.ne.s32.totalorder %s232, %s234
      %p238 = scmp.eq.s32.totalorder %s25, 0
      %p239 = por %p237, %p238
      %p240 = scmp.ne.s32.totalorder %s232, %s234
      %p241 = scmp.eq.s32.totalorder %s30, 3
      %p242 = por %p240, %p241
      %p243 = scmp.ne.s32.totalorder %s234, %s235
      %p244 = scmp.eq.s32.totalorder %s30, 0
      %p245 = por %p243, %p244
      %p246 = scmp.ne.s32.totalorder %s234, %s235
      %p247 = scmp.eq.s32.totalorder %s31, 3
      %p248 = por %p246, %p247
      %p250 = scmp.ne.s32.totalorder %s235, %s249
      %p251 = scmp.eq.s32.totalorder %s31, 0
      %p252 = por %p250, %p251
      %s253 = ssub.s32 %s25, %s32
      %p254 = scmp.eq.s32.totalorder %s253, 0
      %s256 = sadd.s32 %s255, 1
      %s257 = scalar_select %p254, %s255, %s256
      %p260 = pneg %p254
      %p261 = scmp.eq.s32.totalorder %s25, 3
      %p262 = por %p260, %p261
      %p263 = scmp.ne.s32.totalorder %s255, %s258
      %p264 = scmp.eq.s32.totalorder %s25, 0
      %p265 = por %p263, %p264
      %p266 = scmp.ne.s32.totalorder %s255, %s258
      %p267 = scmp.eq.s32.totalorder %s30, 3
      %p268 = por %p266, %p267
      %p269 = scmp.ne.s32.totalorder %s258, %s259
      %p270 = scmp.eq.s32.totalorder %s30, 0
      %p271 = por %p269, %p270
      %p272 = scmp.ne.s32.totalorder %s258, %s259
      %p273 = scmp.eq.s32.totalorder %s31, 3
      %p274 = por %p272, %p273
      %p276 = scmp.ne.s32.totalorder %s259, %s275
      %p277 = scmp.eq.s32.totalorder %s31, 0
      %p278 = por %p276, %p277
      %p279 = scmp.le.s32.totalorder 1, %s25
      %p280 = scmp.lt.s32.totalorder %s25, 5
      %p281 = pnand %p279, %p280
      %p282 = pneg %p281
      // Predicated region
      $region9: #{tpu_custom_call.1} parent=5 // pred_check
        _
      $region10: #{tpu_custom_call.1} parent=5 // pred_check_branch
        %284 = sbr.rel (%p281) target = $region12
      $region11: #{tpu_custom_call.1} parent=5 // pred_region
        %s285 = ssub.s32 %s25, 1
        // Predicated region
        $region13: #{tpu_custom_call.1} parent=11 // pred_check
          %p286 = pneg %p98
        $region14: #{tpu_custom_call.1} parent=11 // pred_check_branch
          %288 = sbr.rel (%p286) target = $region16
        $region15: #{tpu_custom_call.1} parent=11 // pred_region
          _
        $region16: #{tpu_custom_call.1} parent=11 // pred_fallthru
          _
        // Predicated region
        $region17: #{tpu_custom_call.1} parent=11 // pred_check
          %p289 = pneg %p119
        $region18: #{tpu_custom_call.1} parent=11 // pred_check_branch
          %291 = sbr.rel (%p289) target = $region20
        $region19: #{tpu_custom_call.1} parent=11 // pred_region
          _
        $region20: #{tpu_custom_call.1} parent=11 // pred_fallthru
          _
        // Predicated region
        $region21: #{tpu_custom_call.1} parent=11 // pred_check
          %p292 = pneg %p140
        $region22: #{tpu_custom_call.1} parent=11 // pred_check_branch
          %294 = sbr.rel (%p292) target = $region24
        $region23: #{tpu_custom_call.1} parent=11 // pred_region
          _
        $region24: #{tpu_custom_call.1} parent=11 // pred_fallthru
          _
        // Predicated region
        $region25: #{tpu_custom_call.1} parent=11 // pred_check
          %p295 = pneg %p161
        $region26: #{tpu_custom_call.1} parent=11 // pred_check_branch
          %297 = sbr.rel (%p295) target = $region28
        $region27: #{tpu_custom_call.1} parent=11 // pred_region
          _
        $region28: #{tpu_custom_call.1} parent=11 // pred_fallthru
          _
        // Predicated region
        $region29: #{tpu_custom_call.1} parent=11 // pred_check
          %p298 = pneg %p182
        $region30: #{tpu_custom_call.1} parent=11 // pred_check_branch
          %300 = sbr.rel (%p298) target = $region32
        $region31: #{tpu_custom_call.1} parent=11 // pred_region
          %s302 = ssub.s32 128, 128
          %303 = vsyncadd [#allocation6], %s302
          %s304 = sshll.u32 [#allocation7], 4
          %s305 = int_to_ptr.vmem [resolvable:$true] %s304
          %310 = dma.hbm_to_vmem [thread:$0]  %s6, 128, %s305, [#allocation6], 64, 64, 4
        $region32: #{tpu_custom_call.1} parent=11 // pred_fallthru
          _
        // Predicated region
        $region33: #{tpu_custom_call.1} parent=11 // pred_check
          %p311 = pneg %p203
        $region34: #{tpu_custom_call.1} parent=11 // pred_check_branch
          %313 = sbr.rel (%p311) target = $region36
        $region35: #{tpu_custom_call.1} parent=11 // pred_region
          _
        $region36: #{tpu_custom_call.1} parent=11 // pred_fallthru
          _
        // Predicated region
        $region37: #{tpu_custom_call.1} parent=11 // pred_check
          %p314 = pneg %p224
        $region38: #{tpu_custom_call.1} parent=11 // pred_check_branch
          %316 = sbr.rel (%p314) target = $region40
        $region39: #{tpu_custom_call.1} parent=11 // pred_region
          _
        $region40: #{tpu_custom_call.1} parent=11 // pred_fallthru
          _
        // Predicated region
        $region41: #{tpu_custom_call.1} parent=11 // pred_check
          %p317 = pneg %p245
        $region42: #{tpu_custom_call.1} parent=11 // pred_check_branch
          %319 = sbr.rel (%p317) target = $region44
        $region43: #{tpu_custom_call.1} parent=11 // pred_region
          _
        $region44: #{tpu_custom_call.1} parent=11 // pred_fallthru
          _
      $region12: #{tpu_custom_call.1} parent=5 // pred_fallthru
        _
      %p320 = scmp.lt.s32.totalorder %s25, 4
      // Predicated region
      $region45: #{tpu_custom_call.1} parent=5 // pred_check
        %p321 = pneg %p320
      $region46: #{tpu_custom_call.1} parent=5 // pred_check_branch
        %323 = sbr.rel (%p321) target = $region48
      $region47: #{tpu_custom_call.1} parent=5 // pred_region
        // Predicated region
        $region49: #{tpu_custom_call.1} parent=47 // pred_check
          %p324 = pneg %p45
        $region50: #{tpu_custom_call.1} parent=47 // pred_check_branch
          %326 = sbr.rel (%p324) target = $region52
        $region51: #{tpu_custom_call.1} parent=47 // pred_region
          %s327 = sand.u32 %s35, 1
          %s328 = scalar_lea.sflag [#allocation3], %s327
          %s329 = sand.u32 %s35, 1
          %s330 = smul.addr %s329, 16
          %s331 = scalar_lea.vmem [#allocation2], %s330
          %s332 = smul.u32 2, %s25
          %s334 = ssub.s32 256, 256
          %335 = vsyncadd %s328, %s334
          %s336 = smul.addr %s332, 128
          %s337 = scalar_lea.hbm %s0, %s336
          %s339 = sshll.u32 %s331, 4
          %s340 = int_to_ptr.vmem [resolvable:$true] %s339
          %342 = dma.hbm_to_vmem [thread:$0]  %s337, 256, %s340, %s328
        $region52: #{tpu_custom_call.1} parent=47 // pred_fallthru
          _
        // Predicated region
        $region53: #{tpu_custom_call.1} parent=47 // pred_check
          %p343 = pneg %p71
        $region54: #{tpu_custom_call.1} parent=47 // pred_check_branch
          %345 = sbr.rel (%p343) target = $region56
        $region55: #{tpu_custom_call.1} parent=47 // pred_region
          %s346 = sand.u32 %s25, 1
          %s347 = scalar_lea.sflag [#allocation6], %s346
          %s348 = sand.u32 %s61, 1
          %s349 = smul.addr %s348, 336
          %s350 = scalar_lea.vmem [#allocation5], %s349
          %s351 = smul.u32 2, %s25
          %s353 = ssub.s32 5376, 5376
          %354 = vsyncadd %s347, %s353
          %s355 = smul.addr %s351, 128
          %s356 = scalar_lea.hbm %s1, %s355
          %s357 = sshll.u32 %s350, 4
          %s358 = int_to_ptr.vmem [resolvable:$true] %s357
          %363 = dma.hbm_to_vmem [thread:$0]  %s356, 5376, %s358, %s347, 1024, 256, 16
        $region56: #{tpu_custom_call.1} parent=47 // pred_fallthru
          _
      $region48: #{tpu_custom_call.1} parent=5 // pred_fallthru
        _
      %p364 = scmp.le.s32.totalorder 1, %s25
      %p365 = scmp.lt.s32.totalorder %s25, 5
      %p366 = pnand %p364, %p365
      %p367 = pneg %p366
      // Predicated region
      $region57: #{tpu_custom_call.1} parent=5 // pred_check
        _
      $region58: #{tpu_custom_call.1} parent=5 // pred_check_branch
        %369 = sbr.rel (%p366) target = $region60
      $region59: #{tpu_custom_call.1} parent=5 // pred_region
        %s370 = ssub.s32 %s25, 1
        %s371 = sand.u32 %s38, 1
        %s372 = scalar_lea.sflag [#allocation3], %s371
        %s373 = sand.u32 %s38, 1
        %s374 = smul.addr %s373, 16
        %s375 = scalar_lea.vmem [#allocation2], %s374
        // Predicated region
        $region61: #{tpu_custom_call.1} parent=59 // pred_check
          %p376 = pneg %p51
        $region62: #{tpu_custom_call.1} parent=59 // pred_check_branch
          %378 = sbr.rel (%p376) target = $region64
        $region63: #{tpu_custom_call.1} parent=59 // pred_region
          %379 = dma.done %s372, 256
        $region64: #{tpu_custom_call.1} parent=59 // pred_fallthru
          _
        %s380 = sand.u32 %s30, 1
        %s381 = scalar_lea.sflag [#allocation6], %s380
        %s382 = sand.u32 %s64, 1
        %s383 = smul.addr %s382, 336
        %s384 = scalar_lea.vmem [#allocation5], %s383
        // Predicated region
        $region65: #{tpu_custom_call.1} parent=59 // pred_check
          %p385 = pneg %p77
        $region66: #{tpu_custom_call.1} parent=59 // pred_check_branch
          %387 = sbr.rel (%p385) target = $region68
        $region67: #{tpu_custom_call.1} parent=59 // pred_region
          %388 = dma.done %s381, 5376
        $region68: #{tpu_custom_call.1} parent=59 // pred_fallthru
          _
        // Predicated region
        $region69: #{tpu_custom_call.1} parent=59 // pred_check
          %p389 = pneg %p182
        $region70: #{tpu_custom_call.1} parent=59 // pred_check_branch
          %391 = sbr.rel (%p389) target = $region72
        $region71: #{tpu_custom_call.1} parent=59 // pred_region
          %392 = dma.done [#allocation6], 128
        $region72: #{tpu_custom_call.1} parent=59 // pred_fallthru
          _
        %s393 = sand.u32 %s38, 1
        %s394 = scalar_lea.sflag [#allocation3], %s393
        %s395 = sand.u32 %s38, 1
        %s396 = smul.addr %s395, 16
        %s397 = scalar_lea.vmem [#allocation2], %s396
        %p398 = pneg %p51
        %p399 = pneg %p48
        %s400 = sand.u32 %s30, 1
        %s401 = scalar_lea.sflag [#allocation6], %s400
        %s402 = sand.u32 %s64, 1
        %s403 = smul.addr %s402, 336
        %s404 = scalar_lea.vmem [#allocation5], %s403
        %p405 = pneg %p77
        %p406 = pneg %p74
        %p407 = pneg %p98
        %p408 = pneg %p95
        %p409 = pneg %p119
        %p410 = pneg %p116
        %p411 = pneg %p140
        %p412 = pneg %p137
        %p413 = pneg %p161
        %p414 = pneg %p158
        %p415 = pneg %p182
        %p416 = pneg %p179
        %p417 = pneg %p203
        %p418 = pneg %p200
        %p419 = pneg %p224
        %p420 = pneg %p221
        %p421 = pneg %p245
        %p422 = pneg %p242
        %p423 = pneg %p271
        %p424 = pneg %p268
        %s425 = sand.u32 %s258, 1
        %s426 = scalar_lea.sflag [#allocation4], %s425
        %s427 = sand.u32 %s258, 1
        %s428 = smul.addr %s427, 32
        %s429 = scalar_lea.vmem [#allocation8], %s428
        %s430 = smul.u32 2, %s30
        %s431 = smul.u32 2, %s30
        %s432 = smul.u32 2, %s30
        %v434 = vld [vmem:[%s375] sm:$0xff]
        %v435 = vld [vmem:[%s375 + $0x8] sm:$0xff]
        %v436 = vld [vmem:[%s2] sm:$0xff]
        %v437 = vld [vmem:[%s2 + $0x8] sm:$0xff]
        %v438 = vld [vmem:[%s2 + $0x10] sm:$0xff]
        %v439 = vld [vmem:[%s2 + $0x18] sm:$0xff]
        %v440 = vld [vmem:[%s2 + $0x20] sm:$0xff]
        %v441 = vld [vmem:[%s2 + $0x28] sm:$0xff]
        %v442 = vld [vmem:[%s2 + $0x30] sm:$0xff]
        %v443 = vld [vmem:[%s3] sm:$0xff]
        %v444 = vld [vmem:[%s3 + $0x8] sm:$0xff]
        %v445 = vld [vmem:[%s3 + $0x10] sm:$0xff]
        %v446 = vld [vmem:[%s3 + $0x18] sm:$0xff]
        %v447 = vld [vmem:[%s3 + $0x20] sm:$0xff]
        %v448 = vld [vmem:[%s3 + $0x28] sm:$0xff]
        %v449 = vld [vmem:[%s3 + $0x30] sm:$0xff]
        %v450 = vld [vmem:[%s7] sm:$0xf]
        %v451 = vld [vmem:[%s7 + $0x4] sm:$0xf]
        %v452 = vld [vmem:[%s7 + $0x8] sm:$0xf]
        %v453 = vld [vmem:[%s7 + $0xc] sm:$0xf]
        %v454 = vld [vmem:[%s7 + $0x10] sm:$0xf]
        %v455 = vld [vmem:[%s7 + $0x14] sm:$0xf]
        %v456 = vld [vmem:[%s7 + $0x18] sm:$0xf]
        %v457 = vld [vmem:[%s7 + $0x1c] sm:$0xf]
        %v458 = vld [vmem:[%s8] sm:$0xf]
        %v459 = vld [vmem:[%s8 + $0x4] sm:$0xf]
        %v460 = vld [vmem:[%s8 + $0x8] sm:$0xf]
        %v461 = vld [vmem:[%s8 + $0xc] sm:$0xf]
        %v462 = vld [vmem:[%s8 + $0x10] sm:$0xf]
        %v463 = vld [vmem:[%s8 + $0x14] sm:$0xf]
        %v464 = vld [vmem:[%s8 + $0x18] sm:$0xf]
        %v465 = vmul.f32 %v436, %v436
        %v466 = vmul.f32 %v437, %v437
        %v467 = vmul.f32 %v438, %v438
        %v468 = vmul.f32 %v439, %v439
        %v469 = vmul.f32 %v440, %v440
        %v470 = vmul.f32 %v441, %v441
        %v471 = vmul.f32 %v442, %v442
        %v472 = vmul.f32 %v443, %v443
        %v473 = vmul.f32 %v444, %v444
        %v474 = vmul.f32 %v445, %v445
        %v475 = vmul.f32 %v446, %v446
        %v476 = vmul.f32 %v447, %v447
        %v477 = vmul.f32 %v448, %v448
        %v478 = vmul.f32 %v449, %v449
        %v479 = vld [vmem:[%s9] sm:$0xff]
        %v480 = vld [vmem:[%s9 + $0x8] sm:$0xff]
        %v481 = vld [vmem:[%s9 + $0x10] sm:$0xff]
        %v482 = vld [vmem:[%s9 + $0x18] sm:$0xff]
        %484 = vset.pattern.permute.xlu0 0
        %485 = vperm.xlu0 %484, %v479
        %v486 = vpop.permute.xlu0 %485
        %489 = vset.pattern.permute.xlu0 0
        %490 = vperm.xlu0 %489, %v480
        %v491 = vpop.permute.xlu0 %490
        %494 = vset.pattern.permute.xlu0 0
        %495 = vperm.xlu0 %494, %v481
        %v496 = vpop.permute.xlu0 %495
        %499 = vset.pattern.permute.xlu0 0
        %500 = vperm.xlu0 %499, %v482
        %v501 = vpop.permute.xlu0 %500
        %v503 = vlaneseq
        %v504 = vshrl.u32 %v503, 7
        %v505 = vsub.s32 0, %v504
        %v506 = vrot.slane %v434, %v505
        %v507 = vlaneseq
        %v508 = vshrl.u32 %v507, 7
        %v509 = vsub.s32 0, %v508
        %v510 = vrot.slane %v435, %v509
        %v511 = vmul.f32 %v486, %v506
        %v512 = vmul.f32 %v486, %v510
        %v513 = vmul.f32 %v491, %v506
        %v514 = vmul.f32 %v491, %v510
        %v515 = vmul.f32 %v496, %v506
        %v516 = vmul.f32 %v496, %v510
        %v517 = vmul.f32 %v501, %v506
        %v518 = vmul.f32 %v501, %v510
        %v519 = vmax.f32 %v511, 0.0
        %v520 = vmax.f32 %v512, 0.0
        %v521 = vmax.f32 %v513, 0.0
        %v522 = vmax.f32 %v514, 0.0
        %v523 = vmax.f32 %v515, 0.0
        %v524 = vmax.f32 %v516, 0.0
        %v525 = vmax.f32 %v517, 0.0
        %v526 = vmax.f32 %v518, 0.0
        %v527 = vpack.c.bf16 %v521, %v519
        %v528 = vpack.c.bf16 %v522, %v520
        %v529 = vpack.c.bf16 %v525, %v523
        %v530 = vpack.c.bf16 %v526, %v524
        %v531 = vld [vmem:[%s4] sm:$0xf]
        %v532 = vld [vmem:[%s4 + $0x4] sm:$0xf]
        %v533 = vld [vmem:[%s4 + $0x8] sm:$0xf]
        %v534 = vld [vmem:[%s4 + $0xc] sm:$0xf]
        %v539 = vunpack.c.l.b16 %v531
        %v540 = vunpack.c.l.b16 %v532
        %v541 = vunpack.c.l.b16 %v533
        %v542 = vunpack.c.l.b16 %v534
        %v543 = vpack.c.b16 %v540, %v539
        %v544 = vpack.c.b16 %v542, %v541
        %vm545 = vcmask 261120
        %v547 = vsel %vm545, %v543, 0
        %v550 = vsel %vm545, %v544, 0
        %552 = vmatprep.subr.bf16.mxu0 %v528
        %553 = vmatpush1.bf16.msra.mxu0 %v527
        %554 = vmatprep.subr.bf16.mxu0 %v530
        %555 = vmatpush1.bf16.msra.mxu0 %v529
        %556 = vmatprep.subr.bf16.mxu0 0
        %557 = vmatpush1.bf16.msra.mxu0 0
        %558 = vmatprep.subr.bf16.mxu0 0
        %559 = vmatpush1.bf16.msra.mxu0 0
        %560 = vmatprep.subr.bf16.mxu0 0
        %561 = vmatpush1.bf16.msra.mxu0 0
        %562 = vmatprep.subr.bf16.mxu0 0
        %563 = vmatpush1.bf16.msra.mxu0 0
        %564 = vmatprep.subr.bf16.mxu0 0
        %565 = vmatpush1.bf16.msra.mxu0 0
        %566 = vmatprep.subr.bf16.mxu0 0
        %567 = vmatpush1.bf16.msra.mxu0 0
        %568 = vmatprep.subr.bf16.mxu0 0
        %569 = vmatpush1.bf16.msra.mxu0 0
        %570 = vmatprep.subr.bf16.mxu0 0
        %571 = vmatpush1.bf16.msra.mxu0 0
        %572 = vmatprep.subr.bf16.mxu0 0
        %573 = vmatpush1.bf16.msra.mxu0 0
        %574 = vmatprep.subr.bf16.mxu0 0
        %575 = vmatpush1.bf16.msra.mxu0 0
        %576 = vmatprep.subr.bf16.mxu0 0
        %577 = vmatpush1.bf16.msra.mxu0 0
        %578 = vmatprep.subr.bf16.mxu0 0
        %579 = vmatpush1.bf16.msra.mxu0 0
        %580 = vmatprep.subr.bf16.mxu0 0
        %581 = vmatpush1.bf16.msra.mxu0 0
        %582 = vmatprep.subr.bf16.mxu0 0
        %583 = vmatpush1.bf16.msra.mxu0 0
        %584 = vmatprep.mubr.bf16.mxu0 0
        %585 = vmatmul.mubr.bf16.gmra.mrb[0].mxu0 %v547
        %v586 = vpop.f32.mrb[0].mxu0
        %v587 = vadd.f32 0.0, %v586
        %v588 = vpop.f32.mrb[0].mxu0
        %v589 = vadd.f32 0.0, %v588
        %v590 = vpop.f32.mrb[0].mxu0
        %v591 = vadd.f32 0.0, %v590
        %v592 = vpop.f32.mrb[0].mxu0
        %v593 = vadd.f32 0.0, %v592
        %594 = vmatprep.mubr.bf16.mxu0 0
        %595 = vmatmul.mubr.bf16.gmra.mrb[0].mxu0 %v550
        %v596 = vpop.f32.mrb[0].mxu0
        %v597 = vadd.f32 0.0, %v596
        %v598 = vpop.f32.mrb[0].mxu0
        %v599 = vadd.f32 0.0, %v598
        %v600 = vpop.f32.mrb[0].mxu0
        %v601 = vadd.f32 0.0, %v600
        %v602 = vpop.f32.mrb[0].mxu0
        %v603 = vadd.f32 0.0, %v602
        %604 = vdwg.mxu0
        %v605 = vmax.f32 %v587, 0.0
        %v606 = vmax.f32 %v589, 0.0
        %v607 = vmax.f32 %v591, 0.0
        %v608 = vmax.f32 %v593, 0.0
        %v609 = vmax.f32 %v597, 0.0
        %v610 = vmax.f32 %v599, 0.0
        %v611 = vmax.f32 %v601, 0.0
        %v612 = vmax.f32 %v603, 0.0
        %v613 = vpack.c.bf16 %v607, %v605
        %v614 = vpack.c.bf16 %v608, %v606
        %v615 = vpack.c.bf16 %v611, %v609
        %v616 = vpack.c.bf16 %v612, %v610
        %s617 = scalar_lea.vmem %s4, 16
        %v618 = vld [vmem:[%s617] sm:$0xf]
        %v619 = vld [vmem:[%s617 + $0x4] sm:$0xf]
        %v620 = vld [vmem:[%s617 + $0x8] sm:$0xf]
        %v621 = vld [vmem:[%s617 + $0xc] sm:$0xf]
        %v626 = vunpack.c.l.b16 %v618
        %v627 = vunpack.c.l.b16 %v619
        %v628 = vunpack.c.l.b16 %v620
        %v629 = vunpack.c.l.b16 %v621
        %v630 = vpack.c.b16 %v627, %v626
        %v631 = vpack.c.b16 %v629, %v628
        %v633 = vsel %vm545, %v630, 0
        %v636 = vsel %vm545, %v631, 0
        %638 = vmatprep.subr.bf16.mxu0 %v614
        %639 = vmatpush1.bf16.msra.mxu0 %v613
        %640 = vmatprep.subr.bf16.mxu0 %v616
        %641 = vmatpush1.bf16.msra.mxu0 %v615
        %642 = vmatprep.subr.bf16.mxu0 0
        %643 = vmatpush1.bf16.msra.mxu0 0
        %644 = vmatprep.subr.bf16.mxu0 0
        %645 = vmatpush1.bf16.msra.mxu0 0
        %646 = vmatprep.subr.bf16.mxu0 0
        %647 = vmatpush1.bf16.msra.mxu0 0
        %648 = vmatprep.subr.bf16.mxu0 0
        %649 = vmatpush1.bf16.msra.mxu0 0
        %650 = vmatprep.subr.bf16.mxu0 0
        %651 = vmatpush1.bf16.msra.mxu0 0
        %652 = vmatprep.subr.bf16.mxu0 0
        %653 = vmatpush1.bf16.msra.mxu0 0
        %654 = vmatprep.subr.bf16.mxu0 0
        %655 = vmatpush1.bf16.msra.mxu0 0
        %656 = vmatprep.subr.bf16.mxu0 0
        %657 = vmatpush1.bf16.msra.mxu0 0
        %658 = vmatprep.subr.bf16.mxu0 0
        %659 = vmatpush1.bf16.msra.mxu0 0
        %660 = vmatprep.subr.bf16.mxu0 0
        %661 = vmatpush1.bf16.msra.mxu0 0
        %662 = vmatprep.subr.bf16.mxu0 0
        %663 = vmatpush1.bf16.msra.mxu0 0
        %664 = vmatprep.subr.bf16.mxu0 0
        %665 = vmatpush1.bf16.msra.mxu0 0
        %666 = vmatprep.subr.bf16.mxu0 0
        %667 = vmatpush1.bf16.msra.mxu0 0
        %668 = vmatprep.subr.bf16.mxu0 0
        %669 = vmatpush1.bf16.msra.mxu0 0
        %670 = vmatprep.mubr.bf16.mxu0 0
        %671 = vmatmul.mubr.bf16.gmra.mrb[0].mxu0 %v633
        %v672 = vpop.f32.mrb[0].mxu0
        %v673 = vadd.f32 0.0, %v672
        %v674 = vpop.f32.mrb[0].mxu0
        %v675 = vadd.f32 0.0, %v674
        %v676 = vpop.f32.mrb[0].mxu0
        %v677 = vadd.f32 0.0, %v676
        %v678 = vpop.f32.mrb[0].mxu0
        %v679 = vadd.f32 0.0, %v678
        %680 = vmatprep.mubr.bf16.mxu0 0
        %681 = vmatmul.mubr.bf16.gmra.mrb[0].mxu0 %v636
        %v682 = vpop.f32.mrb[0].mxu0
        %v683 = vadd.f32 0.0, %v682
        %v684 = vpop.f32.mrb[0].mxu0
        %v685 = vadd.f32 0.0, %v684
        %v686 = vpop.f32.mrb[0].mxu0
        %v687 = vadd.f32 0.0, %v686
        %v688 = vpop.f32.mrb[0].mxu0
        %v689 = vadd.f32 0.0, %v688
        %690 = vdwg.mxu0
        %v691 = vmax.f32 %v673, 0.0
        %v692 = vmax.f32 %v675, 0.0
        %v693 = vmax.f32 %v677, 0.0
        %v694 = vmax.f32 %v679, 0.0
        %v695 = vmax.f32 %v683, 0.0
        %v696 = vmax.f32 %v685, 0.0
        %v697 = vmax.f32 %v687, 0.0
        %v698 = vmax.f32 %v689, 0.0
        %v699 = vpack.c.bf16 %v693, %v691
        %v700 = vpack.c.bf16 %v694, %v692
        %v701 = vpack.c.bf16 %v697, %v695
        %v702 = vpack.c.bf16 %v698, %v696
        %s703 = scalar_lea.vmem %s4, 32
        %v704 = vld [vmem:[%s703] sm:$0xf]
        %v705 = vld [vmem:[%s703 + $0x4] sm:$0xf]
        %v706 = vld [vmem:[%s703 + $0x8] sm:$0xf]
        %v707 = vld [vmem:[%s703 + $0xc] sm:$0xf]
        %708 = vset.pattern.permute.xlu0 1
        %709 = vperm.xlu0 %708, %v479
        %v710 = vpop.permute.xlu0 %709
        %712 = vset.pattern.permute.xlu0 1
        %713 = vperm.xlu0 %712, %v480
        %v714 = vpop.permute.xlu0 %713
        %716 = vset.pattern.permute.xlu0 1
        %717 = vperm.xlu0 %716, %v481
        %v718 = vpop.permute.xlu0 %717
        %720 = vset.pattern.permute.xlu0 1
        %721 = vperm.xlu0 %720, %v482
        %v722 = vpop.permute.xlu0 %721
        %v724 = vmul.f32 %v710, %v506
        %v725 = vmul.f32 %v710, %v510
        %v726 = vmul.f32 %v714, %v506
        %v727 = vmul.f32 %v714, %v510
        %v728 = vmul.f32 %v718, %v506
        %v729 = vmul.f32 %v718, %v510
        %v730 = vmul.f32 %v722, %v506
        %v731 = vmul.f32 %v722, %v510
        %v736 = vunpack.c.l.b16 %v704
        %v737 = vunpack.c.l.b16 %v705
        %v738 = vunpack.c.l.b16 %v706
        %v739 = vunpack.c.l.b16 %v707
        %v740 = vpack.c.b16 %v737, %v736
        %v741 = vpack.c.b16 %v739, %v738
        %v743 = vsel %vm545, %v740, 0
        %v746 = vsel %vm545, %v741, 0
        %748 = vmatprep.subr.bf16.mxu0 %v700
        %749 = vmatpush1.bf16.msra.mxu0 %v699
        %750 = vmatprep.subr.bf16.mxu0 %v702
        %751 = vmatpush1.bf16.msra.mxu0 %v701
        %752 = vmatprep.subr.bf16.mxu0 0
        %753 = vmatpush1.bf16.msra.mxu0 0
        %754 = vmatprep.subr.bf16.mxu0 0
        %755 = vmatpush1.bf16.msra.mxu0 0
        %756 = vmatprep.subr.bf16.mxu0 0
        %757 = vmatpush1.bf16.msra.mxu0 0
        %758 = vmatprep.subr.bf16.mxu0 0
        %759 = vmatpush1.bf16.msra.mxu0 0
        %760 = vmatprep.subr.bf16.mxu0 0
        %761 = vmatpush1.bf16.msra.mxu0 0
        %762 = vmatprep.subr.bf16.mxu0 0
        %763 = vmatpush1.bf16.msra.mxu0 0
        %764 = vmatprep.subr.bf16.mxu0 0
        %765 = vmatpush1.bf16.msra.mxu0 0
        %766 = vmatprep.subr.bf16.mxu0 0
        %767 = vmatpush1.bf16.msra.mxu0 0
        %768 = vmatprep.subr.bf16.mxu0 0
        %769 = vmatpush1.bf16.msra.mxu0 0
        %770 = vmatprep.subr.bf16.mxu0 0
        %771 = vmatpush1.bf16.msra.mxu0 0
        %772 = vmatprep.subr.bf16.mxu0 0
        %773 = vmatpush1.bf16.msra.mxu0 0
        %774 = vmatprep.subr.bf16.mxu0 0
        %775 = vmatpush1.bf16.msra.mxu0 0
        %776 = vmatprep.subr.bf16.mxu0 0
        %777 = vmatpush1.bf16.msra.mxu0 0
        %778 = vmatprep.subr.bf16.mxu0 0
        %779 = vmatpush1.bf16.msra.mxu0 0
        %780 = vmatprep.mubr.bf16.mxu0 0
        %781 = vmatmul.mubr.bf16.gmra.mrb[0].mxu0 %v743
        %v782 = vpop.f32.mrb[0].mxu0
        %v783 = vadd.f32 %v724, %v782
        %v784 = vpop.f32.mrb[0].mxu0
        %v785 = vadd.f32 %v725, %v784
        %v786 = vpop.f32.mrb[0].mxu0
        %v787 = vadd.f32 %v726, %v786
        %v788 = vpop.f32.mrb[0].mxu0
        %v789 = vadd.f32 %v727, %v788
        %790 = vmatprep.mubr.bf16.mxu0 0
        %791 = vmatmul.mubr.bf16.gmra.mrb[0].mxu0 %v746
        %v792 = vpop.f32.mrb[0].mxu0
        %v793 = vadd.f32 %v728, %v792
        %v794 = vpop.f32.mrb[0].mxu0
        %v795 = vadd.f32 %v729, %v794
        %v796 = vpop.f32.mrb[0].mxu0
        %v797 = vadd.f32 %v730, %v796
        %v798 = vpop.f32.mrb[0].mxu0
        %v799 = vadd.f32 %v731, %v798
        %800 = vdwg.mxu0
        %v801 = vmax.f32 %v783, 0.0
        %v802 = vmax.f32 %v785, 0.0
        %v803 = vmax.f32 %v787, 0.0
        %v804 = vmax.f32 %v789, 0.0
        %v805 = vmax.f32 %v793, 0.0
        %v806 = vmax.f32 %v795, 0.0
        %v807 = vmax.f32 %v797, 0.0
        %v808 = vmax.f32 %v799, 0.0
        %v809 = vpack.c.bf16 %v803, %v801
        %v810 = vpack.c.bf16 %v804, %v802
        %v811 = vpack.c.bf16 %v807, %v805
        %v812 = vpack.c.bf16 %v808, %v806
        %813 = vmatprep.subr.bf16.mxu0 %v810
        %814 = vmatpush1.bf16.msra.mxu0 %v809
        %815 = vmatprep.subr.bf16.mxu0 %v812
        %816 = vmatpush1.bf16.msra.mxu0 %v811
        %817 = vmatprep.subr.bf16.mxu0 0
        %818 = vmatpush1.bf16.msra.mxu0 0
        %819 = vmatprep.subr.bf16.mxu0 0
        %820 = vmatpush1.bf16.msra.mxu0 0
        %821 = vmatprep.subr.bf16.mxu0 0
        %822 = vmatpush1.bf16.msra.mxu0 0
        %823 = vmatprep.subr.bf16.mxu0 0
        %824 = vmatpush1.bf16.msra.mxu0 0
        %825 = vmatprep.subr.bf16.mxu0 0
        %826 = vmatpush1.bf16.msra.mxu0 0
        %827 = vmatprep.subr.bf16.mxu0 0
        %828 = vmatpush1.bf16.msra.mxu0 0
        %829 = vmatprep.subr.bf16.mxu0 0
        %830 = vmatpush1.bf16.msra.mxu0 0
        %831 = vmatprep.subr.bf16.mxu0 0
        %832 = vmatpush1.bf16.msra.mxu0 0
        %833 = vmatprep.subr.bf16.mxu0 0
        %834 = vmatpush1.bf16.msra.mxu0 0
        %835 = vmatprep.subr.bf16.mxu0 0
        %836 = vmatpush1.bf16.msra.mxu0 0
        %837 = vmatprep.subr.bf16.mxu0 0
        %838 = vmatpush1.bf16.msra.mxu0 0
        %839 = vmatprep.subr.bf16.mxu0 0
        %840 = vmatpush1.bf16.msra.mxu0 0
        %841 = vmatprep.subr.bf16.mxu0 0
        %842 = vmatpush1.bf16.msra.mxu0 0
        %843 = vmatprep.subr.bf16.mxu0 0
        %844 = vmatpush1.bf16.msra.mxu0 0
        %845 = vmatprep.mubr.bf16.mxu0 0
        %846 = vmatmul.mubr.bf16.gmra.mrb[0].mxu0 %v547
        %v847 = vpop.f32.mrb[0].mxu0
        %v848 = vadd.f32 0.0, %v847
        %v849 = vpop.f32.mrb[0].mxu0
        %v850 = vadd.f32 0.0, %v849
        %v851 = vpop.f32.mrb[0].mxu0
        %v852 = vadd.f32 0.0, %v851
        %v853 = vpop.f32.mrb[0].mxu0
        %v854 = vadd.f32 0.0, %v853
        %855 = vmatprep.mubr.bf16.mxu0 0
        %856 = vmatmul.mubr.bf16.gmra.mrb[0].mxu0 %v550
        %v857 = vpop.f32.mrb[0].mxu0
        %v858 = vadd.f32 0.0, %v857
        %v859 = vpop.f32.mrb[0].mxu0
        %v860 = vadd.f32 0.0, %v859
        %v861 = vpop.f32.mrb[0].mxu0
        %v862 = vadd.f32 0.0, %v861
        %v863 = vpop.f32.mrb[0].mxu0
        %v864 = vadd.f32 0.0, %v863
        %865 = vdwg.mxu0
        %v866 = vmax.f32 %v848, 0.0
        %v867 = vmax.f32 %v850, 0.0
        %v868 = vmax.f32 %v852, 0.0
        %v869 = vmax.f32 %v854, 0.0
        %v870 = vmax.f32 %v858, 0.0
        %v871 = vmax.f32 %v860, 0.0
        %v872 = vmax.f32 %v862, 0.0
        %v873 = vmax.f32 %v864, 0.0
        %v874 = vpack.c.bf16 %v868, %v866
        %v875 = vpack.c.bf16 %v869, %v867
        %v876 = vpack.c.bf16 %v872, %v870
        %v877 = vpack.c.bf16 %v873, %v871
        %878 = vmatprep.subr.bf16.mxu0 %v875
        %879 = vmatpush1.bf16.msra.mxu0 %v874
        %880 = vmatprep.subr.bf16.mxu0 %v877
        %881 = vmatpush1.bf16.msra.mxu0 %v876
        %882 = vmatprep.subr.bf16.mxu0 0
        %883 = vmatpush1.bf16.msra.mxu0 0
        %884 = vmatprep.subr.bf16.mxu0 0
        %885 = vmatpush1.bf16.msra.mxu0 0
        %886 = vmatprep.subr.bf16.mxu0 0
        %887 = vmatpush1.bf16.msra.mxu0 0
        %888 = vmatprep.subr.bf16.mxu0 0
        %889 = vmatpush1.bf16.msra.mxu0 0
        %890 = vmatprep.subr.bf16.mxu0 0
        %891 = vmatpush1.bf16.msra.mxu0 0
        %892 = vmatprep.subr.bf16.mxu0 0
        %893 = vmatpush1.bf16.msra.mxu0 0
        %894 = vmatprep.subr.bf16.mxu0 0
        %895 = vmatpush1.bf16.msra.mxu0 0
        %896 = vmatprep.subr.bf16.mxu0 0
        %897 = vmatpush1.bf16.msra.mxu0 0
        %898 = vmatprep.subr.bf16.mxu0 0
        %899 = vmatpush1.bf16.msra.mxu0 0
        %900 = vmatprep.subr.bf16.mxu0 0
        %901 = vmatpush1.bf16.msra.mxu0 0
        %902 = vmatprep.subr.bf16.mxu0 0
        %903 = vmatpush1.bf16.msra.mxu0 0
        %904 = vmatprep.subr.bf16.mxu0 0
        %905 = vmatpush1.bf16.msra.mxu0 0
        %906 = vmatprep.subr.bf16.mxu0 0
        %907 = vmatpush1.bf16.msra.mxu0 0
        %908 = vmatprep.subr.bf16.mxu0 0
        %909 = vmatpush1.bf16.msra.mxu0 0
        %910 = vmatprep.mubr.bf16.mxu0 0
        %911 = vmatmul.mubr.bf16.gmra.mrb[0].mxu0 %v633
        %v912 = vpop.f32.mrb[0].mxu0
        %v913 = vadd.f32 0.0, %v912
        %v914 = vpop.f32.mrb[0].mxu0
        %v915 = vadd.f32 0.0, %v914
        %v916 = vpop.f32.mrb[0].mxu0
        %v917 = vadd.f32 0.0, %v916
        %v918 = vpop.f32.mrb[0].mxu0
        %v919 = vadd.f32 0.0, %v918
        %920 = vmatprep.mubr.bf16.mxu0 0
        %921 = vmatmul.mubr.bf16.gmra.mrb[0].mxu0 %v636
        %v922 = vpop.f32.mrb[0].mxu0
        %v923 = vadd.f32 0.0, %v922
        %v924 = vpop.f32.mrb[0].mxu0
        %v925 = vadd.f32 0.0, %v924
        %v926 = vpop.f32.mrb[0].mxu0
        %v927 = vadd.f32 0.0, %v926
        %v928 = vpop.f32.mrb[0].mxu0
        %v929 = vadd.f32 0.0, %v928
        %930 = vdwg.mxu0
        %v931 = vmax.f32 %v913, 0.0
        %v932 = vmax.f32 %v915, 0.0
        %v933 = vmax.f32 %v917, 0.0
        %v934 = vmax.f32 %v919, 0.0
        %v935 = vmax.f32 %v923, 0.0
        %v936 = vmax.f32 %v925, 0.0
        %v937 = vmax.f32 %v927, 0.0
        %v938 = vmax.f32 %v929, 0.0
        %v939 = vpack.c.bf16 %v933, %v931
        %v940 = vpack.c.bf16 %v934, %v932
        %v941 = vpack.c.bf16 %v937, %v935
        %v942 = vpack.c.bf16 %v938, %v936
        %s943 = scalar_lea.vmem %s4, 48
        %v944 = vld [vmem:[%s943] sm:$0xf]
        %v945 = vld [vmem:[%s943 + $0x4] sm:$0xf]
        %v946 = vld [vmem:[%s943 + $0x8] sm:$0xf]
        %v947 = vld [vmem:[%s943 + $0xc] sm:$0xf]
        %948 = vset.pattern.permute.xlu0 2
        %949 = vperm.xlu0 %948, %v479
        %v950 = vpop.permute.xlu0 %949
        %952 = vset.pattern.permute.xlu0 2
        %953 = vperm.xlu0 %952, %v480
        %v954 = vpop.permute.xlu0 %953
        %956 = vset.pattern.permute.xlu0 2
        %957 = vperm.xlu0 %956, %v481
        %v958 = vpop.permute.xlu0 %957
        %960 = vset.pattern.permute.xlu0 2
        %961 = vperm.xlu0 %960, %v482
        %v962 = vpop.permute.xlu0 %961
        %v964 = vlaneseq
        %v965 = vshrl.u32 %v964, 7
        %v966 = vsub.s32 1, %v965
        %v967 = vrot.slane %v434, %v966
        %v968 = vlaneseq
        %v969 = vshrl.u32 %v968, 7
        %v970 = vsub.s32 1, %v969
        %v971 = vrot.slane %v435, %v970
        %v972 = vmul.f32 %v950, %v967
        %v973 = vmul.f32 %v950, %v971
        %v974 = vmul.f32 %v954, %v967
        %v975 = vmul.f32 %v954, %v971
        %v976 = vmul.f32 %v958, %v967
        %v977 = vmul.f32 %v958, %v971
        %v978 = vmul.f32 %v962, %v967
        %v979 = vmul.f32 %v962, %v971
        %v984 = vunpack.c.l.b16 %v944
        %v985 = vunpack.c.l.b16 %v945
        %v986 = vunpack.c.l.b16 %v946
        %v987 = vunpack.c.l.b16 %v947
        %v988 = vpack.c.b16 %v985, %v984
        %v989 = vpack.c.b16 %v987, %v986
        %v991 = vsel %vm545, %v988, 0
        %v994 = vsel %vm545, %v989, 0
        %996 = vmatprep.subr.bf16.mxu0 %v940
        %997 = vmatpush1.bf16.msra.mxu0 %v939
        %998 = vmatprep.subr.bf16.mxu0 %v942
        %999 = vmatpush1.bf16.msra.mxu0 %v941
        %1000 = vmatprep.subr.bf16.mxu0 0
        %1001 = vmatpush1.bf16.msra.mxu0 0
        %1002 = vmatprep.subr.bf16.mxu0 0
        %1003 = vmatpush1.bf16.msra.mxu0 0
        %1004 = vmatprep.subr.bf16.mxu0 0
        %1005 = vmatpush1.bf16.msra.mxu0 0
        %1006 = vmatprep.subr.bf16.mxu0 0
        %1007 = vmatpush1.bf16.msra.mxu0 0
        %1008 = vmatprep.subr.bf16.mxu0 0
        %1009 = vmatpush1.bf16.msra.mxu0 0
        %1010 = vmatprep.subr.bf16.mxu0 0
        %1011 = vmatpush1.bf16.msra.mxu0 0
        %1012 = vmatprep.subr.bf16.mxu0 0
        %1013 = vmatpush1.bf16.msra.mxu0 0
        %1014 = vmatprep.subr.bf16.mxu0 0
        %1015 = vmatpush1.bf16.msra.mxu0 0
        %1016 = vmatprep.subr.bf16.mxu0 0
        %1017 = vmatpush1.bf16.msra.mxu0 0
        %1018 = vmatprep.subr.bf16.mxu0 0
        %1019 = vmatpush1.bf16.msra.mxu0 0
        %1020 = vmatprep.subr.bf16.mxu0 0
        %1021 = vmatpush1.bf16.msra.mxu0 0
        %1022 = vmatprep.subr.bf16.mxu0 0
        %1023 = vmatpush1.bf16.msra.mxu0 0
        %1024 = vmatprep.subr.bf16.mxu0 0
        %1025 = vmatpush1.bf16.msra.mxu0 0
        %1026 = vmatprep.subr.bf16.mxu0 0
        %1027 = vmatpush1.bf16.msra.mxu0 0
        %1028 = vmatprep.mubr.bf16.mxu0 0
        %1029 = vmatmul.mubr.bf16.gmra.mrb[0].mxu0 %v991
        %v1030 = vpop.f32.mrb[0].mxu0
        %v1031 = vadd.f32 %v972, %v1030
        %v1032 = vpop.f32.mrb[0].mxu0
        %v1033 = vadd.f32 %v973, %v1032
        %v1034 = vpop.f32.mrb[0].mxu0
        %v1035 = vadd.f32 %v974, %v1034
        %v1036 = vpop.f32.mrb[0].mxu0
        %v1037 = vadd.f32 %v975, %v1036
        %1038 = vmatprep.mubr.bf16.mxu0 0
        %1039 = vmatmul.mubr.bf16.gmra.mrb[0].mxu0 %v994
        %v1040 = vpop.f32.mrb[0].mxu0
        %v1041 = vadd.f32 %v976, %v1040
        %v1042 = vpop.f32.mrb[0].mxu0
        %v1043 = vadd.f32 %v977, %v1042
        %v1044 = vpop.f32.mrb[0].mxu0
        %v1045 = vadd.f32 %v978, %v1044
        %v1046 = vpop.f32.mrb[0].mxu0
        %v1047 = vadd.f32 %v979, %v1046
        %1048 = vdwg.mxu0
        %v1049 = vmax.f32 %v1031, 0.0
        %v1050 = vmax.f32 %v1033, 0.0
        %v1051 = vmax.f32 %v1035, 0.0
        %v1052 = vmax.f32 %v1037, 0.0
        %v1053 = vmax.f32 %v1041, 0.0
        %v1054 = vmax.f32 %v1043, 0.0
        %v1055 = vmax.f32 %v1045, 0.0
        %v1056 = vmax.f32 %v1047, 0.0
        %v1057 = vpack.c.bf16 %v1051, %v1049
        %v1058 = vpack.c.bf16 %v1052, %v1050
        %v1059 = vpack.c.bf16 %v1055, %v1053
        %v1060 = vpack.c.bf16 %v1056, %v1054
        %s1061 = scalar_lea.vmem %s4, 64
        %v1062 = vld [vmem:[%s1061] sm:$0xf]
        %v1063 = vld [vmem:[%s1061 + $0x4] sm:$0xf]
        %v1064 = vld [vmem:[%s1061 + $0x8] sm:$0xf]
        %v1065 = vld [vmem:[%s1061 + $0xc] sm:$0xf]
        %v1070 = vunpack.c.l.b16 %v1062
        %v1071 = vunpack.c.l.b16 %v1063
        %v1072 = vunpack.c.l.b16 %v1064
        %v1073 = vunpack.c.l.b16 %v1065
        %v1074 = vpack.c.b16 %v1071, %v1070
        %v1075 = vpack.c.b16 %v1073, %v1072
        %v1077 = vsel %vm545, %v1074, 0
        %v1080 = vsel %vm545, %v1075, 0
        %1082 = vmatprep.subr.bf16.mxu0 %v1058
        %1083 = vmatpush1.bf16.msra.mxu0 %v1057
        %1084 = vmatprep.subr.bf16.mxu0 %v1060
        %1085 = vmatpush1.bf16.msra.mxu0 %v1059
        %1086 = vmatprep.subr.bf16.mxu0 0
        %1087 = vmatpush1.bf16.msra.mxu0 0
        %1088 = vmatprep.subr.bf16.mxu0 0
        %1089 = vmatpush1.bf16.msra.mxu0 0
        %1090 = vmatprep.subr.bf16.mxu0 0
        %1091 = vmatpush1.bf16.msra.mxu0 0
        %1092 = vmatprep.subr.bf16.mxu0 0
        %1093 = vmatpush1.bf16.msra.mxu0 0
        %1094 = vmatprep.subr.bf16.mxu0 0
        %1095 = vmatpush1.bf16.msra.mxu0 0
        %1096 = vmatprep.subr.bf16.mxu0 0
        %1097 = vmatpush1.bf16.msra.mxu0 0
        %1098 = vmatprep.subr.bf16.mxu0 0
        %1099 = vmatpush1.bf16.msra.mxu0 0
        %1100 = vmatprep.subr.bf16.mxu0 0
        %1101 = vmatpush1.bf16.msra.mxu0 0
        %1102 = vmatprep.subr.bf16.mxu0 0
        %1103 = vmatpush1.bf16.msra.mxu0 0
        %1104 = vmatprep.subr.bf16.mxu0 0
        %1105 = vmatpush1.bf16.msra.mxu0 0
        %1106 = vmatprep.subr.bf16.mxu0 0
        %1107 = vmatpush1.bf16.msra.mxu0 0
        %1108 = vmatprep.subr.bf16.mxu0 0
        %1109 = vmatpush1.bf16.msra.mxu0 0
        %1110 = vmatprep.subr.bf16.mxu0 0
        %1111 = vmatpush1.bf16.msra.mxu0 0
        %1112 = vmatprep.subr.bf16.mxu0 0
        %1113 = vmatpush1.bf16.msra.mxu0 0
        %1114 = vmatprep.mubr.bf16.mxu0 0
        %1115 = vmatmul.mubr.bf16.gmra.mrb[0].mxu0 %v1077
        %v1116 = vpop.f32.mrb[0].mxu0
        %v1117 = vadd.f32 0.0, %v1116
        %v1118 = vpop.f32.mrb[0].mxu0
        %v1119 = vadd.f32 0.0, %v1118
        %v1120 = vpop.f32.mrb[0].mxu0
        %v1121 = vadd.f32 0.0, %v1120
        %v1122 = vpop.f32.mrb[0].mxu0
        %v1123 = vadd.f32 0.0, %v1122
        %1124 = vmatprep.mubr.bf16.mxu0 0
        %1125 = vmatmul.mubr.bf16.gmra.mrb[0].mxu0 %v1080
        %v1126 = vpop.f32.mrb[0].mxu0
        %v1127 = vadd.f32 0.0, %v1126
        %v1128 = vpop.f32.mrb[0].mxu0
        %v1129 = vadd.f32 0.0, %v1128
        %v1130 = vpop.f32.mrb[0].mxu0
        %v1131 = vadd.f32 0.0, %v1130
        %v1132 = vpop.f32.mrb[0].mxu0
        %v1133 = vadd.f32 0.0, %v1132
        %1134 = vdwg.mxu0
        %v1135 = vmax.f32 %v1117, 0.0
        %v1136 = vmax.f32 %v1119, 0.0
        %v1137 = vmax.f32 %v1121, 0.0
        %v1138 = vmax.f32 %v1123, 0.0
        %v1139 = vmax.f32 %v1127, 0.0
        %v1140 = vmax.f32 %v1129, 0.0
        %v1141 = vmax.f32 %v1131, 0.0
        %v1142 = vmax.f32 %v1133, 0.0
        %v1143 = vpack.c.bf16 %v1137, %v1135
        %v1144 = vpack.c.bf16 %v1138, %v1136
        %v1145 = vpack.c.bf16 %v1141, %v1139
        %v1146 = vpack.c.bf16 %v1142, %v1140
        %v1147 = vld [vmem:[%s5] sm:$0xf]
        %v1148 = vld [vmem:[%s5 + $0x4] sm:$0xf]
        %v1151 = vunpack.c.l.b16 %v1147
        %v1152 = vunpack.c.l.b16 %v1148
        %v1153 = vpack.c.b16 %v1152, %v1151
        %v1155 = vsel %vm545, %v1153, 0
        %1157 = vmatprep.subr.bf16.mxu0 %v1144
        %1158 = vmatpush1.bf16.msra.mxu0 %v1143
        %1159 = vmatprep.subr.bf16.mxu0 %v1146
        %1160 = vmatpush1.bf16.msra.mxu0 %v1145
        %1161 = vmatprep.subr.bf16.mxu0 0
        %1162 = vmatpush1.bf16.msra.mxu0 0
        %1163 = vmatprep.subr.bf16.mxu0 0
        %1164 = vmatpush1.bf16.msra.mxu0 0
        %1165 = vmatprep.subr.bf16.mxu0 0
        %1166 = vmatpush1.bf16.msra.mxu0 0
        %1167 = vmatprep.subr.bf16.mxu0 0
        %1168 = vmatpush1.bf16.msra.mxu0 0
        %1169 = vmatprep.subr.bf16.mxu0 0
        %1170 = vmatpush1.bf16.msra.mxu0 0
        %1171 = vmatprep.subr.bf16.mxu0 0
        %1172 = vmatpush1.bf16.msra.mxu0 0
        %1173 = vmatprep.subr.bf16.mxu0 0
        %1174 = vmatpush1.bf16.msra.mxu0 0
        %1175 = vmatprep.subr.bf16.mxu0 0
        %1176 = vmatpush1.bf16.msra.mxu0 0
        %1177 = vmatprep.subr.bf16.mxu0 0
        %1178 = vmatpush1.bf16.msra.mxu0 0
        %1179 = vmatprep.subr.bf16.mxu0 0
        %1180 = vmatpush1.bf16.msra.mxu0 0
        %1181 = vmatprep.subr.bf16.mxu0 0
        %1182 = vmatpush1.bf16.msra.mxu0 0
        %1183 = vmatprep.subr.bf16.mxu0 0
        %1184 = vmatpush1.bf16.msra.mxu0 0
        %1185 = vmatprep.subr.bf16.mxu0 0
        %1186 = vmatpush1.bf16.msra.mxu0 0
        %1187 = vmatprep.subr.bf16.mxu0 0
        %1188 = vmatpush1.bf16.msra.mxu0 0
        %1189 = vmatprep.mubr.bf16.mxu0 0
        %1190 = vmatmul.mubr.bf16.gmra.mrb[0].mxu0 %v1155
        %v1191 = vpop.f32.mrb[0].mxu0
        %v1192 = vadd.f32 0.0, %v1191
        %v1193 = vpop.f32.mrb[0].mxu0
        %v1194 = vadd.f32 0.0, %v1193
        %v1195 = vpop.f32.mrb[0].mxu0
        %v1196 = vadd.f32 0.0, %v1195
        %v1197 = vpop.f32.mrb[0].mxu0
        %v1198 = vadd.f32 0.0, %v1197
        %1199 = vdwg.mxu0
        %v1200 = vmax.f32 %v1192, 0.0
        %v1201 = vmax.f32 %v1194, 0.0
        %v1202 = vmax.f32 %v1196, 0.0
        %v1203 = vmax.f32 %v1198, 0.0
        %v1204 = vpack.c.bf16 %v1202, %v1200
        %v1205 = vpack.c.bf16 %v1203, %v1201
        %v1206 = vld [vmem:[#allocation7] sm:$0xf]
        %vm1207 = vcmask 130048
        %v1209 = vsel %vm1207, %v1206, 0
        %1211 = vmatprep.subr.bf16.mxu0 %v1205
        %1212 = vmatpush1.bf16.msra.mxu0 %v1204
        %1213 = vmatprep.subr.bf16.mxu0 0
        %1214 = vmatpush1.bf16.msra.mxu0 0
        %1215 = vmatprep.subr.bf16.mxu0 0
        %1216 = vmatpush1.bf16.msra.mxu0 0
        %1217 = vmatprep.subr.bf16.mxu0 0
        %1218 = vmatpush1.bf16.msra.mxu0 0
        %1219 = vmatprep.subr.bf16.mxu0 0
        %1220 = vmatpush1.bf16.msra.mxu0 0
        %1221 = vmatprep.subr.bf16.mxu0 0
        %1222 = vmatpush1.bf16.msra.mxu0 0
        %1223 = vmatprep.subr.bf16.mxu0 0
        %1224 = vmatpush1.bf16.msra.mxu0 0
        %1225 = vmatprep.subr.bf16.mxu0 0
        %1226 = vmatpush1.bf16.msra.mxu0 0
        %1227 = vmatprep.subr.bf16.mxu0 0
        %1228 = vmatpush1.bf16.msra.mxu0 0
        %1229 = vmatprep.subr.bf16.mxu0 0
        %1230 = vmatpush1.bf16.msra.mxu0 0
        %1231 = vmatprep.subr.bf16.mxu0 0
        %1232 = vmatpush1.bf16.msra.mxu0 0
        %1233 = vmatprep.subr.bf16.mxu0 0
        %1234 = vmatpush1.bf16.msra.mxu0 0
        %1235 = vmatprep.subr.bf16.mxu0 0
        %1236 = vmatpush1.bf16.msra.mxu0 0
        %1237 = vmatprep.subr.bf16.mxu0 0
        %1238 = vmatpush1.bf16.msra.mxu0 0
        %1239 = vmatprep.subr.bf16.mxu0 0
        %1240 = vmatpush1.bf16.msra.mxu0 0
        %1241 = vmatprep.subr.bf16.mxu0 0
        %1242 = vmatpush1.bf16.msra.mxu0 0
        %1243 = vmatprep.mubr.bf16.mxu0 0
        %1244 = vmatmul.mubr.bf16.gmra.mrb[0].mxu0 %v1209
        %v1245 = vpop.f32.mrb[0].mxu0
        %v1246 = vadd.f32 0.0, %v1245
        %v1247 = vpop.f32.mrb[0].mxu0
        %v1248 = vadd.f32 0.0, %v1247
        %v1249 = vpop.f32.mrb[0].mxu0
        %v1250 = vpop.f32.mrb[0].mxu0
        %1251 = vdwg.mxu0
        %v1252 = vxor.u32 %v1246, 2147483648
        %v1253 = vxor.u32 %v1248, 2147483648
        %v1254 = vmul.f32 %v1252, 1.442695
        %v1255 = vpow.pop %v1254
        %v1256 = vmul.f32 %v1253, 1.442695
        %v1257 = vpow.pop %v1256
        %v1258 = vadd.f32 %v1255, 1.0
        %v1259 = vadd.f32 %v1257, 1.0
        %v1260 = vrcp.pop %v1258
        %v1261 = vmul.f32 1.0, %v1260
        %v1262 = vrcp.pop %v1259
        %v1263 = vmul.f32 1.0, %v1262
        %v1264 = vmul.f32 %v1261, 5.0
        %v1265 = vmul.f32 %v1263, 5.0
        %v1266 = vadd.f32 %v1264, 0.0001
        %v1267 = vadd.f32 %v1265, 0.0001
        %v1268 = vmul.f32 %v1266, %v1266
        %v1269 = vmul.f32 %v1267, %v1267
        %v1270 = vrcp.pop %v1268
        %v1271 = vmul.f32 -0.5, %v1270
        %v1272 = vrcp.pop %v1269
        %v1273 = vmul.f32 -0.5, %v1272
        %1275 = vset.pattern.permute.xlu0 0
        %1276 = vperm.xlu0 %1275, %v465
        %v1277 = vpop.permute.xlu0 %1276
        %1280 = vset.pattern.permute.xlu0 0
        %1281 = vperm.xlu0 %1280, %v466
        %v1282 = vpop.permute.xlu0 %1281
        %1285 = vset.pattern.permute.xlu0 0
        %1286 = vperm.xlu0 %1285, %v467
        %v1287 = vpop.permute.xlu0 %1286
        %1290 = vset.pattern.permute.xlu0 0
        %1291 = vperm.xlu0 %1290, %v468
        %v1292 = vpop.permute.xlu0 %1291
        %1295 = vset.pattern.permute.xlu0 0
        %1296 = vperm.xlu0 %1295, %v469
        %v1297 = vpop.permute.xlu0 %1296
        %1300 = vset.pattern.permute.xlu0 0
        %1301 = vperm.xlu0 %1300, %v470
        %v1302 = vpop.permute.xlu0 %1301
        %1305 = vset.pattern.permute.xlu0 0
        %1306 = vperm.xlu0 %1305, %v471
        %v1307 = vpop.permute.xlu0 %1306
        %v1309 = vlaneseq
        %v1310 = vshrl.u32 %v1309, 7
        %v1311 = vsub.s32 0, %v1310
        %v1312 = vrot.slane %v1271, %v1311
        %v1313 = vlaneseq
        %v1314 = vshrl.u32 %v1313, 7
        %v1315 = vsub.s32 0, %v1314
        %v1316 = vrot.slane %v1273, %v1315
        %v1317 = vmul.f32 %v1277, %v1312
        %v1318 = vmul.f32 %v1277, %v1316
        %v1319 = vmul.f32 %v1282, %v1312
        %v1320 = vmul.f32 %v1282, %v1316
        %v1321 = vmul.f32 %v1287, %v1312
        %v1322 = vmul.f32 %v1287, %v1316
        %v1323 = vmul.f32 %v1292, %v1312
        %v1324 = vmul.f32 %v1292, %v1316
        %v1325 = vmul.f32 %v1297, %v1312
        %v1326 = vmul.f32 %v1297, %v1316
        %v1327 = vmul.f32 %v1302, %v1312
        %v1328 = vmul.f32 %v1302, %v1316
        %v1329 = vmul.f32 %v1307, %v1312
        %v1330 = vmul.f32 %v1307, %v1316
        %1332 = vset.pattern.permute.xlu0 0
        %1333 = vperm.xlu0 %1332, %v472
        %v1334 = vpop.permute.xlu0 %1333
        %1337 = vset.pattern.permute.xlu0 0
        %1338 = vperm.xlu0 %1337, %v473
        %v1339 = vpop.permute.xlu0 %1338
        %1342 = vset.pattern.permute.xlu0 0
        %1343 = vperm.xlu0 %1342, %v474
        %v1344 = vpop.permute.xlu0 %1343
        %1347 = vset.pattern.permute.xlu0 0
        %1348 = vperm.xlu0 %1347, %v475
        %v1349 = vpop.permute.xlu0 %1348
        %1352 = vset.pattern.permute.xlu0 0
        %1353 = vperm.xlu0 %1352, %v476
        %v1354 = vpop.permute.xlu0 %1353
        %1357 = vset.pattern.permute.xlu0 0
        %1358 = vperm.xlu0 %1357, %v477
        %v1359 = vpop.permute.xlu0 %1358
        %1362 = vset.pattern.permute.xlu0 0
        %1363 = vperm.xlu0 %1362, %v478
        %v1364 = vpop.permute.xlu0 %1363
        %v1366 = vlaneseq
        %v1367 = vshrl.u32 %v1366, 7
        %v1368 = vsub.s32 1, %v1367
        %v1369 = vrot.slane %v1271, %v1368
        %v1370 = vlaneseq
        %v1371 = vshrl.u32 %v1370, 7
        %v1372 = vsub.s32 1, %v1371
        %v1373 = vrot.slane %v1273, %v1372
        %v1374 = vmul.f32 %v1334, %v1369
        %v1375 = vmul.f32 %v1334, %v1373
        %v1376 = vmul.f32 %v1339, %v1369
        %v1377 = vmul.f32 %v1339, %v1373
        %v1378 = vmul.f32 %v1344, %v1369
        %v1379 = vmul.f32 %v1344, %v1373
        %v1380 = vmul.f32 %v1349, %v1369
        %v1381 = vmul.f32 %v1349, %v1373
        %v1382 = vmul.f32 %v1354, %v1369
        %v1383 = vmul.f32 %v1354, %v1373
        %v1384 = vmul.f32 %v1359, %v1369
        %v1385 = vmul.f32 %v1359, %v1373
        %v1386 = vmul.f32 %v1364, %v1369
        %v1387 = vmul.f32 %v1364, %v1373
        %v1388 = vadd.f32 %v1317, %v1374
        %v1389 = vadd.f32 %v1318, %v1375
        %v1390 = vadd.f32 %v1319, %v1376
        %v1391 = vadd.f32 %v1320, %v1377
        %v1392 = vadd.f32 %v1321, %v1378
        %v1393 = vadd.f32 %v1322, %v1379
        %v1394 = vadd.f32 %v1323, %v1380
        %v1395 = vadd.f32 %v1324, %v1381
        %v1396 = vadd.f32 %v1325, %v1382
        %v1397 = vadd.f32 %v1326, %v1383
        %v1398 = vadd.f32 %v1327, %v1384
        %v1399 = vadd.f32 %v1328, %v1385
        %v1400 = vadd.f32 %v1329, %v1386
        %v1401 = vadd.f32 %v1330, %v1387
        %v1402 = vmul.f32 %v1388, 1.442695
        %v1403 = vpow.pop %v1402
        %v1404 = vmul.f32 %v1389, 1.442695
        %v1405 = vpow.pop %v1404
        %v1406 = vmul.f32 %v1390, 1.442695
        %v1407 = vpow.pop %v1406
        %v1408 = vmul.f32 %v1391, 1.442695
        %v1409 = vpow.pop %v1408
        %v1410 = vmul.f32 %v1392, 1.442695
        %v1411 = vpow.pop %v1410
        %v1412 = vmul.f32 %v1393, 1.442695
        %v1413 = vpow.pop %v1412
        %v1414 = vmul.f32 %v1394, 1.442695
        %v1415 = vpow.pop %v1414
        %v1416 = vmul.f32 %v1395, 1.442695
        %v1417 = vpow.pop %v1416
        %v1418 = vmul.f32 %v1396, 1.442695
        %v1419 = vpow.pop %v1418
        %v1420 = vmul.f32 %v1397, 1.442695
        %v1421 = vpow.pop %v1420
        %v1422 = vmul.f32 %v1398, 1.442695
        %v1423 = vpow.pop %v1422
        %v1424 = vmul.f32 %v1399, 1.442695
        %v1425 = vpow.pop %v1424
        %v1426 = vmul.f32 %v1400, 1.442695
        %v1427 = vpow.pop %v1426
        %v1428 = vmul.f32 %v1401, 1.442695
        %v1429 = vpow.pop %v1428
        %v1430 = vadd.f32 %v1403, %v1407
        %v1431 = vadd.f32 %v1430, %v1411
        %v1432 = vadd.f32 %v1431, %v1415
        %v1433 = vadd.f32 %v1432, %v1419
        %v1434 = vadd.f32 %v1433, %v1423
        %v1435 = vadd.f32 %v1434, %v1427
        %v1436 = vrot.slane %v1435, 4
        %v1437 = vadd.f32 %v1435, %v1436
        %v1438 = vrot.slane %v1437, 2
        %v1439 = vadd.f32 %v1437, %v1438
        %v1440 = vrot.slane %v1439, 1
        %v1441 = vadd.f32 %v1439, %v1440
        %v1442 = vadd.f32 %v1405, %v1409
        %v1443 = vadd.f32 %v1442, %v1413
        %v1444 = vadd.f32 %v1443, %v1417
        %v1445 = vadd.f32 %v1444, %v1421
        %v1446 = vadd.f32 %v1445, %v1425
        %v1447 = vadd.f32 %v1446, %v1429
        %v1448 = vrot.slane %v1447, 4
        %v1449 = vadd.f32 %v1447, %v1448
        %v1450 = vrot.slane %v1449, 2
        %v1451 = vadd.f32 %v1449, %v1450
        %v1452 = vrot.slane %v1451, 1
        %v1453 = vadd.f32 %v1451, %v1452
        %v1456 = vrot.slane %v1266, 1
        %v1457 = vrot.slane %v1267, 1
        %v1460 = vmul.f32 %v1266, %v1456
        %v1461 = vmul.f32 %v1267, %v1457
        %v1462 = vmul.f32 %v1460, 6.283185e-05
        %v1463 = vmul.f32 %v1461, 6.283185e-05
        %v1464 = vadd.f32 %v1441, %v1462
        %v1465 = vadd.f32 %v1453, %v1463
        %v1466 = vrcp.pop %v1464
        %v1467 = vmul.f32 1.0, %v1466
        %v1468 = vrcp.pop %v1465
        %v1469 = vmul.f32 1.0, %v1468
        %v1470 = vld [vmem:[%s384] sm:$0xff]
        %v1471 = vld [vmem:[%s384 + $0x8] sm:$0xff]
        %v1472 = vld [vmem:[%s384 + $0x10] sm:$0xff]
        %v1473 = vld [vmem:[%s384 + $0x18] sm:$0xff]
        %v1474 = vld [vmem:[%s384 + $0x20] sm:$0xff]
        %v1475 = vld [vmem:[%s384 + $0x28] sm:$0xff]
        %v1476 = vld [vmem:[%s384 + $0x30] sm:$0xff]
        %v1477 = vld [vmem:[%s384 + $0x38] sm:$0xff]
        %v1478 = vld [vmem:[%s384 + $0x40] sm:$0xff]
        %v1479 = vld [vmem:[%s384 + $0x48] sm:$0xff]
        %v1480 = vld [vmem:[%s384 + $0x50] sm:$0xff]
        %v1481 = vld [vmem:[%s384 + $0x58] sm:$0xff]
        %v1482 = vld [vmem:[%s384 + $0x60] sm:$0xff]
        %v1483 = vld [vmem:[%s384 + $0x68] sm:$0xff]
        %v1484 = vmul.f32 %v1470, %v1403
        %v1485 = vmul.f32 %v1471, %v1405
        %v1486 = vmul.f32 %v1472, %v1407
        %v1487 = vmul.f32 %v1473, %v1409
        %v1488 = vmul.f32 %v1474, %v1411
        %v1489 = vmul.f32 %v1475, %v1413
        %v1490 = vmul.f32 %v1476, %v1415
        %v1491 = vmul.f32 %v1477, %v1417
        %v1492 = vmul.f32 %v1478, %v1419
        %v1493 = vmul.f32 %v1479, %v1421
        %v1494 = vmul.f32 %v1480, %v1423
        %v1495 = vmul.f32 %v1481, %v1425
        %v1496 = vmul.f32 %v1482, %v1427
        %v1497 = vmul.f32 %v1483, %v1429
        %v1498 = vadd.f32 %v1484, %v1486
        %v1499 = vadd.f32 %v1498, %v1488
        %v1500 = vadd.f32 %v1499, %v1490
        %v1501 = vadd.f32 %v1500, %v1492
        %v1502 = vadd.f32 %v1501, %v1494
        %v1503 = vadd.f32 %v1502, %v1496
        %v1504 = vrot.slane %v1503, 4
        %v1505 = vadd.f32 %v1503, %v1504
        %v1506 = vrot.slane %v1505, 2
        %v1507 = vadd.f32 %v1505, %v1506
        %v1508 = vrot.slane %v1507, 1
        %v1509 = vadd.f32 %v1507, %v1508
        %v1510 = vadd.f32 %v1485, %v1487
        %v1511 = vadd.f32 %v1510, %v1489
        %v1512 = vadd.f32 %v1511, %v1491
        %v1513 = vadd.f32 %v1512, %v1493
        %v1514 = vadd.f32 %v1513, %v1495
        %v1515 = vadd.f32 %v1514, %v1497
        %v1516 = vrot.slane %v1515, 4
        %v1517 = vadd.f32 %v1515, %v1516
        %v1518 = vrot.slane %v1517, 2
        %v1519 = vadd.f32 %v1517, %v1518
        %v1520 = vrot.slane %v1519, 1
        %v1521 = vadd.f32 %v1519, %v1520
        %s1522 = scalar_lea.vmem %s384, 112 [#allocation5]
        %v1523 = vld [vmem:[%s1522] sm:$0xff]
        %v1524 = vld [vmem:[%s1522 + $0x8] sm:$0xff]
        %v1525 = vld [vmem:[%s1522 + $0x10] sm:$0xff]
        %v1526 = vld [vmem:[%s1522 + $0x18] sm:$0xff]
        %v1527 = vld [vmem:[%s1522 + $0x20] sm:$0xff]
        %v1528 = vld [vmem:[%s1522 + $0x28] sm:$0xff]
        %v1529 = vld [vmem:[%s1522 + $0x30] sm:$0xff]
        %v1530 = vld [vmem:[%s1522 + $0x38] sm:$0xff]
        %v1531 = vld [vmem:[%s1522 + $0x40] sm:$0xff]
        %v1532 = vld [vmem:[%s1522 + $0x48] sm:$0xff]
        %v1533 = vld [vmem:[%s1522 + $0x50] sm:$0xff]
        %v1534 = vld [vmem:[%s1522 + $0x58] sm:$0xff]
        %v1535 = vld [vmem:[%s1522 + $0x60] sm:$0xff]
        %v1536 = vld [vmem:[%s1522 + $0x68] sm:$0xff]
        %v1537 = vmul.f32 %v1523, %v1403
        %v1538 = vmul.f32 %v1524, %v1405
        %v1539 = vmul.f32 %v1525, %v1407
        %v1540 = vmul.f32 %v1526, %v1409
        %v1541 = vmul.f32 %v1527, %v1411
        %v1542 = vmul.f32 %v1528, %v1413
        %v1543 = vmul.f32 %v1529, %v1415
        %v1544 = vmul.f32 %v1530, %v1417
        %v1545 = vmul.f32 %v1531, %v1419
        %v1546 = vmul.f32 %v1532, %v1421
        %v1547 = vmul.f32 %v1533, %v1423
        %v1548 = vmul.f32 %v1534, %v1425
        %v1549 = vmul.f32 %v1535, %v1427
        %v1550 = vmul.f32 %v1536, %v1429
        %v1551 = vadd.f32 %v1537, %v1539
        %v1552 = vadd.f32 %v1551, %v1541
        %v1553 = vadd.f32 %v1552, %v1543
        %v1554 = vadd.f32 %v1553, %v1545
        %v1555 = vadd.f32 %v1554, %v1547
        %v1556 = vadd.f32 %v1555, %v1549
        %v1557 = vrot.slane %v1556, 4
        %v1558 = vadd.f32 %v1556, %v1557
        %v1559 = vrot.slane %v1558, 2
        %v1560 = vadd.f32 %v1558, %v1559
        %v1561 = vrot.slane %v1560, 1
        %v1562 = vadd.f32 %v1560, %v1561
        %v1563 = vadd.f32 %v1538, %v1540
        %v1564 = vadd.f32 %v1563, %v1542
        %v1565 = vadd.f32 %v1564, %v1544
        %v1566 = vadd.f32 %v1565, %v1546
        %v1567 = vadd.f32 %v1566, %v1548
        %v1568 = vadd.f32 %v1567, %v1550
        %v1569 = vrot.slane %v1568, 4
        %v1570 = vadd.f32 %v1568, %v1569
        %v1571 = vrot.slane %v1570, 2
        %v1572 = vadd.f32 %v1570, %v1571
        %v1573 = vrot.slane %v1572, 1
        %v1574 = vadd.f32 %v1572, %v1573
        %s1575 = scalar_lea.vmem %s384, 224 [#allocation5]
        %v1576 = vld [vmem:[%s1575] sm:$0xff]
        %v1577 = vld [vmem:[%s1575 + $0x8] sm:$0xff]
        %v1578 = vld [vmem:[%s1575 + $0x10] sm:$0xff]
        %v1579 = vld [vmem:[%s1575 + $0x18] sm:$0xff]
        %v1580 = vld [vmem:[%s1575 + $0x20] sm:$0xff]
        %v1581 = vld [vmem:[%s1575 + $0x28] sm:$0xff]
        %v1582 = vld [vmem:[%s1575 + $0x30] sm:$0xff]
        %v1583 = vld [vmem:[%s1575 + $0x38] sm:$0xff]
        %v1584 = vld [vmem:[%s1575 + $0x40] sm:$0xff]
        %v1585 = vld [vmem:[%s1575 + $0x48] sm:$0xff]
        %v1586 = vld [vmem:[%s1575 + $0x50] sm:$0xff]
        %v1587 = vld [vmem:[%s1575 + $0x58] sm:$0xff]
        %v1588 = vld [vmem:[%s1575 + $0x60] sm:$0xff]
        %v1589 = vld [vmem:[%s1575 + $0x68] sm:$0xff]
        %v1590 = vmul.f32 %v1576, %v1403
        %v1591 = vmul.f32 %v1577, %v1405
        %v1592 = vmul.f32 %v1578, %v1407
        %v1593 = vmul.f32 %v1579, %v1409
        %v1594 = vmul.f32 %v1580, %v1411
        %v1595 = vmul.f32 %v1581, %v1413
        %v1596 = vmul.f32 %v1582, %v1415
        %v1597 = vmul.f32 %v1583, %v1417
        %v1598 = vmul.f32 %v1584, %v1419
        %v1599 = vmul.f32 %v1585, %v1421
        %v1600 = vmul.f32 %v1586, %v1423
        %v1601 = vmul.f32 %v1587, %v1425
        %v1602 = vmul.f32 %v1588, %v1427
        %v1603 = vmul.f32 %v1589, %v1429
        %v1604 = vadd.f32 %v1590, %v1592
        %v1605 = vadd.f32 %v1604, %v1594
        %v1606 = vadd.f32 %v1605, %v1596
        %v1607 = vadd.f32 %v1606, %v1598
        %v1608 = vadd.f32 %v1607, %v1600
        %v1609 = vadd.f32 %v1608, %v1602
        %v1610 = vrot.slane %v1609, 4
        %v1611 = vadd.f32 %v1609, %v1610
        %v1612 = vrot.slane %v1611, 2
        %v1613 = vadd.f32 %v1611, %v1612
        %v1614 = vrot.slane %v1613, 1
        %v1615 = vadd.f32 %v1613, %v1614
        %v1616 = vadd.f32 %v1591, %v1593
        %v1617 = vadd.f32 %v1616, %v1595
        %v1618 = vadd.f32 %v1617, %v1597
        %v1619 = vadd.f32 %v1618, %v1599
        %v1620 = vadd.f32 %v1619, %v1601
        %v1621 = vadd.f32 %v1620, %v1603
        %v1622 = vrot.slane %v1621, 4
        %v1623 = vadd.f32 %v1621, %v1622
        %v1624 = vrot.slane %v1623, 2
        %v1625 = vadd.f32 %v1623, %v1624
        %v1626 = vrot.slane %v1625, 1
        %v1627 = vadd.f32 %v1625, %v1626
        %vm1628 = vcmask 1040384
        %v1629 = vsel %vm1628, %v1509, %v1562
        %v1630 = vsel %vm1628, %v1521, %v1574
        %vm1631 = vcmask 1041408
        %v1632 = vsel %vm1631, %v1629, %v1615
        %v1633 = vsel %vm1631, %v1630, %v1627
        %v1634 = vlaneseq
        %v1635 = vshrl.u32 %v1634, 7
        %v1636 = vsub.s32 0, %v1635
        %v1637 = vrot.slane %v1467, %v1636
        %v1638 = vlaneseq
        %v1639 = vshrl.u32 %v1638, 7
        %v1640 = vsub.s32 0, %v1639
        %v1641 = vrot.slane %v1469, %v1640
        %v1642 = vmul.f32 %v1632, %v1637
        %v1643 = vmul.f32 %v1633, %v1641
        %s1644 = scalar_lea.vmem %s4, 80
        %v1645 = vld [vmem:[%s1644] sm:$0xf]
        %v1646 = vld [vmem:[%s1644 + $0x4] sm:$0xf]
        %v1647 = vld [vmem:[%s1644 + $0x8] sm:$0xf]
        %v1648 = vld [vmem:[%s1644 + $0xc] sm:$0xf]
        %1649 = vset.pattern.permute.xlu0 3
        %1650 = vperm.xlu0 %1649, %v479
        %v1651 = vpop.permute.xlu0 %1650
        %1653 = vset.pattern.permute.xlu0 3
        %1654 = vperm.xlu0 %1653, %v480
        %v1655 = vpop.permute.xlu0 %1654
        %1657 = vset.pattern.permute.xlu0 3
        %1658 = vperm.xlu0 %1657, %v481
        %v1659 = vpop.permute.xlu0 %1658
        %1661 = vset.pattern.permute.xlu0 3
        %1662 = vperm.xlu0 %1661, %v482
        %v1663 = vpop.permute.xlu0 %1662
        %v1665 = vlaneseq
        %v1666 = vshrl.u32 %v1665, 7
        %v1667 = vsub.s32 2, %v1666
        %v1668 = vrot.slane %v434, %v1667
        %v1669 = vlaneseq
        %v1670 = vshrl.u32 %v1669, 7
        %v1671 = vsub.s32 2, %v1670
        %v1672 = vrot.slane %v435, %v1671
        %v1673 = vmul.f32 %v1651, %v1668
        %v1674 = vmul.f32 %v1651, %v1672
        %v1675 = vmul.f32 %v1655, %v1668
        %v1676 = vmul.f32 %v1655, %v1672
        %v1677 = vmul.f32 %v1659, %v1668
        %v1678 = vmul.f32 %v1659, %v1672
        %v1679 = vmul.f32 %v1663, %v1668
        %v1680 = vmul.f32 %v1663, %v1672
        %1681 = vset.pattern.permute.xlu0 4
        %1682 = vperm.xlu0 %1681, %v479
        %v1683 = vpop.permute.xlu0 %1682
        %1685 = vset.pattern.permute.xlu0 4
        %1686 = vperm.xlu0 %1685, %v480
        %v1687 = vpop.permute.xlu0 %1686
        %1689 = vset.pattern.permute.xlu0 4
        %1690 = vperm.xlu0 %1689, %v481
        %v1691 = vpop.permute.xlu0 %1690
        %1693 = vset.pattern.permute.xlu0 4
        %1694 = vperm.xlu0 %1693, %v482
        %v1695 = vpop.permute.xlu0 %1694
        %v1697 = vlaneseq
        %v1698 = vshrl.u32 %v1697, 7
        %v1699 = vsub.s32 3, %v1698
        %v1700 = vrot.slane %v434, %v1699
        %v1701 = vlaneseq
        %v1702 = vshrl.u32 %v1701, 7
        %v1703 = vsub.s32 3, %v1702
        %v1704 = vrot.slane %v435, %v1703
        %v1705 = vmul.f32 %v1683, %v1700
        %v1706 = vmul.f32 %v1683, %v1704
        %v1707 = vmul.f32 %v1687, %v1700
        %v1708 = vmul.f32 %v1687, %v1704
        %v1709 = vmul.f32 %v1691, %v1700
        %v1710 = vmul.f32 %v1691, %v1704
        %v1711 = vmul.f32 %v1695, %v1700
        %v1712 = vmul.f32 %v1695, %v1704
        %v1713 = vadd.f32 %v1673, %v1705
        %v1714 = vadd.f32 %v1674, %v1706
        %v1715 = vadd.f32 %v1675, %v1707
        %v1716 = vadd.f32 %v1676, %v1708
        %v1717 = vadd.f32 %v1677, %v1709
        %v1718 = vadd.f32 %v1678, %v1710
        %v1719 = vadd.f32 %v1679, %v1711
        %v1720 = vadd.f32 %v1680, %v1712
        %1721 = vset.pattern.permute.xlu0 5
        %1722 = vperm.xlu0 %1721, %v479
        %v1723 = vpop.permute.xlu0 %1722
        %1725 = vset.pattern.permute.xlu0 5
        %1726 = vperm.xlu0 %1725, %v480
        %v1727 = vpop.permute.xlu0 %1726
        %1729 = vset.pattern.permute.xlu0 5
        %1730 = vperm.xlu0 %1729, %v481
        %v1731 = vpop.permute.xlu0 %1730
        %1733 = vset.pattern.permute.xlu0 5
        %1734 = vperm.xlu0 %1733, %v482
        %v1735 = vpop.permute.xlu0 %1734
        %v1737 = vlaneseq
        %v1738 = vshrl.u32 %v1737, 7
        %v1739 = vsub.s32 4, %v1738
        %v1740 = vrot.slane %v434, %v1739
        %v1741 = vlaneseq
        %v1742 = vshrl.u32 %v1741, 7
        %v1743 = vsub.s32 4, %v1742
        %v1744 = vrot.slane %v435, %v1743
        %v1745 = vmul.f32 %v1723, %v1740
        %v1746 = vmul.f32 %v1723, %v1744
        %v1747 = vmul.f32 %v1727, %v1740
        %v1748 = vmul.f32 %v1727, %v1744
        %v1749 = vmul.f32 %v1731, %v1740
        %v1750 = vmul.f32 %v1731, %v1744
        %v1751 = vmul.f32 %v1735, %v1740
        %v1752 = vmul.f32 %v1735, %v1744
        %v1753 = vadd.f32 %v1713, %v1745
        %v1754 = vadd.f32 %v1714, %v1746
        %v1755 = vadd.f32 %v1715, %v1747
        %v1756 = vadd.f32 %v1716, %v1748
        %v1757 = vadd.f32 %v1717, %v1749
        %v1758 = vadd.f32 %v1718, %v1750
        %v1759 = vadd.f32 %v1719, %v1751
        %v1760 = vadd.f32 %v1720, %v1752
        %v1765 = vunpack.c.l.b16 %v1645
        %v1766 = vunpack.c.l.b16 %v1646
        %v1767 = vunpack.c.l.b16 %v1647
        %v1768 = vunpack.c.l.b16 %v1648
        %v1769 = vpack.c.b16 %v1766, %v1765
        %v1770 = vpack.c.b16 %v1768, %v1767
        %v1772 = vsel %vm545, %v1769, 0
        %v1775 = vsel %vm545, %v1770, 0
        %1777 = vmatprep.subr.bf16.mxu0 %v1144
        %1778 = vmatpush1.bf16.msra.mxu0 %v1143
        %1779 = vmatprep.subr.bf16.mxu0 %v1146
        %1780 = vmatpush1.bf16.msra.mxu0 %v1145
        %1781 = vmatprep.subr.bf16.mxu0 0
        %1782 = vmatpush1.bf16.msra.mxu0 0
        %1783 = vmatprep.subr.bf16.mxu0 0
        %1784 = vmatpush1.bf16.msra.mxu0 0
        %1785 = vmatprep.subr.bf16.mxu0 0
        %1786 = vmatpush1.bf16.msra.mxu0 0
        %1787 = vmatprep.subr.bf16.mxu0 0
        %1788 = vmatpush1.bf16.msra.mxu0 0
        %1789 = vmatprep.subr.bf16.mxu0 0
        %1790 = vmatpush1.bf16.msra.mxu0 0
        %1791 = vmatprep.subr.bf16.mxu0 0
        %1792 = vmatpush1.bf16.msra.mxu0 0
        %1793 = vmatprep.subr.bf16.mxu0 0
        %1794 = vmatpush1.bf16.msra.mxu0 0
        %1795 = vmatprep.subr.bf16.mxu0 0
        %1796 = vmatpush1.bf16.msra.mxu0 0
        %1797 = vmatprep.subr.bf16.mxu0 0
        %1798 = vmatpush1.bf16.msra.mxu0 0
        %1799 = vmatprep.subr.bf16.mxu0 0
        %1800 = vmatpush1.bf16.msra.mxu0 0
        %1801 = vmatprep.subr.bf16.mxu0 0
        %1802 = vmatpush1.bf16.msra.mxu0 0
        %1803 = vmatprep.subr.bf16.mxu0 0
        %1804 = vmatpush1.bf16.msra.mxu0 0
        %1805 = vmatprep.subr.bf16.mxu0 0
        %1806 = vmatpush1.bf16.msra.mxu0 0
        %1807 = vmatprep.subr.bf16.mxu0 0
        %1808 = vmatpush1.bf16.msra.mxu0 0
        %1809 = vmatprep.mubr.bf16.mxu0 0
        %1810 = vmatmul.mubr.bf16.gmra.mrb[0].mxu0 %v1772
        %v1811 = vpop.f32.mrb[0].mxu0
        %v1812 = vadd.f32 %v1753, %v1811
        %v1813 = vpop.f32.mrb[0].mxu0
        %v1814 = vadd.f32 %v1754, %v1813
        %v1815 = vpop.f32.mrb[0].mxu0
        %v1816 = vadd.f32 %v1755, %v1815
        %v1817 = vpop.f32.mrb[0].mxu0
        %v1818 = vadd.f32 %v1756, %v1817
        %1819 = vmatprep.mubr.bf16.mxu0 0
        %1820 = vmatmul.mubr.bf16.gmra.mrb[0].mxu0 %v1775
        %v1821 = vpop.f32.mrb[0].mxu0
        %v1822 = vadd.f32 %v1757, %v1821
        %v1823 = vpop.f32.mrb[0].mxu0
        %v1824 = vadd.f32 %v1758, %v1823
        %v1825 = vpop.f32.mrb[0].mxu0
        %v1826 = vadd.f32 %v1759, %v1825
        %v1827 = vpop.f32.mrb[0].mxu0
        %v1828 = vadd.f32 %v1760, %v1827
        %1829 = vdwg.mxu0
        %v1830 = vmax.f32 %v1812, 0.0
        %v1831 = vmax.f32 %v1814, 0.0
        %v1832 = vmax.f32 %v1816, 0.0
        %v1833 = vmax.f32 %v1818, 0.0
        %v1834 = vmax.f32 %v1822, 0.0
        %v1835 = vmax.f32 %v1824, 0.0
        %v1836 = vmax.f32 %v1826, 0.0
        %v1837 = vmax.f32 %v1828, 0.0
        %v1838 = vpack.c.bf16 %v1832, %v1830
        %v1839 = vpack.c.bf16 %v1833, %v1831
        %v1840 = vpack.c.bf16 %v1836, %v1834
        %v1841 = vpack.c.bf16 %v1837, %v1835
        %1842 = vmatprep.subr.bf16.mxu0 %v1839
        %1843 = vmatpush1.bf16.msra.mxu0 %v1838
        %1844 = vmatprep.subr.bf16.mxu0 %v1841
        %1845 = vmatpush1.bf16.msra.mxu0 %v1840
        %1846 = vmatprep.subr.bf16.mxu0 0
        %1847 = vmatpush1.bf16.msra.mxu0 0
        %1848 = vmatprep.subr.bf16.mxu0 0
        %1849 = vmatpush1.bf16.msra.mxu0 0
        %1850 = vmatprep.subr.bf16.mxu0 0
        %1851 = vmatpush1.bf16.msra.mxu0 0
        %1852 = vmatprep.subr.bf16.mxu0 0
        %1853 = vmatpush1.bf16.msra.mxu0 0
        %1854 = vmatprep.subr.bf16.mxu0 0
        %1855 = vmatpush1.bf16.msra.mxu0 0
        %1856 = vmatprep.subr.bf16.mxu0 0
        %1857 = vmatpush1.bf16.msra.mxu0 0
        %1858 = vmatprep.subr.bf16.mxu0 0
        %1859 = vmatpush1.bf16.msra.mxu0 0
        %1860 = vmatprep.subr.bf16.mxu0 0
        %1861 = vmatpush1.bf16.msra.mxu0 0
        %1862 = vmatprep.subr.bf16.mxu0 0
        %1863 = vmatpush1.bf16.msra.mxu0 0
        %1864 = vmatprep.subr.bf16.mxu0 0
        %1865 = vmatpush1.bf16.msra.mxu0 0
        %1866 = vmatprep.subr.bf16.mxu0 0
        %1867 = vmatpush1.bf16.msra.mxu0 0
        %1868 = vmatprep.subr.bf16.mxu0 0
        %1869 = vmatpush1.bf16.msra.mxu0 0
        %1870 = vmatprep.subr.bf16.mxu0 0
        %1871 = vmatpush1.bf16.msra.mxu0 0
        %1872 = vmatprep.subr.bf16.mxu0 0
        %1873 = vmatpush1.bf16.msra.mxu0 0
        %1874 = vmatprep.mubr.bf16.mxu0 0
        %1875 = vmatmul.mubr.bf16.gmra.mrb[0].mxu0 %v547
        %v1876 = vpop.f32.mrb[0].mxu0
        %v1877 = vadd.f32 0.0, %v1876
        %v1878 = vpop.f32.mrb[0].mxu0
        %v1879 = vadd.f32 0.0, %v1878
        %v1880 = vpop.f32.mrb[0].mxu0
        %v1881 = vadd.f32 0.0, %v1880
        %v1882 = vpop.f32.mrb[0].mxu0
        %v1883 = vadd.f32 0.0, %v1882
        %1884 = vmatprep.mubr.bf16.mxu0 0
        %1885 = vmatmul.mubr.bf16.gmra.mrb[0].mxu0 %v550
        %v1886 = vpop.f32.mrb[0].mxu0
        %v1887 = vadd.f32 0.0, %v1886
        %v1888 = vpop.f32.mrb[0].mxu0
        %v1889 = vadd.f32 0.0, %v1888
        %v1890 = vpop.f32.mrb[0].mxu0
        %v1891 = vadd.f32 0.0, %v1890
        %v1892 = vpop.f32.mrb[0].mxu0
        %v1893 = vadd.f32 0.0, %v1892
        %1894 = vdwg.mxu0
        %v1895 = vmax.f32 %v1877, 0.0
        %v1896 = vmax.f32 %v1879, 0.0
        %v1897 = vmax.f32 %v1881, 0.0
        %v1898 = vmax.f32 %v1883, 0.0
        %v1899 = vmax.f32 %v1887, 0.0
        %v1900 = vmax.f32 %v1889, 0.0
        %v1901 = vmax.f32 %v1891, 0.0
        %v1902 = vmax.f32 %v1893, 0.0
        %v1903 = vpack.c.bf16 %v1897, %v1895
        %v1904 = vpack.c.bf16 %v1898, %v1896
        %v1905 = vpack.c.bf16 %v1901, %v1899
        %v1906 = vpack.c.bf16 %v1902, %v1900
        %1907 = vmatprep.subr.bf16.mxu0 %v1904
        %1908 = vmatpush1.bf16.msra.mxu0 %v1903
        %1909 = vmatprep.subr.bf16.mxu0 %v1906
        %1910 = vmatpush1.bf16.msra.mxu0 %v1905
        %1911 = vmatprep.subr.bf16.mxu0 0
        %1912 = vmatpush1.bf16.msra.mxu0 0
        %1913 = vmatprep.subr.bf16.mxu0 0
        %1914 = vmatpush1.bf16.msra.mxu0 0
        %1915 = vmatprep.subr.bf16.mxu0 0
        %1916 = vmatpush1.bf16.msra.mxu0 0
        %1917 = vmatprep.subr.bf16.mxu0 0
        %1918 = vmatpush1.bf16.msra.mxu0 0
        %1919 = vmatprep.subr.bf16.mxu0 0
        %1920 = vmatpush1.bf16.msra.mxu0 0
        %1921 = vmatprep.subr.bf16.mxu0 0
        %1922 = vmatpush1.bf16.msra.mxu0 0
        %1923 = vmatprep.subr.bf16.mxu0 0
        %1924 = vmatpush1.bf16.msra.mxu0 0
        %1925 = vmatprep.subr.bf16.mxu0 0
        %1926 = vmatpush1.bf16.msra.mxu0 0
        %1927 = vmatprep.subr.bf16.mxu0 0
        %1928 = vmatpush1.bf16.msra.mxu0 0
        %1929 = vmatprep.subr.bf16.mxu0 0
        %1930 = vmatpush1.bf16.msra.mxu0 0
        %1931 = vmatprep.subr.bf16.mxu0 0
        %1932 = vmatpush1.bf16.msra.mxu0 0
        %1933 = vmatprep.subr.bf16.mxu0 0
        %1934 = vmatpush1.bf16.msra.mxu0 0
        %1935 = vmatprep.subr.bf16.mxu0 0
        %1936 = vmatpush1.bf16.msra.mxu0 0
        %1937 = vmatprep.subr.bf16.mxu0 0
        %1938 = vmatpush1.bf16.msra.mxu0 0
        %1939 = vmatprep.mubr.bf16.mxu0 0
        %1940 = vmatmul.mubr.bf16.gmra.mrb[0].mxu0 %v633
        %v1941 = vpop.f32.mrb[0].mxu0
        %v1942 = vadd.f32 0.0, %v1941
        %v1943 = vpop.f32.mrb[0].mxu0
        %v1944 = vadd.f32 0.0, %v1943
        %v1945 = vpop.f32.mrb[0].mxu0
        %v1946 = vadd.f32 0.0, %v1945
        %v1947 = vpop.f32.mrb[0].mxu0
        %v1948 = vadd.f32 0.0, %v1947
        %1949 = vmatprep.mubr.bf16.mxu0 0
        %1950 = vmatmul.mubr.bf16.gmra.mrb[0].mxu0 %v636
        %v1951 = vpop.f32.mrb[0].mxu0
        %v1952 = vadd.f32 0.0, %v1951
        %v1953 = vpop.f32.mrb[0].mxu0
        %v1954 = vadd.f32 0.0, %v1953
        %v1955 = vpop.f32.mrb[0].mxu0
        %v1956 = vadd.f32 0.0, %v1955
        %v1957 = vpop.f32.mrb[0].mxu0
        %v1958 = vadd.f32 0.0, %v1957
        %1959 = vdwg.mxu0
        %v1960 = vmax.f32 %v1942, 0.0
        %v1961 = vmax.f32 %v1944, 0.0
        %v1962 = vmax.f32 %v1946, 0.0
        %v1963 = vmax.f32 %v1948, 0.0
        %v1964 = vmax.f32 %v1952, 0.0
        %v1965 = vmax.f32 %v1954, 0.0
        %v1966 = vmax.f32 %v1956, 0.0
        %v1967 = vmax.f32 %v1958, 0.0
        %v1968 = vpack.c.bf16 %v1962, %v1960
        %v1969 = vpack.c.bf16 %v1963, %v1961
        %v1970 = vpack.c.bf16 %v1966, %v1964
        %v1971 = vpack.c.bf16 %v1967, %v1965
        %s1972 = scalar_lea.vmem %s4, 96
        %v1973 = vld [vmem:[%s1972] sm:$0xf]
        %v1974 = vld [vmem:[%s1972 + $0x4] sm:$0xf]
        %v1975 = vld [vmem:[%s1972 + $0x8] sm:$0xf]
        %v1976 = vld [vmem:[%s1972 + $0xc] sm:$0xf]
        %1977 = vset.pattern.permute.xlu0 6
        %1978 = vperm.xlu0 %1977, %v479
        %v1979 = vpop.permute.xlu0 %1978
        %1981 = vset.pattern.permute.xlu0 6
        %1982 = vperm.xlu0 %1981, %v480
        %v1983 = vpop.permute.xlu0 %1982
        %1985 = vset.pattern.permute.xlu0 6
        %1986 = vperm.xlu0 %1985, %v481
        %v1987 = vpop.permute.xlu0 %1986
        %1989 = vset.pattern.permute.xlu0 6
        %1990 = vperm.xlu0 %1989, %v482
        %v1991 = vpop.permute.xlu0 %1990
        %v1993 = vmul.f32 %v1979, %v1668
        %v1994 = vmul.f32 %v1979, %v1672
        %v1995 = vmul.f32 %v1983, %v1668
        %v1996 = vmul.f32 %v1983, %v1672
        %v1997 = vmul.f32 %v1987, %v1668
        %v1998 = vmul.f32 %v1987, %v1672
        %v1999 = vmul.f32 %v1991, %v1668
        %v2000 = vmul.f32 %v1991, %v1672
        %2001 = vset.pattern.permute.xlu0 7
        %2002 = vperm.xlu0 %2001, %v479
        %v2003 = vpop.permute.xlu0 %2002
        %2005 = vset.pattern.permute.xlu0 7
        %2006 = vperm.xlu0 %2005, %v480
        %v2007 = vpop.permute.xlu0 %2006
        %2009 = vset.pattern.permute.xlu0 7
        %2010 = vperm.xlu0 %2009, %v481
        %v2011 = vpop.permute.xlu0 %2010
        %2013 = vset.pattern.permute.xlu0 7
        %2014 = vperm.xlu0 %2013, %v482
        %v2015 = vpop.permute.xlu0 %2014
        %v2017 = vmul.f32 %v2003, %v1700
        %v2018 = vmul.f32 %v2003, %v1704
        %v2019 = vmul.f32 %v2007, %v1700
        %v2020 = vmul.f32 %v2007, %v1704
        %v2021 = vmul.f32 %v2011, %v1700
        %v2022 = vmul.f32 %v2011, %v1704
        %v2023 = vmul.f32 %v2015, %v1700
        %v2024 = vmul.f32 %v2015, %v1704
        %v2025 = vadd.f32 %v1993, %v2017
        %v2026 = vadd.f32 %v1994, %v2018
        %v2027 = vadd.f32 %v1995, %v2019
        %v2028 = vadd.f32 %v1996, %v2020
        %v2029 = vadd.f32 %v1997, %v2021
        %v2030 = vadd.f32 %v1998, %v2022
        %v2031 = vadd.f32 %v1999, %v2023
        %v2032 = vadd.f32 %v2000, %v2024
        %2033 = vset.pattern.permute.xlu0 8
        %2034 = vperm.xlu0 %2033, %v479
        %v2035 = vpop.permute.xlu0 %2034
        %2037 = vset.pattern.permute.xlu0 8
        %2038 = vperm.xlu0 %2037, %v480
        %v2039 = vpop.permute.xlu0 %2038
        %2041 = vset.pattern.permute.xlu0 8
        %2042 = vperm.xlu0 %2041, %v481
        %v2043 = vpop.permute.xlu0 %2042
        %2045 = vset.pattern.permute.xlu0 8
        %2046 = vperm.xlu0 %2045, %v482
        %v2047 = vpop.permute.xlu0 %2046
        %v2049 = vmul.f32 %v2035, %v1740
        %v2050 = vmul.f32 %v2035, %v1744
        %v2051 = vmul.f32 %v2039, %v1740
        %v2052 = vmul.f32 %v2039, %v1744
        %v2053 = vmul.f32 %v2043, %v1740
        %v2054 = vmul.f32 %v2043, %v1744
        %v2055 = vmul.f32 %v2047, %v1740
        %v2056 = vmul.f32 %v2047, %v1744
        %v2057 = vadd.f32 %v2025, %v2049
        %v2058 = vadd.f32 %v2026, %v2050
        %v2059 = vadd.f32 %v2027, %v2051
        %v2060 = vadd.f32 %v2028, %v2052
        %v2061 = vadd.f32 %v2029, %v2053
        %v2062 = vadd.f32 %v2030, %v2054
        %v2063 = vadd.f32 %v2031, %v2055
        %v2064 = vadd.f32 %v2032, %v2056
        %v2069 = vunpack.c.l.b16 %v1973
        %v2070 = vunpack.c.l.b16 %v1974
        %v2071 = vunpack.c.l.b16 %v1975
        %v2072 = vunpack.c.l.b16 %v1976
        %v2073 = vpack.c.b16 %v2070, %v2069
        %v2074 = vpack.c.b16 %v2072, %v2071
        %v2076 = vsel %vm545, %v2073, 0
        %v2079 = vsel %vm545, %v2074, 0
        %2081 = vmatprep.subr.bf16.mxu0 %v1969
        %2082 = vmatpush1.bf16.msra.mxu0 %v1968
        %2083 = vmatprep.subr.bf16.mxu0 %v1971
        %2084 = vmatpush1.bf16.msra.mxu0 %v1970
        %2085 = vmatprep.subr.bf16.mxu0 0
        %2086 = vmatpush1.bf16.msra.mxu0 0
        %2087 = vmatprep.subr.bf16.mxu0 0
        %2088 = vmatpush1.bf16.msra.mxu0 0
        %2089 = vmatprep.subr.bf16.mxu0 0
        %2090 = vmatpush1.bf16.msra.mxu0 0
        %2091 = vmatprep.subr.bf16.mxu0 0
        %2092 = vmatpush1.bf16.msra.mxu0 0
        %2093 = vmatprep.subr.bf16.mxu0 0
        %2094 = vmatpush1.bf16.msra.mxu0 0
        %2095 = vmatprep.subr.bf16.mxu0 0
        %2096 = vmatpush1.bf16.msra.mxu0 0
        %2097 = vmatprep.subr.bf16.mxu0 0
        %2098 = vmatpush1.bf16.msra.mxu0 0
        %2099 = vmatprep.subr.bf16.mxu0 0
        %2100 = vmatpush1.bf16.msra.mxu0 0
        %2101 = vmatprep.subr.bf16.mxu0 0
        %2102 = vmatpush1.bf16.msra.mxu0 0
        %2103 = vmatprep.subr.bf16.mxu0 0
        %2104 = vmatpush1.bf16.msra.mxu0 0
        %2105 = vmatprep.subr.bf16.mxu0 0
        %2106 = vmatpush1.bf16.msra.mxu0 0
        %2107 = vmatprep.subr.bf16.mxu0 0
        %2108 = vmatpush1.bf16.msra.mxu0 0
        %2109 = vmatprep.subr.bf16.mxu0 0
        %2110 = vmatpush1.bf16.msra.mxu0 0
        %2111 = vmatprep.subr.bf16.mxu0 0
        %2112 = vmatpush1.bf16.msra.mxu0 0
        %2113 = vmatprep.mubr.bf16.mxu0 0
        %2114 = vmatmul.mubr.bf16.gmra.mrb[0].mxu0 %v2076
        %v2115 = vpop.f32.mrb[0].mxu0
        %v2116 = vadd.f32 %v2057, %v2115
        %v2117 = vpop.f32.mrb[0].mxu0
        %v2118 = vadd.f32 %v2058, %v2117
        %v2119 = vpop.f32.mrb[0].mxu0
        %v2120 = vadd.f32 %v2059, %v2119
        %v2121 = vpop.f32.mrb[0].mxu0
        %v2122 = vadd.f32 %v2060, %v2121
        %2123 = vmatprep.mubr.bf16.mxu0 0
        %2124 = vmatmul.mubr.bf16.gmra.mrb[0].mxu0 %v2079
        %v2125 = vpop.f32.mrb[0].mxu0
        %v2126 = vadd.f32 %v2061, %v2125
        %v2127 = vpop.f32.mrb[0].mxu0
        %v2128 = vadd.f32 %v2062, %v2127
        %v2129 = vpop.f32.mrb[0].mxu0
        %v2130 = vadd.f32 %v2063, %v2129
        %v2131 = vpop.f32.mrb[0].mxu0
        %v2132 = vadd.f32 %v2064, %v2131
        %2133 = vdwg.mxu0
        %v2134 = vmax.f32 %v2116, 0.0
        %v2135 = vmax.f32 %v2118, 0.0
        %v2136 = vmax.f32 %v2120, 0.0
        %v2137 = vmax.f32 %v2122, 0.0
        %v2138 = vmax.f32 %v2126, 0.0
        %v2139 = vmax.f32 %v2128, 0.0
        %v2140 = vmax.f32 %v2130, 0.0
        %v2141 = vmax.f32 %v2132, 0.0
        %v2142 = vpack.c.bf16 %v2136, %v2134
        %v2143 = vpack.c.bf16 %v2137, %v2135
        %v2144 = vpack.c.bf16 %v2140, %v2138
        %v2145 = vpack.c.bf16 %v2141, %v2139
        %2146 = vmatprep.subr.bf16.mxu0 %v2143
        %2147 = vmatpush1.bf16.msra.mxu0 %v2142
        %2148 = vmatprep.subr.bf16.mxu0 %v2145
        %2149 = vmatpush1.bf16.msra.mxu0 %v2144
        %2150 = vmatprep.subr.bf16.mxu0 0
        %2151 = vmatpush1.bf16.msra.mxu0 0
        %2152 = vmatprep.subr.bf16.mxu0 0
        %2153 = vmatpush1.bf16.msra.mxu0 0
        %2154 = vmatprep.subr.bf16.mxu0 0
        %2155 = vmatpush1.bf16.msra.mxu0 0
        %2156 = vmatprep.subr.bf16.mxu0 0
        %2157 = vmatpush1.bf16.msra.mxu0 0
        %2158 = vmatprep.subr.bf16.mxu0 0
        %2159 = vmatpush1.bf16.msra.mxu0 0
        %2160 = vmatprep.subr.bf16.mxu0 0
        %2161 = vmatpush1.bf16.msra.mxu0 0
        %2162 = vmatprep.subr.bf16.mxu0 0
        %2163 = vmatpush1.bf16.msra.mxu0 0
        %2164 = vmatprep.subr.bf16.mxu0 0
        %2165 = vmatpush1.bf16.msra.mxu0 0
        %2166 = vmatprep.subr.bf16.mxu0 0
        %2167 = vmatpush1.bf16.msra.mxu0 0
        %2168 = vmatprep.subr.bf16.mxu0 0
        %2169 = vmatpush1.bf16.msra.mxu0 0
        %2170 = vmatprep.subr.bf16.mxu0 0
        %2171 = vmatpush1.bf16.msra.mxu0 0
        %2172 = vmatprep.subr.bf16.mxu0 0
        %2173 = vmatpush1.bf16.msra.mxu0 0
        %2174 = vmatprep.subr.bf16.mxu0 0
        %2175 = vmatpush1.bf16.msra.mxu0 0
        %2176 = vmatprep.subr.bf16.mxu0 0
        %2177 = vmatpush1.bf16.msra.mxu0 0
        %2178 = vmatprep.mubr.bf16.mxu0 0
        %2179 = vmatmul.mubr.bf16.gmra.mrb[0].mxu0 %v547
        %v2180 = vpop.f32.mrb[0].mxu0
        %v2181 = vadd.f32 0.0, %v2180
        %v2182 = vpop.f32.mrb[0].mxu0
        %v2183 = vadd.f32 0.0, %v2182
        %v2184 = vpop.f32.mrb[0].mxu0
        %v2185 = vadd.f32 0.0, %v2184
        %v2186 = vpop.f32.mrb[0].mxu0
        %v2187 = vadd.f32 0.0, %v2186
        %2188 = vmatprep.mubr.bf16.mxu0 0
        %2189 = vmatmul.mubr.bf16.gmra.mrb[0].mxu0 %v550
        %v2190 = vpop.f32.mrb[0].mxu0
        %v2191 = vadd.f32 0.0, %v2190
        %v2192 = vpop.f32.mrb[0].mxu0
        %v2193 = vadd.f32 0.0, %v2192
        %v2194 = vpop.f32.mrb[0].mxu0
        %v2195 = vadd.f32 0.0, %v2194
        %v2196 = vpop.f32.mrb[0].mxu0
        %v2197 = vadd.f32 0.0, %v2196
        %2198 = vdwg.mxu0
        %v2199 = vmax.f32 %v2181, 0.0
        %v2200 = vmax.f32 %v2183, 0.0
        %v2201 = vmax.f32 %v2185, 0.0
        %v2202 = vmax.f32 %v2187, 0.0
        %v2203 = vmax.f32 %v2191, 0.0
        %v2204 = vmax.f32 %v2193, 0.0
        %v2205 = vmax.f32 %v2195, 0.0
        %v2206 = vmax.f32 %v2197, 0.0
        %v2207 = vpack.c.bf16 %v2201, %v2199
        %v2208 = vpack.c.bf16 %v2202, %v2200
        %v2209 = vpack.c.bf16 %v2205, %v2203
        %v2210 = vpack.c.bf16 %v2206, %v2204
        %2211 = vmatprep.subr.bf16.mxu0 %v2208
        %2212 = vmatpush1.bf16.msra.mxu0 %v2207
        %2213 = vmatprep.subr.bf16.mxu0 %v2210
        %2214 = vmatpush1.bf16.msra.mxu0 %v2209
        %2215 = vmatprep.subr.bf16.mxu0 0
        %2216 = vmatpush1.bf16.msra.mxu0 0
        %2217 = vmatprep.subr.bf16.mxu0 0
        %2218 = vmatpush1.bf16.msra.mxu0 0
        %2219 = vmatprep.subr.bf16.mxu0 0
        %2220 = vmatpush1.bf16.msra.mxu0 0
        %2221 = vmatprep.subr.bf16.mxu0 0
        %2222 = vmatpush1.bf16.msra.mxu0 0
        %2223 = vmatprep.subr.bf16.mxu0 0
        %2224 = vmatpush1.bf16.msra.mxu0 0
        %2225 = vmatprep.subr.bf16.mxu0 0
        %2226 = vmatpush1.bf16.msra.mxu0 0
        %2227 = vmatprep.subr.bf16.mxu0 0
        %2228 = vmatpush1.bf16.msra.mxu0 0
        %2229 = vmatprep.subr.bf16.mxu0 0
        %2230 = vmatpush1.bf16.msra.mxu0 0
        %2231 = vmatprep.subr.bf16.mxu0 0
        %2232 = vmatpush1.bf16.msra.mxu0 0
        %2233 = vmatprep.subr.bf16.mxu0 0
        %2234 = vmatpush1.bf16.msra.mxu0 0
        %2235 = vmatprep.subr.bf16.mxu0 0
        %2236 = vmatpush1.bf16.msra.mxu0 0
        %2237 = vmatprep.subr.bf16.mxu0 0
        %2238 = vmatpush1.bf16.msra.mxu0 0
        %2239 = vmatprep.subr.bf16.mxu0 0
        %2240 = vmatpush1.bf16.msra.mxu0 0
        %2241 = vmatprep.subr.bf16.mxu0 0
        %2242 = vmatpush1.bf16.msra.mxu0 0
        %2243 = vmatprep.mubr.bf16.mxu0 0
        %2244 = vmatmul.mubr.bf16.gmra.mrb[0].mxu0 %v633
        %v2245 = vpop.f32.mrb[0].mxu0
        %v2246 = vadd.f32 0.0, %v2245
        %v2247 = vpop.f32.mrb[0].mxu0
        %v2248 = vadd.f32 0.0, %v2247
        %v2249 = vpop.f32.mrb[0].mxu0
        %v2250 = vadd.f32 0.0, %v2249
        %v2251 = vpop.f32.mrb[0].mxu0
        %v2252 = vadd.f32 0.0, %v2251
        %2253 = vmatprep.mubr.bf16.mxu0 0
        %2254 = vmatmul.mubr.bf16.gmra.mrb[0].mxu0 %v636
        %v2255 = vpop.f32.mrb[0].mxu0
        %v2256 = vadd.f32 0.0, %v2255
        %v2257 = vpop.f32.mrb[0].mxu0
        %v2258 = vadd.f32 0.0, %v2257
        %v2259 = vpop.f32.mrb[0].mxu0
        %v2260 = vadd.f32 0.0, %v2259
        %v2261 = vpop.f32.mrb[0].mxu0
        %v2262 = vadd.f32 0.0, %v2261
        %2263 = vdwg.mxu0
        %v2264 = vmax.f32 %v2246, 0.0
        %v2265 = vmax.f32 %v2248, 0.0
        %v2266 = vmax.f32 %v2250, 0.0
        %v2267 = vmax.f32 %v2252, 0.0
        %v2268 = vmax.f32 %v2256, 0.0
        %v2269 = vmax.f32 %v2258, 0.0
        %v2270 = vmax.f32 %v2260, 0.0
        %v2271 = vmax.f32 %v2262, 0.0
        %v2272 = vpack.c.bf16 %v2266, %v2264
        %v2273 = vpack.c.bf16 %v2267, %v2265
        %v2274 = vpack.c.bf16 %v2270, %v2268
        %v2275 = vpack.c.bf16 %v2271, %v2269
        %s2276 = scalar_lea.vmem %s4, 112
        %v2277 = vld [vmem:[%s2276] sm:$0xf]
        %v2278 = vld [vmem:[%s2276 + $0x4] sm:$0xf]
        %v2279 = vld [vmem:[%s2276 + $0x8] sm:$0xf]
        %v2280 = vld [vmem:[%s2276 + $0xc] sm:$0xf]
        %2281 = vset.pattern.permute.xlu0 9
        %2282 = vperm.xlu0 %2281, %v479
        %v2283 = vpop.permute.xlu0 %2282
        %2285 = vset.pattern.permute.xlu0 9
        %2286 = vperm.xlu0 %2285, %v480
        %v2287 = vpop.permute.xlu0 %2286
        %2289 = vset.pattern.permute.xlu0 9
        %2290 = vperm.xlu0 %2289, %v481
        %v2291 = vpop.permute.xlu0 %2290
        %2293 = vset.pattern.permute.xlu0 9
        %2294 = vperm.xlu0 %2293, %v482
        %v2295 = vpop.permute.xlu0 %2294
        %v2297 = vlaneseq
        %v2298 = vshrl.u32 %v2297, 7
        %v2299 = vsub.s32 5, %v2298
        %v2300 = vrot.slane %v434, %v2299
        %v2301 = vlaneseq
        %v2302 = vshrl.u32 %v2301, 7
        %v2303 = vsub.s32 5, %v2302
        %v2304 = vrot.slane %v435, %v2303
        %v2305 = vmul.f32 %v2283, %v2300
        %v2306 = vmul.f32 %v2283, %v2304
        %v2307 = vmul.f32 %v2287, %v2300
        %v2308 = vmul.f32 %v2287, %v2304
        %v2309 = vmul.f32 %v2291, %v2300
        %v2310 = vmul.f32 %v2291, %v2304
        %v2311 = vmul.f32 %v2295, %v2300
        %v2312 = vmul.f32 %v2295, %v2304
        %2313 = vset.pattern.permute.xlu0 10
        %2314 = vperm.xlu0 %2313, %v479
        %v2315 = vpop.permute.xlu0 %2314
        %2317 = vset.pattern.permute.xlu0 10
        %2318 = vperm.xlu0 %2317, %v480
        %v2319 = vpop.permute.xlu0 %2318
        %2321 = vset.pattern.permute.xlu0 10
        %2322 = vperm.xlu0 %2321, %v481
        %v2323 = vpop.permute.xlu0 %2322
        %2325 = vset.pattern.permute.xlu0 10
        %2326 = vperm.xlu0 %2325, %v482
        %v2327 = vpop.permute.xlu0 %2326
        %v2329 = vlaneseq
        %v2330 = vshrl.u32 %v2329, 7
        %v2331 = vsub.s32 6, %v2330
        %v2332 = vrot.slane %v434, %v2331
        %v2333 = vlaneseq
        %v2334 = vshrl.u32 %v2333, 7
        %v2335 = vsub.s32 6, %v2334
        %v2336 = vrot.slane %v435, %v2335
        %v2337 = vmul.f32 %v2315, %v2332
        %v2338 = vmul.f32 %v2315, %v2336
        %v2339 = vmul.f32 %v2319, %v2332
        %v2340 = vmul.f32 %v2319, %v2336
        %v2341 = vmul.f32 %v2323, %v2332
        %v2342 = vmul.f32 %v2323, %v2336
        %v2343 = vmul.f32 %v2327, %v2332
        %v2344 = vmul.f32 %v2327, %v2336
        %v2345 = vadd.f32 %v2305, %v2337
        %v2346 = vadd.f32 %v2306, %v2338
        %v2347 = vadd.f32 %v2307, %v2339
        %v2348 = vadd.f32 %v2308, %v2340
        %v2349 = vadd.f32 %v2309, %v2341
        %v2350 = vadd.f32 %v2310, %v2342
        %v2351 = vadd.f32 %v2311, %v2343
        %v2352 = vadd.f32 %v2312, %v2344
        %v2357 = vunpack.c.l.b16 %v2277
        %v2358 = vunpack.c.l.b16 %v2278
        %v2359 = vunpack.c.l.b16 %v2279
        %v2360 = vunpack.c.l.b16 %v2280
        %v2361 = vpack.c.b16 %v2358, %v2357
        %v2362 = vpack.c.b16 %v2360, %v2359
        %v2364 = vsel %vm545, %v2361, 0
        %v2367 = vsel %vm545, %v2362, 0
        %2369 = vmatprep.subr.bf16.mxu0 %v2273
        %2370 = vmatpush1.bf16.msra.mxu0 %v2272
        %2371 = vmatprep.subr.bf16.mxu0 %v2275
        %2372 = vmatpush1.bf16.msra.mxu0 %v2274
        %2373 = vmatprep.subr.bf16.mxu0 0
        %2374 = vmatpush1.bf16.msra.mxu0 0
        %2375 = vmatprep.subr.bf16.mxu0 0
        %2376 = vmatpush1.bf16.msra.mxu0 0
        %2377 = vmatprep.subr.bf16.mxu0 0
        %2378 = vmatpush1.bf16.msra.mxu0 0
        %2379 = vmatprep.subr.bf16.mxu0 0
        %2380 = vmatpush1.bf16.msra.mxu0 0
        %2381 = vmatprep.subr.bf16.mxu0 0
        %2382 = vmatpush1.bf16.msra.mxu0 0
        %2383 = vmatprep.subr.bf16.mxu0 0
        %2384 = vmatpush1.bf16.msra.mxu0 0
        %2385 = vmatprep.subr.bf16.mxu0 0
        %2386 = vmatpush1.bf16.msra.mxu0 0
        %2387 = vmatprep.subr.bf16.mxu0 0
        %2388 = vmatpush1.bf16.msra.mxu0 0
        %2389 = vmatprep.subr.bf16.mxu0 0
        %2390 = vmatpush1.bf16.msra.mxu0 0
        %2391 = vmatprep.subr.bf16.mxu0 0
        %2392 = vmatpush1.bf16.msra.mxu0 0
        %2393 = vmatprep.subr.bf16.mxu0 0
        %2394 = vmatpush1.bf16.msra.mxu0 0
        %2395 = vmatprep.subr.bf16.mxu0 0
        %2396 = vmatpush1.bf16.msra.mxu0 0
        %2397 = vmatprep.subr.bf16.mxu0 0
        %2398 = vmatpush1.bf16.msra.mxu0 0
        %2399 = vmatprep.subr.bf16.mxu0 0
        %2400 = vmatpush1.bf16.msra.mxu0 0
        %2401 = vmatprep.mubr.bf16.mxu0 0
        %2402 = vmatmul.mubr.bf16.gmra.mrb[0].mxu0 %v2364
        %v2403 = vpop.f32.mrb[0].mxu0
        %v2404 = vadd.f32 %v2345, %v2403
        %v2405 = vpop.f32.mrb[0].mxu0
        %v2406 = vadd.f32 %v2346, %v2405
        %v2407 = vpop.f32.mrb[0].mxu0
        %v2408 = vadd.f32 %v2347, %v2407
        %v2409 = vpop.f32.mrb[0].mxu0
        %v2410 = vadd.f32 %v2348, %v2409
        %2411 = vmatprep.mubr.bf16.mxu0 0
        %2412 = vmatmul.mubr.bf16.gmra.mrb[0].mxu0 %v2367
        %v2413 = vpop.f32.mrb[0].mxu0
        %v2414 = vadd.f32 %v2349, %v2413
        %v2415 = vpop.f32.mrb[0].mxu0
        %v2416 = vadd.f32 %v2350, %v2415
        %v2417 = vpop.f32.mrb[0].mxu0
        %v2418 = vadd.f32 %v2351, %v2417
        %v2419 = vpop.f32.mrb[0].mxu0
        %v2420 = vadd.f32 %v2352, %v2419
        %2421 = vdwg.mxu0
        %v2422 = vmax.f32 %v2404, 0.0
        %v2423 = vmax.f32 %v2406, 0.0
        %v2424 = vmax.f32 %v2408, 0.0
        %v2425 = vmax.f32 %v2410, 0.0
        %v2426 = vmax.f32 %v2414, 0.0
        %v2427 = vmax.f32 %v2416, 0.0
        %v2428 = vmax.f32 %v2418, 0.0
        %v2429 = vmax.f32 %v2420, 0.0
        %v2430 = vpack.c.bf16 %v2424, %v2422
        %v2431 = vpack.c.bf16 %v2425, %v2423
        %v2432 = vpack.c.bf16 %v2428, %v2426
        %v2433 = vpack.c.bf16 %v2429, %v2427
        %s2434 = scalar_lea.vmem %s4, 128
        %v2435 = vld [vmem:[%s2434] sm:$0xf]
        %v2436 = vld [vmem:[%s2434 + $0x4] sm:$0xf]
        %v2437 = vld [vmem:[%s2434 + $0x8] sm:$0xf]
        %v2438 = vld [vmem:[%s2434 + $0xc] sm:$0xf]
        %v2443 = vunpack.c.l.b16 %v2435
        %v2444 = vunpack.c.l.b16 %v2436
        %v2445 = vunpack.c.l.b16 %v2437
        %v2446 = vunpack.c.l.b16 %v2438
        %v2447 = vpack.c.b16 %v2444, %v2443
        %v2448 = vpack.c.b16 %v2446, %v2445
        %v2450 = vsel %vm545, %v2447, 0
        %v2453 = vsel %vm545, %v2448, 0
        %2455 = vmatprep.subr.bf16.mxu0 %v2431
        %2456 = vmatpush1.bf16.msra.mxu0 %v2430
        %2457 = vmatprep.subr.bf16.mxu0 %v2433
        %2458 = vmatpush1.bf16.msra.mxu0 %v2432
        %2459 = vmatprep.subr.bf16.mxu0 0
        %2460 = vmatpush1.bf16.msra.mxu0 0
        %2461 = vmatprep.subr.bf16.mxu0 0
        %2462 = vmatpush1.bf16.msra.mxu0 0
        %2463 = vmatprep.subr.bf16.mxu0 0
        %2464 = vmatpush1.bf16.msra.mxu0 0
        %2465 = vmatprep.subr.bf16.mxu0 0
        %2466 = vmatpush1.bf16.msra.mxu0 0
        %2467 = vmatprep.subr.bf16.mxu0 0
        %2468 = vmatpush1.bf16.msra.mxu0 0
        %2469 = vmatprep.subr.bf16.mxu0 0
        %2470 = vmatpush1.bf16.msra.mxu0 0
        %2471 = vmatprep.subr.bf16.mxu0 0
        %2472 = vmatpush1.bf16.msra.mxu0 0
        %2473 = vmatprep.subr.bf16.mxu0 0
        %2474 = vmatpush1.bf16.msra.mxu0 0
        %2475 = vmatprep.subr.bf16.mxu0 0
        %2476 = vmatpush1.bf16.msra.mxu0 0
        %2477 = vmatprep.subr.bf16.mxu0 0
        %2478 = vmatpush1.bf16.msra.mxu0 0
        %2479 = vmatprep.subr.bf16.mxu0 0
        %2480 = vmatpush1.bf16.msra.mxu0 0
        %2481 = vmatprep.subr.bf16.mxu0 0
        %2482 = vmatpush1.bf16.msra.mxu0 0
        %2483 = vmatprep.subr.bf16.mxu0 0
        %2484 = vmatpush1.bf16.msra.mxu0 0
        %2485 = vmatprep.subr.bf16.mxu0 0
        %2486 = vmatpush1.bf16.msra.mxu0 0
        %2487 = vmatprep.mubr.bf16.mxu0 0
        %2488 = vmatmul.mubr.bf16.gmra.mrb[0].mxu0 %v2450
        %v2489 = vpop.f32.mrb[0].mxu0
        %v2490 = vadd.f32 0.0, %v2489
        %v2491 = vpop.f32.mrb[0].mxu0
        %v2492 = vadd.f32 0.0, %v2491
        %v2493 = vpop.f32.mrb[0].mxu0
        %v2494 = vadd.f32 0.0, %v2493
        %v2495 = vpop.f32.mrb[0].mxu0
        %v2496 = vadd.f32 0.0, %v2495
        %2497 = vmatprep.mubr.bf16.mxu0 0
        %2498 = vmatmul.mubr.bf16.gmra.mrb[0].mxu0 %v2453
        %v2499 = vpop.f32.mrb[0].mxu0
        %v2500 = vadd.f32 0.0, %v2499
        %v2501 = vpop.f32.mrb[0].mxu0
        %v2502 = vadd.f32 0.0, %v2501
        %v2503 = vpop.f32.mrb[0].mxu0
        %v2504 = vadd.f32 0.0, %v2503
        %v2505 = vpop.f32.mrb[0].mxu0
        %v2506 = vadd.f32 0.0, %v2505
        %2507 = vdwg.mxu0
        %v2508 = vmax.f32 %v2490, 0.0
        %v2509 = vmax.f32 %v2492, 0.0
        %v2510 = vmax.f32 %v2494, 0.0
        %v2511 = vmax.f32 %v2496, 0.0
        %v2512 = vmax.f32 %v2500, 0.0
        %v2513 = vmax.f32 %v2502, 0.0
        %v2514 = vmax.f32 %v2504, 0.0
        %v2515 = vmax.f32 %v2506, 0.0
        %v2516 = vpack.c.bf16 %v2510, %v2508
        %v2517 = vpack.c.bf16 %v2511, %v2509
        %v2518 = vpack.c.bf16 %v2514, %v2512
        %v2519 = vpack.c.bf16 %v2515, %v2513
        %s2520 = scalar_lea.vmem %s5, 8
        %v2521 = vld [vmem:[%s2520] sm:$0xf]
        %v2522 = vld [vmem:[%s2520 + $0x4] sm:$0xf]
        %v2525 = vunpack.c.l.b16 %v2521
        %v2526 = vunpack.c.l.b16 %v2522
        %v2527 = vpack.c.b16 %v2526, %v2525
        %v2529 = vsel %vm545, %v2527, 0
        %2531 = vmatprep.subr.bf16.mxu0 %v2517
        %2532 = vmatpush1.bf16.msra.mxu0 %v2516
        %2533 = vmatprep.subr.bf16.mxu0 %v2519
        %2534 = vmatpush1.bf16.msra.mxu0 %v2518
        %2535 = vmatprep.subr.bf16.mxu0 0
        %2536 = vmatpush1.bf16.msra.mxu0 0
        %2537 = vmatprep.subr.bf16.mxu0 0
        %2538 = vmatpush1.bf16.msra.mxu0 0
        %2539 = vmatprep.subr.bf16.mxu0 0
        %2540 = vmatpush1.bf16.msra.mxu0 0
        %2541 = vmatprep.subr.bf16.mxu0 0
        %2542 = vmatpush1.bf16.msra.mxu0 0
        %2543 = vmatprep.subr.bf16.mxu0 0
        %2544 = vmatpush1.bf16.msra.mxu0 0
        %2545 = vmatprep.subr.bf16.mxu0 0
        %2546 = vmatpush1.bf16.msra.mxu0 0
        %2547 = vmatprep.subr.bf16.mxu0 0
        %2548 = vmatpush1.bf16.msra.mxu0 0
        %2549 = vmatprep.subr.bf16.mxu0 0
        %2550 = vmatpush1.bf16.msra.mxu0 0
        %2551 = vmatprep.subr.bf16.mxu0 0
        %2552 = vmatpush1.bf16.msra.mxu0 0
        %2553 = vmatprep.subr.bf16.mxu0 0
        %2554 = vmatpush1.bf16.msra.mxu0 0
        %2555 = vmatprep.subr.bf16.mxu0 0
        %2556 = vmatpush1.bf16.msra.mxu0 0
        %2557 = vmatprep.subr.bf16.mxu0 0
        %2558 = vmatpush1.bf16.msra.mxu0 0
        %2559 = vmatprep.subr.bf16.mxu0 0
        %2560 = vmatpush1.bf16.msra.mxu0 0
        %2561 = vmatprep.subr.bf16.mxu0 0
        %2562 = vmatpush1.bf16.msra.mxu0 0
        %2563 = vmatprep.mubr.bf16.mxu0 0
        %2564 = vmatmul.mubr.bf16.gmra.mrb[0].mxu0 %v2529
        %v2565 = vpop.f32.mrb[0].mxu0
        %v2566 = vadd.f32 0.0, %v2565
        %v2567 = vpop.f32.mrb[0].mxu0
        %v2568 = vadd.f32 0.0, %v2567
        %v2569 = vpop.f32.mrb[0].mxu0
        %v2570 = vadd.f32 0.0, %v2569
        %v2571 = vpop.f32.mrb[0].mxu0
        %v2572 = vadd.f32 0.0, %v2571
        %2573 = vdwg.mxu0
        %v2574 = vmax.f32 %v2566, 0.0
        %v2575 = vmax.f32 %v2568, 0.0
        %v2576 = vmax.f32 %v2570, 0.0
        %v2577 = vmax.f32 %v2572, 0.0
        %v2578 = vpack.c.bf16 %v2576, %v2574
        %v2579 = vpack.c.bf16 %v2577, %v2575
        %s2580 = scalar_lea.vmem [#allocation7], 4
        %v2581 = vld [vmem:[%s2580] sm:$0xf]
        %v2583 = vsel %vm1207, %v2581, 0
        %2585 = vmatprep.subr.bf16.mxu0 %v2579
        %2586 = vmatpush1.bf16.msra.mxu0 %v2578
        %2587 = vmatprep.subr.bf16.mxu0 0
        %2588 = vmatpush1.bf16.msra.mxu0 0
        %2589 = vmatprep.subr.bf16.mxu0 0
        %2590 = vmatpush1.bf16.msra.mxu0 0
        %2591 = vmatprep.subr.bf16.mxu0 0
        %2592 = vmatpush1.bf16.msra.mxu0 0
        %2593 = vmatprep.subr.bf16.mxu0 0
        %2594 = vmatpush1.bf16.msra.mxu0 0
        %2595 = vmatprep.subr.bf16.mxu0 0
        %2596 = vmatpush1.bf16.msra.mxu0 0
        %2597 = vmatprep.subr.bf16.mxu0 0
        %2598 = vmatpush1.bf16.msra.mxu0 0
        %2599 = vmatprep.subr.bf16.mxu0 0
        %2600 = vmatpush1.bf16.msra.mxu0 0
        %2601 = vmatprep.subr.bf16.mxu0 0
        %2602 = vmatpush1.bf16.msra.mxu0 0
        %2603 = vmatprep.subr.bf16.mxu0 0
        %2604 = vmatpush1.bf16.msra.mxu0 0
        %2605 = vmatprep.subr.bf16.mxu0 0
        %2606 = vmatpush1.bf16.msra.mxu0 0
        %2607 = vmatprep.subr.bf16.mxu0 0
        %2608 = vmatpush1.bf16.msra.mxu0 0
        %2609 = vmatprep.subr.bf16.mxu0 0
        %2610 = vmatpush1.bf16.msra.mxu0 0
        %2611 = vmatprep.subr.bf16.mxu0 0
        %2612 = vmatpush1.bf16.msra.mxu0 0
        %2613 = vmatprep.subr.bf16.mxu0 0
        %2614 = vmatpush1.bf16.msra.mxu0 0
        %2615 = vmatprep.subr.bf16.mxu0 0
        %2616 = vmatpush1.bf16.msra.mxu0 0
        %2617 = vmatprep.mubr.bf16.mxu0 0
        %2618 = vmatmul.mubr.bf16.gmra.mrb[0].mxu0 %v2583
        %v2619 = vpop.f32.mrb[0].mxu0
        %v2620 = vadd.f32 0.0, %v2619
        %v2621 = vpop.f32.mrb[0].mxu0
        %v2622 = vadd.f32 0.0, %v2621
        %v2623 = vpop.f32.mrb[0].mxu0
        %v2624 = vpop.f32.mrb[0].mxu0
        %2625 = vdwg.mxu0
        %v2626 = vxor.u32 %v2620, 2147483648
        %v2627 = vxor.u32 %v2622, 2147483648
        %v2628 = vmul.f32 %v2626, 1.442695
        %v2629 = vpow.pop %v2628
        %v2630 = vmul.f32 %v2627, 1.442695
        %v2631 = vpow.pop %v2630
        %v2632 = vadd.f32 %v2629, 1.0
        %v2633 = vadd.f32 %v2631, 1.0
        %v2634 = vrcp.pop %v2632
        %v2635 = vmul.f32 1.0, %v2634
        %v2636 = vrcp.pop %v2633
        %v2637 = vmul.f32 1.0, %v2636
        %v2638 = vmul.f32 %v2635, 5.0
        %v2639 = vmul.f32 %v2637, 5.0
        %v2640 = vadd.f32 %v2638, 0.0001
        %v2641 = vadd.f32 %v2639, 0.0001
        %v2642 = vadd.f32 %v2620, 0.0001
        %v2643 = vadd.f32 %v2622, 0.0001
        %v2644 = vmul.f32 %v2635, 0.1
        %v2645 = vmul.f32 %v2637, 0.1
        %v2646 = vmul.f32 %v2644, %v2644
        %v2647 = vmul.f32 %v2645, %v2645
        %v2648 = vsub.f32 1.0, %v2646
        %v2649 = vsub.f32 1.0, %v2647
        %v2650 = vrcp.pop %v2640
        %v2651 = vmul.f32 1.0, %v2650
        %v2652 = vrcp.pop %v2641
        %v2653 = vmul.f32 1.0, %v2652
        %v2654 = vrcp.pop %v2648
        %v2655 = vmul.f32 -0.5, %v2654
        %v2656 = vrcp.pop %v2649
        %v2657 = vmul.f32 -0.5, %v2656
        %v2660 = vrot.slane %v2651, 4
        %v2661 = vrot.slane %v2653, 4
        %v2664 = vmul.f32 %v2655, %v2660
        %v2665 = vmul.f32 %v2657, %v2661
        %v2666 = vmul.f32 %v2664, %v2660
        %v2667 = vmul.f32 %v2665, %v2661
        %v2668 = vmul.f32 %v2644, -2.0
        %v2669 = vmul.f32 %v2645, -2.0
        %v2670 = vmul.f32 %v2655, %v2668
        %v2671 = vmul.f32 %v2657, %v2669
        %v2672 = vmul.f32 %v2670, %v2660
        %v2673 = vmul.f32 %v2671, %v2661
        %v2674 = vrot.slane %v2651, 5
        %v2675 = vrot.slane %v2653, 5
        %v2678 = vmul.f32 %v2672, %v2674
        %v2679 = vmul.f32 %v2673, %v2675
        %v2680 = vmul.f32 %v2655, %v2674
        %v2681 = vmul.f32 %v2657, %v2675
        %v2682 = vmul.f32 %v2680, %v2674
        %v2683 = vmul.f32 %v2681, %v2675
        %2685 = vset.pattern.permute.xlu0 0
        %2686 = vperm.xlu0 %2685, %v436
        %v2687 = vpop.permute.xlu0 %2686
        %2690 = vset.pattern.permute.xlu0 0
        %2691 = vperm.xlu0 %2690, %v437
        %v2692 = vpop.permute.xlu0 %2691
        %2695 = vset.pattern.permute.xlu0 0
        %2696 = vperm.xlu0 %2695, %v438
        %v2697 = vpop.permute.xlu0 %2696
        %2700 = vset.pattern.permute.xlu0 0
        %2701 = vperm.xlu0 %2700, %v439
        %v2702 = vpop.permute.xlu0 %2701
        %2705 = vset.pattern.permute.xlu0 0
        %2706 = vperm.xlu0 %2705, %v440
        %v2707 = vpop.permute.xlu0 %2706
        %2710 = vset.pattern.permute.xlu0 0
        %2711 = vperm.xlu0 %2710, %v441
        %v2712 = vpop.permute.xlu0 %2711
        %2715 = vset.pattern.permute.xlu0 0
        %2716 = vperm.xlu0 %2715, %v442
        %v2717 = vpop.permute.xlu0 %2716
        %v2719 = vlaneseq
        %v2720 = vshrl.u32 %v2719, 7
        %v2721 = vsub.s32 2, %v2720
        %v2722 = vrot.slane %v2642, %v2721
        %v2723 = vlaneseq
        %v2724 = vshrl.u32 %v2723, 7
        %v2725 = vsub.s32 2, %v2724
        %v2726 = vrot.slane %v2643, %v2725
        %v2727 = vsub.f32 %v2687, %v2722
        %v2728 = vsub.f32 %v2687, %v2726
        %v2729 = vsub.f32 %v2692, %v2722
        %v2730 = vsub.f32 %v2692, %v2726
        %v2731 = vsub.f32 %v2697, %v2722
        %v2732 = vsub.f32 %v2697, %v2726
        %v2733 = vsub.f32 %v2702, %v2722
        %v2734 = vsub.f32 %v2702, %v2726
        %v2735 = vsub.f32 %v2707, %v2722
        %v2736 = vsub.f32 %v2707, %v2726
        %v2737 = vsub.f32 %v2712, %v2722
        %v2738 = vsub.f32 %v2712, %v2726
        %v2739 = vsub.f32 %v2717, %v2722
        %v2740 = vsub.f32 %v2717, %v2726
        %2742 = vset.pattern.permute.xlu0 0
        %2743 = vperm.xlu0 %2742, %v443
        %v2744 = vpop.permute.xlu0 %2743
        %2747 = vset.pattern.permute.xlu0 0
        %2748 = vperm.xlu0 %2747, %v444
        %v2749 = vpop.permute.xlu0 %2748
        %2752 = vset.pattern.permute.xlu0 0
        %2753 = vperm.xlu0 %2752, %v445
        %v2754 = vpop.permute.xlu0 %2753
        %2757 = vset.pattern.permute.xlu0 0
        %2758 = vperm.xlu0 %2757, %v446
        %v2759 = vpop.permute.xlu0 %2758
        %2762 = vset.pattern.permute.xlu0 0
        %2763 = vperm.xlu0 %2762, %v447
        %v2764 = vpop.permute.xlu0 %2763
        %2767 = vset.pattern.permute.xlu0 0
        %2768 = vperm.xlu0 %2767, %v448
        %v2769 = vpop.permute.xlu0 %2768
        %2772 = vset.pattern.permute.xlu0 0
        %2773 = vperm.xlu0 %2772, %v449
        %v2774 = vpop.permute.xlu0 %2773
        %v2776 = vlaneseq
        %v2777 = vshrl.u32 %v2776, 7
        %v2778 = vsub.s32 3, %v2777
        %v2779 = vrot.slane %v2642, %v2778
        %v2780 = vlaneseq
        %v2781 = vshrl.u32 %v2780, 7
        %v2782 = vsub.s32 3, %v2781
        %v2783 = vrot.slane %v2643, %v2782
        %v2784 = vsub.f32 %v2744, %v2779
        %v2785 = vsub.f32 %v2744, %v2783
        %v2786 = vsub.f32 %v2749, %v2779
        %v2787 = vsub.f32 %v2749, %v2783
        %v2788 = vsub.f32 %v2754, %v2779
        %v2789 = vsub.f32 %v2754, %v2783
        %v2790 = vsub.f32 %v2759, %v2779
        %v2791 = vsub.f32 %v2759, %v2783
        %v2792 = vsub.f32 %v2764, %v2779
        %v2793 = vsub.f32 %v2764, %v2783
        %v2794 = vsub.f32 %v2769, %v2779
        %v2795 = vsub.f32 %v2769, %v2783
        %v2796 = vsub.f32 %v2774, %v2779
        %v2797 = vsub.f32 %v2774, %v2783
        %v2798 = vmul.f32 %v2727, %v2727
        %v2799 = vmul.f32 %v2728, %v2728
        %v2800 = vmul.f32 %v2729, %v2729
        %v2801 = vmul.f32 %v2730, %v2730
        %v2802 = vmul.f32 %v2731, %v2731
        %v2803 = vmul.f32 %v2732, %v2732
        %v2804 = vmul.f32 %v2733, %v2733
        %v2805 = vmul.f32 %v2734, %v2734
        %v2806 = vmul.f32 %v2735, %v2735
        %v2807 = vmul.f32 %v2736, %v2736
        %v2808 = vmul.f32 %v2737, %v2737
        %v2809 = vmul.f32 %v2738, %v2738
        %v2810 = vmul.f32 %v2739, %v2739
        %v2811 = vmul.f32 %v2740, %v2740
        %v2812 = vlaneseq
        %v2813 = vshrl.u32 %v2812, 7
        %v2814 = vsub.s32 4, %v2813
        %v2815 = vrot.slane %v2666, %v2814
        %v2816 = vlaneseq
        %v2817 = vshrl.u32 %v2816, 7
        %v2818 = vsub.s32 4, %v2817
        %v2819 = vrot.slane %v2667, %v2818
        %v2820 = vmul.f32 %v2798, %v2815
        %v2821 = vmul.f32 %v2799, %v2819
        %v2822 = vmul.f32 %v2800, %v2815
        %v2823 = vmul.f32 %v2801, %v2819
        %v2824 = vmul.f32 %v2802, %v2815
        %v2825 = vmul.f32 %v2803, %v2819
        %v2826 = vmul.f32 %v2804, %v2815
        %v2827 = vmul.f32 %v2805, %v2819
        %v2828 = vmul.f32 %v2806, %v2815
        %v2829 = vmul.f32 %v2807, %v2819
        %v2830 = vmul.f32 %v2808, %v2815
        %v2831 = vmul.f32 %v2809, %v2819
        %v2832 = vmul.f32 %v2810, %v2815
        %v2833 = vmul.f32 %v2811, %v2819
        %v2834 = vmul.f32 %v2727, %v2784
        %v2835 = vmul.f32 %v2728, %v2785
        %v2836 = vmul.f32 %v2729, %v2786
        %v2837 = vmul.f32 %v2730, %v2787
        %v2838 = vmul.f32 %v2731, %v2788
        %v2839 = vmul.f32 %v2732, %v2789
        %v2840 = vmul.f32 %v2733, %v2790
        %v2841 = vmul.f32 %v2734, %v2791
        %v2842 = vmul.f32 %v2735, %v2792
        %v2843 = vmul.f32 %v2736, %v2793
        %v2844 = vmul.f32 %v2737, %v2794
        %v2845 = vmul.f32 %v2738, %v2795
        %v2846 = vmul.f32 %v2739, %v2796
        %v2847 = vmul.f32 %v2740, %v2797
        %v2848 = vlaneseq
        %v2849 = vshrl.u32 %v2848, 7
        %v2850 = vsub.s32 4, %v2849
        %v2851 = vrot.slane %v2678, %v2850
        %v2852 = vlaneseq
        %v2853 = vshrl.u32 %v2852, 7
        %v2854 = vsub.s32 4, %v2853
        %v2855 = vrot.slane %v2679, %v2854
        %v2856 = vmul.f32 %v2834, %v2851
        %v2857 = vmul.f32 %v2835, %v2855
        %v2858 = vmul.f32 %v2836, %v2851
        %v2859 = vmul.f32 %v2837, %v2855
        %v2860 = vmul.f32 %v2838, %v2851
        %v2861 = vmul.f32 %v2839, %v2855
        %v2862 = vmul.f32 %v2840, %v2851
        %v2863 = vmul.f32 %v2841, %v2855
        %v2864 = vmul.f32 %v2842, %v2851
        %v2865 = vmul.f32 %v2843, %v2855
        %v2866 = vmul.f32 %v2844, %v2851
        %v2867 = vmul.f32 %v2845, %v2855
        %v2868 = vmul.f32 %v2846, %v2851
        %v2869 = vmul.f32 %v2847, %v2855
        %v2870 = vadd.f32 %v2820, %v2856
        %v2871 = vadd.f32 %v2821, %v2857
        %v2872 = vadd.f32 %v2822, %v2858
        %v2873 = vadd.f32 %v2823, %v2859
        %v2874 = vadd.f32 %v2824, %v2860
        %v2875 = vadd.f32 %v2825, %v2861
        %v2876 = vadd.f32 %v2826, %v2862
        %v2877 = vadd.f32 %v2827, %v2863
        %v2878 = vadd.f32 %v2828, %v2864
        %v2879 = vadd.f32 %v2829, %v2865
        %v2880 = vadd.f32 %v2830, %v2866
        %v2881 = vadd.f32 %v2831, %v2867
        %v2882 = vadd.f32 %v2832, %v2868
        %v2883 = vadd.f32 %v2833, %v2869
        %v2884 = vmul.f32 %v2784, %v2784
        %v2885 = vmul.f32 %v2785, %v2785
        %v2886 = vmul.f32 %v2786, %v2786
        %v2887 = vmul.f32 %v2787, %v2787
        %v2888 = vmul.f32 %v2788, %v2788
        %v2889 = vmul.f32 %v2789, %v2789
        %v2890 = vmul.f32 %v2790, %v2790
        %v2891 = vmul.f32 %v2791, %v2791
        %v2892 = vmul.f32 %v2792, %v2792
        %v2893 = vmul.f32 %v2793, %v2793
        %v2894 = vmul.f32 %v2794, %v2794
        %v2895 = vmul.f32 %v2795, %v2795
        %v2896 = vmul.f32 %v2796, %v2796
        %v2897 = vmul.f32 %v2797, %v2797
        %v2898 = vlaneseq
        %v2899 = vshrl.u32 %v2898, 7
        %v2900 = vsub.s32 4, %v2899
        %v2901 = vrot.slane %v2682, %v2900
        %v2902 = vlaneseq
        %v2903 = vshrl.u32 %v2902, 7
        %v2904 = vsub.s32 4, %v2903
        %v2905 = vrot.slane %v2683, %v2904
        %v2906 = vmul.f32 %v2884, %v2901
        %v2907 = vmul.f32 %v2885, %v2905
        %v2908 = vmul.f32 %v2886, %v2901
        %v2909 = vmul.f32 %v2887, %v2905
        %v2910 = vmul.f32 %v2888, %v2901
        %v2911 = vmul.f32 %v2889, %v2905
        %v2912 = vmul.f32 %v2890, %v2901
        %v2913 = vmul.f32 %v2891, %v2905
        %v2914 = vmul.f32 %v2892, %v2901
        %v2915 = vmul.f32 %v2893, %v2905
        %v2916 = vmul.f32 %v2894, %v2901
        %v2917 = vmul.f32 %v2895, %v2905
        %v2918 = vmul.f32 %v2896, %v2901
        %v2919 = vmul.f32 %v2897, %v2905
        %v2920 = vadd.f32 %v2870, %v2906
        %v2921 = vadd.f32 %v2871, %v2907
        %v2922 = vadd.f32 %v2872, %v2908
        %v2923 = vadd.f32 %v2873, %v2909
        %v2924 = vadd.f32 %v2874, %v2910
        %v2925 = vadd.f32 %v2875, %v2911
        %v2926 = vadd.f32 %v2876, %v2912
        %v2927 = vadd.f32 %v2877, %v2913
        %v2928 = vadd.f32 %v2878, %v2914
        %v2929 = vadd.f32 %v2879, %v2915
        %v2930 = vadd.f32 %v2880, %v2916
        %v2931 = vadd.f32 %v2881, %v2917
        %v2932 = vadd.f32 %v2882, %v2918
        %v2933 = vadd.f32 %v2883, %v2919
        %v2934 = vmul.f32 %v2920, 1.442695
        %v2935 = vpow.pop %v2934
        %v2936 = vmul.f32 %v2921, 1.442695
        %v2937 = vpow.pop %v2936
        %v2938 = vmul.f32 %v2922, 1.442695
        %v2939 = vpow.pop %v2938
        %v2940 = vmul.f32 %v2923, 1.442695
        %v2941 = vpow.pop %v2940
        %v2942 = vmul.f32 %v2924, 1.442695
        %v2943 = vpow.pop %v2942
        %v2944 = vmul.f32 %v2925, 1.442695
        %v2945 = vpow.pop %v2944
        %v2946 = vmul.f32 %v2926, 1.442695
        %v2947 = vpow.pop %v2946
        %v2948 = vmul.f32 %v2927, 1.442695
        %v2949 = vpow.pop %v2948
        %v2950 = vmul.f32 %v2928, 1.442695
        %v2951 = vpow.pop %v2950
        %v2952 = vmul.f32 %v2929, 1.442695
        %v2953 = vpow.pop %v2952
        %v2954 = vmul.f32 %v2930, 1.442695
        %v2955 = vpow.pop %v2954
        %v2956 = vmul.f32 %v2931, 1.442695
        %v2957 = vpow.pop %v2956
        %v2958 = vmul.f32 %v2932, 1.442695
        %v2959 = vpow.pop %v2958
        %v2960 = vmul.f32 %v2933, 1.442695
        %v2961 = vpow.pop %v2960
        %v2962 = vadd.f32 %v2935, %v2939
        %v2963 = vadd.f32 %v2962, %v2943
        %v2964 = vadd.f32 %v2963, %v2947
        %v2965 = vadd.f32 %v2964, %v2951
        %v2966 = vadd.f32 %v2965, %v2955
        %v2967 = vadd.f32 %v2966, %v2959
        %v2968 = vrot.slane %v2967, 4
        %v2969 = vadd.f32 %v2967, %v2968
        %v2970 = vrot.slane %v2969, 2
        %v2971 = vadd.f32 %v2969, %v2970
        %v2972 = vrot.slane %v2971, 1
        %v2973 = vadd.f32 %v2971, %v2972
        %v2974 = vadd.f32 %v2937, %v2941
        %v2975 = vadd.f32 %v2974, %v2945
        %v2976 = vadd.f32 %v2975, %v2949
        %v2977 = vadd.f32 %v2976, %v2953
        %v2978 = vadd.f32 %v2977, %v2957
        %v2979 = vadd.f32 %v2978, %v2961
        %v2980 = vrot.slane %v2979, 4
        %v2981 = vadd.f32 %v2979, %v2980
        %v2982 = vrot.slane %v2981, 2
        %v2983 = vadd.f32 %v2981, %v2982
        %v2984 = vrot.slane %v2983, 1
        %v2985 = vadd.f32 %v2983, %v2984
        %v2988 = vrot.slane %v2640, 1
        %v2989 = vrot.slane %v2641, 1
        %v2992 = vmul.f32 %v2640, %v2988
        %v2993 = vmul.f32 %v2641, %v2989
        %v2994 = vmul.f32 %v2992, 6.283185e-05
        %v2995 = vmul.f32 %v2993, 6.283185e-05
        %v2996 = vrsqrt.pop %v2648
        %v2997 = vmul.f32 %v2648, %v2996
        %vm2998 = vcmp.eq.f32.partialorder %v2648, inf
        %v2999 = vsel %vm2998, %v2648, %v2997
        %vm3000 = vcmp.eq.f32.partialorder %v2648, 0.0
        %v3001 = vand.u32 %v2648, 2147483648
        %v3002 = vsel %vm3000, %v3001, %v2999
        %v3003 = vrsqrt.pop %v2649
        %v3004 = vmul.f32 %v2649, %v3003
        %vm3005 = vcmp.eq.f32.partialorder %v2649, inf
        %v3006 = vsel %vm3005, %v2649, %v3004
        %vm3007 = vcmp.eq.f32.partialorder %v2649, 0.0
        %v3008 = vand.u32 %v2649, 2147483648
        %v3009 = vsel %vm3007, %v3008, %v3006
        %v3012 = vrot.slane %v3002, 4
        %v3013 = vrot.slane %v3009, 4
        %v3016 = vmul.f32 %v2994, %v3012
        %v3017 = vmul.f32 %v2995, %v3013
        %v3018 = vadd.f32 %v2973, %v3016
        %v3019 = vadd.f32 %v2985, %v3017
        %v3020 = vrcp.pop %v3018
        %v3021 = vmul.f32 1.0, %v3020
        %v3022 = vrcp.pop %v3019
        %v3023 = vmul.f32 1.0, %v3022
        %v3024 = vmul.f32 %v1470, %v2935
        %v3025 = vmul.f32 %v1471, %v2937
        %v3026 = vmul.f32 %v1472, %v2939
        %v3027 = vmul.f32 %v1473, %v2941
        %v3028 = vmul.f32 %v1474, %v2943
        %v3029 = vmul.f32 %v1475, %v2945
        %v3030 = vmul.f32 %v1476, %v2947
        %v3031 = vmul.f32 %v1477, %v2949
        %v3032 = vmul.f32 %v1478, %v2951
        %v3033 = vmul.f32 %v1479, %v2953
        %v3034 = vmul.f32 %v1480, %v2955
        %v3035 = vmul.f32 %v1481, %v2957
        %v3036 = vmul.f32 %v1482, %v2959
        %v3037 = vmul.f32 %v1483, %v2961
        %v3038 = vadd.f32 %v3024, %v3026
        %v3039 = vadd.f32 %v3038, %v3028
        %v3040 = vadd.f32 %v3039, %v3030
        %v3041 = vadd.f32 %v3040, %v3032
        %v3042 = vadd.f32 %v3041, %v3034
        %v3043 = vadd.f32 %v3042, %v3036
        %v3044 = vrot.slane %v3043, 4
        %v3045 = vadd.f32 %v3043, %v3044
        %v3046 = vrot.slane %v3045, 2
        %v3047 = vadd.f32 %v3045, %v3046
        %v3048 = vrot.slane %v3047, 1
        %v3049 = vadd.f32 %v3047, %v3048
        %v3050 = vadd.f32 %v3025, %v3027
        %v3051 = vadd.f32 %v3050, %v3029
        %v3052 = vadd.f32 %v3051, %v3031
        %v3053 = vadd.f32 %v3052, %v3033
        %v3054 = vadd.f32 %v3053, %v3035
        %v3055 = vadd.f32 %v3054, %v3037
        %v3056 = vrot.slane %v3055, 4
        %v3057 = vadd.f32 %v3055, %v3056
        %v3058 = vrot.slane %v3057, 2
        %v3059 = vadd.f32 %v3057, %v3058
        %v3060 = vrot.slane %v3059, 1
        %v3061 = vadd.f32 %v3059, %v3060
        %v3062 = vmul.f32 %v1523, %v2935
        %v3063 = vmul.f32 %v1524, %v2937
        %v3064 = vmul.f32 %v1525, %v2939
        %v3065 = vmul.f32 %v1526, %v2941
        %v3066 = vmul.f32 %v1527, %v2943
        %v3067 = vmul.f32 %v1528, %v2945
        %v3068 = vmul.f32 %v1529, %v2947
        %v3069 = vmul.f32 %v1530, %v2949
        %v3070 = vmul.f32 %v1531, %v2951
        %v3071 = vmul.f32 %v1532, %v2953
        %v3072 = vmul.f32 %v1533, %v2955
        %v3073 = vmul.f32 %v1534, %v2957
        %v3074 = vmul.f32 %v1535, %v2959
        %v3075 = vmul.f32 %v1536, %v2961
        %v3076 = vadd.f32 %v3062, %v3064
        %v3077 = vadd.f32 %v3076, %v3066
        %v3078 = vadd.f32 %v3077, %v3068
        %v3079 = vadd.f32 %v3078, %v3070
        %v3080 = vadd.f32 %v3079, %v3072
        %v3081 = vadd.f32 %v3080, %v3074
        %v3082 = vrot.slane %v3081, 4
        %v3083 = vadd.f32 %v3081, %v3082
        %v3084 = vrot.slane %v3083, 2
        %v3085 = vadd.f32 %v3083, %v3084
        %v3086 = vrot.slane %v3085, 1
        %v3087 = vadd.f32 %v3085, %v3086
        %v3088 = vadd.f32 %v3063, %v3065
        %v3089 = vadd.f32 %v3088, %v3067
        %v3090 = vadd.f32 %v3089, %v3069
        %v3091 = vadd.f32 %v3090, %v3071
        %v3092 = vadd.f32 %v3091, %v3073
        %v3093 = vadd.f32 %v3092, %v3075
        %v3094 = vrot.slane %v3093, 4
        %v3095 = vadd.f32 %v3093, %v3094
        %v3096 = vrot.slane %v3095, 2
        %v3097 = vadd.f32 %v3095, %v3096
        %v3098 = vrot.slane %v3097, 1
        %v3099 = vadd.f32 %v3097, %v3098
        %v3100 = vmul.f32 %v1576, %v2935
        %v3101 = vmul.f32 %v1577, %v2937
        %v3102 = vmul.f32 %v1578, %v2939
        %v3103 = vmul.f32 %v1579, %v2941
        %v3104 = vmul.f32 %v1580, %v2943
        %v3105 = vmul.f32 %v1581, %v2945
        %v3106 = vmul.f32 %v1582, %v2947
        %v3107 = vmul.f32 %v1583, %v2949
        %v3108 = vmul.f32 %v1584, %v2951
        %v3109 = vmul.f32 %v1585, %v2953
        %v3110 = vmul.f32 %v1586, %v2955
        %v3111 = vmul.f32 %v1587, %v2957
        %v3112 = vmul.f32 %v1588, %v2959
        %v3113 = vmul.f32 %v1589, %v2961
        %v3114 = vadd.f32 %v3100, %v3102
        %v3115 = vadd.f32 %v3114, %v3104
        %v3116 = vadd.f32 %v3115, %v3106
        %v3117 = vadd.f32 %v3116, %v3108
        %v3118 = vadd.f32 %v3117, %v3110
        %v3119 = vadd.f32 %v3118, %v3112
        %v3120 = vrot.slane %v3119, 4
        %v3121 = vadd.f32 %v3119, %v3120
        %v3122 = vrot.slane %v3121, 2
        %v3123 = vadd.f32 %v3121, %v3122
        %v3124 = vrot.slane %v3123, 1
        %v3125 = vadd.f32 %v3123, %v3124
        %v3126 = vadd.f32 %v3101, %v3103
        %v3127 = vadd.f32 %v3126, %v3105
        %v3128 = vadd.f32 %v3127, %v3107
        %v3129 = vadd.f32 %v3128, %v3109
        %v3130 = vadd.f32 %v3129, %v3111
        %v3131 = vadd.f32 %v3130, %v3113
        %v3132 = vrot.slane %v3131, 4
        %v3133 = vadd.f32 %v3131, %v3132
        %v3134 = vrot.slane %v3133, 2
        %v3135 = vadd.f32 %v3133, %v3134
        %v3136 = vrot.slane %v3135, 1
        %v3137 = vadd.f32 %v3135, %v3136
        %v3138 = vsel %vm1628, %v3049, %v3087
        %v3139 = vsel %vm1628, %v3061, %v3099
        %v3140 = vsel %vm1631, %v3138, %v3125
        %v3141 = vsel %vm1631, %v3139, %v3137
        %v3142 = vlaneseq
        %v3143 = vshrl.u32 %v3142, 7
        %v3144 = vsub.s32 0, %v3143
        %v3145 = vrot.slane %v3021, %v3144
        %v3146 = vlaneseq
        %v3147 = vshrl.u32 %v3146, 7
        %v3148 = vsub.s32 0, %v3147
        %v3149 = vrot.slane %v3023, %v3148
        %v3150 = vmul.f32 %v3140, %v3145
        %v3151 = vmul.f32 %v3141, %v3149
        %s3152 = scalar_lea.vmem %s4, 144
        %v3153 = vld [vmem:[%s3152] sm:$0xf]
        %v3154 = vld [vmem:[%s3152 + $0x4] sm:$0xf]
        %v3155 = vld [vmem:[%s3152 + $0x8] sm:$0xf]
        %v3156 = vld [vmem:[%s3152 + $0xc] sm:$0xf]
        %v3161 = vunpack.c.l.b16 %v3153
        %v3162 = vunpack.c.l.b16 %v3154
        %v3163 = vunpack.c.l.b16 %v3155
        %v3164 = vunpack.c.l.b16 %v3156
        %v3165 = vpack.c.b16 %v3162, %v3161
        %v3166 = vpack.c.b16 %v3164, %v3163
        %v3168 = vsel %vm545, %v3165, 0
        %v3171 = vsel %vm545, %v3166, 0
        %3173 = vmatprep.subr.bf16.mxu0 %v2517
        %3174 = vmatpush1.bf16.msra.mxu0 %v2516
        %3175 = vmatprep.subr.bf16.mxu0 %v2519
        %3176 = vmatpush1.bf16.msra.mxu0 %v2518
        %3177 = vmatprep.subr.bf16.mxu0 0
        %3178 = vmatpush1.bf16.msra.mxu0 0
        %3179 = vmatprep.subr.bf16.mxu0 0
        %3180 = vmatpush1.bf16.msra.mxu0 0
        %3181 = vmatprep.subr.bf16.mxu0 0
        %3182 = vmatpush1.bf16.msra.mxu0 0
        %3183 = vmatprep.subr.bf16.mxu0 0
        %3184 = vmatpush1.bf16.msra.mxu0 0
        %3185 = vmatprep.subr.bf16.mxu0 0
        %3186 = vmatpush1.bf16.msra.mxu0 0
        %3187 = vmatprep.subr.bf16.mxu0 0
        %3188 = vmatpush1.bf16.msra.mxu0 0
        %3189 = vmatprep.subr.bf16.mxu0 0
        %3190 = vmatpush1.bf16.msra.mxu0 0
        %3191 = vmatprep.subr.bf16.mxu0 0
        %3192 = vmatpush1.bf16.msra.mxu0 0
        %3193 = vmatprep.subr.bf16.mxu0 0
        %3194 = vmatpush1.bf16.msra.mxu0 0
        %3195 = vmatprep.subr.bf16.mxu0 0
        %3196 = vmatpush1.bf16.msra.mxu0 0
        %3197 = vmatprep.subr.bf16.mxu0 0
        %3198 = vmatpush1.bf16.msra.mxu0 0
        %3199 = vmatprep.subr.bf16.mxu0 0
        %3200 = vmatpush1.bf16.msra.mxu0 0
        %3201 = vmatprep.subr.bf16.mxu0 0
        %3202 = vmatpush1.bf16.msra.mxu0 0
        %3203 = vmatprep.subr.bf16.mxu0 0
        %3204 = vmatpush1.bf16.msra.mxu0 0
        %3205 = vmatprep.mubr.bf16.mxu0 0
        %3206 = vmatmul.mubr.bf16.gmra.mrb[0].mxu0 %v3168
        %v3207 = vpop.f32.mrb[0].mxu0
        %v3208 = vadd.f32 0.0, %v3207
        %v3209 = vpop.f32.mrb[0].mxu0
        %v3210 = vadd.f32 0.0, %v3209
        %v3211 = vpop.f32.mrb[0].mxu0
        %v3212 = vadd.f32 0.0, %v3211
        %v3213 = vpop.f32.mrb[0].mxu0
        %v3214 = vadd.f32 0.0, %v3213
        %3215 = vmatprep.mubr.bf16.mxu0 0
        %3216 = vmatmul.mubr.bf16.gmra.mrb[0].mxu0 %v3171
        %v3217 = vpop.f32.mrb[0].mxu0
        %v3218 = vadd.f32 0.0, %v3217
        %v3219 = vpop.f32.mrb[0].mxu0
        %v3220 = vadd.f32 0.0, %v3219
        %v3221 = vpop.f32.mrb[0].mxu0
        %v3222 = vadd.f32 0.0, %v3221
        %v3223 = vpop.f32.mrb[0].mxu0
        %v3224 = vadd.f32 0.0, %v3223
        %3225 = vdwg.mxu0
        %v3226 = vmax.f32 %v3208, 0.0
        %v3227 = vmax.f32 %v3210, 0.0
        %v3228 = vmax.f32 %v3212, 0.0
        %v3229 = vmax.f32 %v3214, 0.0
        %v3230 = vmax.f32 %v3218, 0.0
        %v3231 = vmax.f32 %v3220, 0.0
        %v3232 = vmax.f32 %v3222, 0.0
        %v3233 = vmax.f32 %v3224, 0.0
        %v3234 = vpack.c.bf16 %v3228, %v3226
        %v3235 = vpack.c.bf16 %v3229, %v3227
        %v3236 = vpack.c.bf16 %v3232, %v3230
        %v3237 = vpack.c.bf16 %v3233, %v3231
        %3238 = vmatprep.subr.bf16.mxu0 %v3235
        %3239 = vmatpush1.bf16.msra.mxu0 %v3234
        %3240 = vmatprep.subr.bf16.mxu0 %v3237
        %3241 = vmatpush1.bf16.msra.mxu0 %v3236
        %3242 = vmatprep.subr.bf16.mxu0 0
        %3243 = vmatpush1.bf16.msra.mxu0 0
        %3244 = vmatprep.subr.bf16.mxu0 0
        %3245 = vmatpush1.bf16.msra.mxu0 0
        %3246 = vmatprep.subr.bf16.mxu0 0
        %3247 = vmatpush1.bf16.msra.mxu0 0
        %3248 = vmatprep.subr.bf16.mxu0 0
        %3249 = vmatpush1.bf16.msra.mxu0 0
        %3250 = vmatprep.subr.bf16.mxu0 0
        %3251 = vmatpush1.bf16.msra.mxu0 0
        %3252 = vmatprep.subr.bf16.mxu0 0
        %3253 = vmatpush1.bf16.msra.mxu0 0
        %3254 = vmatprep.subr.bf16.mxu0 0
        %3255 = vmatpush1.bf16.msra.mxu0 0
        %3256 = vmatprep.subr.bf16.mxu0 0
        %3257 = vmatpush1.bf16.msra.mxu0 0
        %3258 = vmatprep.subr.bf16.mxu0 0
        %3259 = vmatpush1.bf16.msra.mxu0 0
        %3260 = vmatprep.subr.bf16.mxu0 0
        %3261 = vmatpush1.bf16.msra.mxu0 0
        %3262 = vmatprep.subr.bf16.mxu0 0
        %3263 = vmatpush1.bf16.msra.mxu0 0
        %3264 = vmatprep.subr.bf16.mxu0 0
        %3265 = vmatpush1.bf16.msra.mxu0 0
        %3266 = vmatprep.subr.bf16.mxu0 0
        %3267 = vmatpush1.bf16.msra.mxu0 0
        %3268 = vmatprep.subr.bf16.mxu0 0
        %3269 = vmatpush1.bf16.msra.mxu0 0
        %3270 = vmatprep.mubr.bf16.mxu0 0
        %3271 = vmatmul.mubr.bf16.gmra.mrb[0].mxu0 %v547
        %v3272 = vpop.f32.mrb[0].mxu0
        %v3273 = vadd.f32 0.0, %v3272
        %v3274 = vpop.f32.mrb[0].mxu0
        %v3275 = vadd.f32 0.0, %v3274
        %v3276 = vpop.f32.mrb[0].mxu0
        %v3277 = vadd.f32 0.0, %v3276
        %v3278 = vpop.f32.mrb[0].mxu0
        %v3279 = vadd.f32 0.0, %v3278
        %3280 = vmatprep.mubr.bf16.mxu0 0
        %3281 = vmatmul.mubr.bf16.gmra.mrb[0].mxu0 %v550
        %v3282 = vpop.f32.mrb[0].mxu0
        %v3283 = vadd.f32 0.0, %v3282
        %v3284 = vpop.f32.mrb[0].mxu0
        %v3285 = vadd.f32 0.0, %v3284
        %v3286 = vpop.f32.mrb[0].mxu0
        %v3287 = vadd.f32 0.0, %v3286
        %v3288 = vpop.f32.mrb[0].mxu0
        %v3289 = vadd.f32 0.0, %v3288
        %3290 = vdwg.mxu0
        %v3291 = vmax.f32 %v3273, 0.0
        %v3292 = vmax.f32 %v3275, 0.0
        %v3293 = vmax.f32 %v3277, 0.0
        %v3294 = vmax.f32 %v3279, 0.0
        %v3295 = vmax.f32 %v3283, 0.0
        %v3296 = vmax.f32 %v3285, 0.0
        %v3297 = vmax.f32 %v3287, 0.0
        %v3298 = vmax.f32 %v3289, 0.0
        %v3299 = vpack.c.bf16 %v3293, %v3291
        %v3300 = vpack.c.bf16 %v3294, %v3292
        %v3301 = vpack.c.bf16 %v3297, %v3295
        %v3302 = vpack.c.bf16 %v3298, %v3296
        %3303 = vmatprep.subr.bf16.mxu0 %v3300
        %3304 = vmatpush1.bf16.msra.mxu0 %v3299
        %3305 = vmatprep.subr.bf16.mxu0 %v3302
        %3306 = vmatpush1.bf16.msra.mxu0 %v3301
        %3307 = vmatprep.subr.bf16.mxu0 0
        %3308 = vmatpush1.bf16.msra.mxu0 0
        %3309 = vmatprep.subr.bf16.mxu0 0
        %3310 = vmatpush1.bf16.msra.mxu0 0
        %3311 = vmatprep.subr.bf16.mxu0 0
        %3312 = vmatpush1.bf16.msra.mxu0 0
        %3313 = vmatprep.subr.bf16.mxu0 0
        %3314 = vmatpush1.bf16.msra.mxu0 0
        %3315 = vmatprep.subr.bf16.mxu0 0
        %3316 = vmatpush1.bf16.msra.mxu0 0
        %3317 = vmatprep.subr.bf16.mxu0 0
        %3318 = vmatpush1.bf16.msra.mxu0 0
        %3319 = vmatprep.subr.bf16.mxu0 0
        %3320 = vmatpush1.bf16.msra.mxu0 0
        %3321 = vmatprep.subr.bf16.mxu0 0
        %3322 = vmatpush1.bf16.msra.mxu0 0
        %3323 = vmatprep.subr.bf16.mxu0 0
        %3324 = vmatpush1.bf16.msra.mxu0 0
        %3325 = vmatprep.subr.bf16.mxu0 0
        %3326 = vmatpush1.bf16.msra.mxu0 0
        %3327 = vmatprep.subr.bf16.mxu0 0
        %3328 = vmatpush1.bf16.msra.mxu0 0
        %3329 = vmatprep.subr.bf16.mxu0 0
        %3330 = vmatpush1.bf16.msra.mxu0 0
        %3331 = vmatprep.subr.bf16.mxu0 0
        %3332 = vmatpush1.bf16.msra.mxu0 0
        %3333 = vmatprep.subr.bf16.mxu0 0
        %3334 = vmatpush1.bf16.msra.mxu0 0
        %3335 = vmatprep.mubr.bf16.mxu0 0
        %3336 = vmatmul.mubr.bf16.gmra.mrb[0].mxu0 %v633
        %v3337 = vpop.f32.mrb[0].mxu0
        %v3338 = vadd.f32 0.0, %v3337
        %v3339 = vpop.f32.mrb[0].mxu0
        %v3340 = vadd.f32 0.0, %v3339
        %v3341 = vpop.f32.mrb[0].mxu0
        %v3342 = vadd.f32 0.0, %v3341
        %v3343 = vpop.f32.mrb[0].mxu0
        %v3344 = vadd.f32 0.0, %v3343
        %3345 = vmatprep.mubr.bf16.mxu0 0
        %3346 = vmatmul.mubr.bf16.gmra.mrb[0].mxu0 %v636
        %v3347 = vpop.f32.mrb[0].mxu0
        %v3348 = vadd.f32 0.0, %v3347
        %v3349 = vpop.f32.mrb[0].mxu0
        %v3350 = vadd.f32 0.0, %v3349
        %v3351 = vpop.f32.mrb[0].mxu0
        %v3352 = vadd.f32 0.0, %v3351
        %v3353 = vpop.f32.mrb[0].mxu0
        %v3354 = vadd.f32 0.0, %v3353
        %3355 = vdwg.mxu0
        %v3356 = vmax.f32 %v3338, 0.0
        %v3357 = vmax.f32 %v3340, 0.0
        %v3358 = vmax.f32 %v3342, 0.0
        %v3359 = vmax.f32 %v3344, 0.0
        %v3360 = vmax.f32 %v3348, 0.0
        %v3361 = vmax.f32 %v3350, 0.0
        %v3362 = vmax.f32 %v3352, 0.0
        %v3363 = vmax.f32 %v3354, 0.0
        %v3364 = vpack.c.bf16 %v3358, %v3356
        %v3365 = vpack.c.bf16 %v3359, %v3357
        %v3366 = vpack.c.bf16 %v3362, %v3360
        %v3367 = vpack.c.bf16 %v3363, %v3361
        %s3368 = scalar_lea.vmem %s4, 160
        %v3369 = vld [vmem:[%s3368] sm:$0xf]
        %v3370 = vld [vmem:[%s3368 + $0x4] sm:$0xf]
        %v3371 = vld [vmem:[%s3368 + $0x8] sm:$0xf]
        %v3372 = vld [vmem:[%s3368 + $0xc] sm:$0xf]
        %3373 = vset.pattern.permute.xlu0 11
        %3374 = vperm.xlu0 %3373, %v479
        %v3375 = vpop.permute.xlu0 %3374
        %3377 = vset.pattern.permute.xlu0 11
        %3378 = vperm.xlu0 %3377, %v480
        %v3379 = vpop.permute.xlu0 %3378
        %3381 = vset.pattern.permute.xlu0 11
        %3382 = vperm.xlu0 %3381, %v481
        %v3383 = vpop.permute.xlu0 %3382
        %3385 = vset.pattern.permute.xlu0 11
        %3386 = vperm.xlu0 %3385, %v482
        %v3387 = vpop.permute.xlu0 %3386
        %v3389 = vmul.f32 %v3375, %v1668
        %v3390 = vmul.f32 %v3375, %v1672
        %v3391 = vmul.f32 %v3379, %v1668
        %v3392 = vmul.f32 %v3379, %v1672
        %v3393 = vmul.f32 %v3383, %v1668
        %v3394 = vmul.f32 %v3383, %v1672
        %v3395 = vmul.f32 %v3387, %v1668
        %v3396 = vmul.f32 %v3387, %v1672
        %3397 = vset.pattern.permute.xlu0 12
        %3398 = vperm.xlu0 %3397, %v479
        %v3399 = vpop.permute.xlu0 %3398
        %3401 = vset.pattern.permute.xlu0 12
        %3402 = vperm.xlu0 %3401, %v480
        %v3403 = vpop.permute.xlu0 %3402
        %3405 = vset.pattern.permute.xlu0 12
        %3406 = vperm.xlu0 %3405, %v481
        %v3407 = vpop.permute.xlu0 %3406
        %3409 = vset.pattern.permute.xlu0 12
        %3410 = vperm.xlu0 %3409, %v482
        %v3411 = vpop.permute.xlu0 %3410
        %v3413 = vmul.f32 %v3399, %v1700
        %v3414 = vmul.f32 %v3399, %v1704
        %v3415 = vmul.f32 %v3403, %v1700
        %v3416 = vmul.f32 %v3403, %v1704
        %v3417 = vmul.f32 %v3407, %v1700
        %v3418 = vmul.f32 %v3407, %v1704
        %v3419 = vmul.f32 %v3411, %v1700
        %v3420 = vmul.f32 %v3411, %v1704
        %v3421 = vadd.f32 %v3389, %v3413
        %v3422 = vadd.f32 %v3390, %v3414
        %v3423 = vadd.f32 %v3391, %v3415
        %v3424 = vadd.f32 %v3392, %v3416
        %v3425 = vadd.f32 %v3393, %v3417
        %v3426 = vadd.f32 %v3394, %v3418
        %v3427 = vadd.f32 %v3395, %v3419
        %v3428 = vadd.f32 %v3396, %v3420
        %3429 = vset.pattern.permute.xlu0 13
        %3430 = vperm.xlu0 %3429, %v479
        %v3431 = vpop.permute.xlu0 %3430
        %3433 = vset.pattern.permute.xlu0 13
        %3434 = vperm.xlu0 %3433, %v480
        %v3435 = vpop.permute.xlu0 %3434
        %3437 = vset.pattern.permute.xlu0 13
        %3438 = vperm.xlu0 %3437, %v481
        %v3439 = vpop.permute.xlu0 %3438
        %3441 = vset.pattern.permute.xlu0 13
        %3442 = vperm.xlu0 %3441, %v482
        %v3443 = vpop.permute.xlu0 %3442
        %v3445 = vmul.f32 %v3431, %v1740
        %v3446 = vmul.f32 %v3431, %v1744
        %v3447 = vmul.f32 %v3435, %v1740
        %v3448 = vmul.f32 %v3435, %v1744
        %v3449 = vmul.f32 %v3439, %v1740
        %v3450 = vmul.f32 %v3439, %v1744
        %v3451 = vmul.f32 %v3443, %v1740
        %v3452 = vmul.f32 %v3443, %v1744
        %v3453 = vadd.f32 %v3421, %v3445
        %v3454 = vadd.f32 %v3422, %v3446
        %v3455 = vadd.f32 %v3423, %v3447
        %v3456 = vadd.f32 %v3424, %v3448
        %v3457 = vadd.f32 %v3425, %v3449
        %v3458 = vadd.f32 %v3426, %v3450
        %v3459 = vadd.f32 %v3427, %v3451
        %v3460 = vadd.f32 %v3428, %v3452
        %v3465 = vunpack.c.l.b16 %v3369
        %v3466 = vunpack.c.l.b16 %v3370
        %v3467 = vunpack.c.l.b16 %v3371
        %v3468 = vunpack.c.l.b16 %v3372
        %v3469 = vpack.c.b16 %v3466, %v3465
        %v3470 = vpack.c.b16 %v3468, %v3467
        %v3472 = vsel %vm545, %v3469, 0
        %v3475 = vsel %vm545, %v3470, 0
        %3477 = vmatprep.subr.bf16.mxu0 %v3365
        %3478 = vmatpush1.bf16.msra.mxu0 %v3364
        %3479 = vmatprep.subr.bf16.mxu0 %v3367
        %3480 = vmatpush1.bf16.msra.mxu0 %v3366
        %3481 = vmatprep.subr.bf16.mxu0 0
        %3482 = vmatpush1.bf16.msra.mxu0 0
        %3483 = vmatprep.subr.bf16.mxu0 0
        %3484 = vmatpush1.bf16.msra.mxu0 0
        %3485 = vmatprep.subr.bf16.mxu0 0
        %3486 = vmatpush1.bf16.msra.mxu0 0
        %3487 = vmatprep.subr.bf16.mxu0 0
        %3488 = vmatpush1.bf16.msra.mxu0 0
        %3489 = vmatprep.subr.bf16.mxu0 0
        %3490 = vmatpush1.bf16.msra.mxu0 0
        %3491 = vmatprep.subr.bf16.mxu0 0
        %3492 = vmatpush1.bf16.msra.mxu0 0
        %3493 = vmatprep.subr.bf16.mxu0 0
        %3494 = vmatpush1.bf16.msra.mxu0 0
        %3495 = vmatprep.subr.bf16.mxu0 0
        %3496 = vmatpush1.bf16.msra.mxu0 0
        %3497 = vmatprep.subr.bf16.mxu0 0
        %3498 = vmatpush1.bf16.msra.mxu0 0
        %3499 = vmatprep.subr.bf16.mxu0 0
        %3500 = vmatpush1.bf16.msra.mxu0 0
        %3501 = vmatprep.subr.bf16.mxu0 0
        %3502 = vmatpush1.bf16.msra.mxu0 0
        %3503 = vmatprep.subr.bf16.mxu0 0
        %3504 = vmatpush1.bf16.msra.mxu0 0
        %3505 = vmatprep.subr.bf16.mxu0 0
        %3506 = vmatpush1.bf16.msra.mxu0 0
        %3507 = vmatprep.subr.bf16.mxu0 0
        %3508 = vmatpush1.bf16.msra.mxu0 0
        %3509 = vmatprep.mubr.bf16.mxu0 0
        %3510 = vmatmul.mubr.bf16.gmra.mrb[0].mxu0 %v3472
        %v3511 = vpop.f32.mrb[0].mxu0
        %v3512 = vadd.f32 %v3453, %v3511
        %v3513 = vpop.f32.mrb[0].mxu0
        %v3514 = vadd.f32 %v3454, %v3513
        %v3515 = vpop.f32.mrb[0].mxu0
        %v3516 = vadd.f32 %v3455, %v3515
        %v3517 = vpop.f32.mrb[0].mxu0
        %v3518 = vadd.f32 %v3456, %v3517
        %3519 = vmatprep.mubr.bf16.mxu0 0
        %3520 = vmatmul.mubr.bf16.gmra.mrb[0].mxu0 %v3475
        %v3521 = vpop.f32.mrb[0].mxu0
        %v3522 = vadd.f32 %v3457, %v3521
        %v3523 = vpop.f32.mrb[0].mxu0
        %v3524 = vadd.f32 %v3458, %v3523
        %v3525 = vpop.f32.mrb[0].mxu0
        %v3526 = vadd.f32 %v3459, %v3525
        %v3527 = vpop.f32.mrb[0].mxu0
        %v3528 = vadd.f32 %v3460, %v3527
        %3529 = vdwg.mxu0
        %v3530 = vmax.f32 %v3512, 0.0
        %v3531 = vmax.f32 %v3514, 0.0
        %v3532 = vmax.f32 %v3516, 0.0
        %v3533 = vmax.f32 %v3518, 0.0
        %v3534 = vmax.f32 %v3522, 0.0
        %v3535 = vmax.f32 %v3524, 0.0
        %v3536 = vmax.f32 %v3526, 0.0
        %v3537 = vmax.f32 %v3528, 0.0
        %v3538 = vpack.c.bf16 %v3532, %v3530
        %v3539 = vpack.c.bf16 %v3533, %v3531
        %v3540 = vpack.c.bf16 %v3536, %v3534
        %v3541 = vpack.c.bf16 %v3537, %v3535
        %3542 = vmatprep.subr.bf16.mxu0 %v3539
        %3543 = vmatpush1.bf16.msra.mxu0 %v3538
        %3544 = vmatprep.subr.bf16.mxu0 %v3541
        %3545 = vmatpush1.bf16.msra.mxu0 %v3540
        %3546 = vmatprep.subr.bf16.mxu0 0
        %3547 = vmatpush1.bf16.msra.mxu0 0
        %3548 = vmatprep.subr.bf16.mxu0 0
        %3549 = vmatpush1.bf16.msra.mxu0 0
        %3550 = vmatprep.subr.bf16.mxu0 0
        %3551 = vmatpush1.bf16.msra.mxu0 0
        %3552 = vmatprep.subr.bf16.mxu0 0
        %3553 = vmatpush1.bf16.msra.mxu0 0
        %3554 = vmatprep.subr.bf16.mxu0 0
        %3555 = vmatpush1.bf16.msra.mxu0 0
        %3556 = vmatprep.subr.bf16.mxu0 0
        %3557 = vmatpush1.bf16.msra.mxu0 0
        %3558 = vmatprep.subr.bf16.mxu0 0
        %3559 = vmatpush1.bf16.msra.mxu0 0
        %3560 = vmatprep.subr.bf16.mxu0 0
        %3561 = vmatpush1.bf16.msra.mxu0 0
        %3562 = vmatprep.subr.bf16.mxu0 0
        %3563 = vmatpush1.bf16.msra.mxu0 0
        %3564 = vmatprep.subr.bf16.mxu0 0
        %3565 = vmatpush1.bf16.msra.mxu0 0
        %3566 = vmatprep.subr.bf16.mxu0 0
        %3567 = vmatpush1.bf16.msra.mxu0 0
        %3568 = vmatprep.subr.bf16.mxu0 0
        %3569 = vmatpush1.bf16.msra.mxu0 0
        %3570 = vmatprep.subr.bf16.mxu0 0
        %3571 = vmatpush1.bf16.msra.mxu0 0
        %3572 = vmatprep.subr.bf16.mxu0 0
        %3573 = vmatpush1.bf16.msra.mxu0 0
        %3574 = vmatprep.mubr.bf16.mxu0 0
        %3575 = vmatmul.mubr.bf16.gmra.mrb[0].mxu0 %v547
        %v3576 = vpop.f32.mrb[0].mxu0
        %v3577 = vadd.f32 0.0, %v3576
        %v3578 = vpop.f32.mrb[0].mxu0
        %v3579 = vadd.f32 0.0, %v3578
        %v3580 = vpop.f32.mrb[0].mxu0
        %v3581 = vadd.f32 0.0, %v3580
        %v3582 = vpop.f32.mrb[0].mxu0
        %v3583 = vadd.f32 0.0, %v3582
        %3584 = vmatprep.mubr.bf16.mxu0 0
        %3585 = vmatmul.mubr.bf16.gmra.mrb[0].mxu0 %v550
        %v3586 = vpop.f32.mrb[0].mxu0
        %v3587 = vadd.f32 0.0, %v3586
        %v3588 = vpop.f32.mrb[0].mxu0
        %v3589 = vadd.f32 0.0, %v3588
        %v3590 = vpop.f32.mrb[0].mxu0
        %v3591 = vadd.f32 0.0, %v3590
        %v3592 = vpop.f32.mrb[0].mxu0
        %v3593 = vadd.f32 0.0, %v3592
        %3594 = vdwg.mxu0
        %v3595 = vmax.f32 %v3577, 0.0
        %v3596 = vmax.f32 %v3579, 0.0
        %v3597 = vmax.f32 %v3581, 0.0
        %v3598 = vmax.f32 %v3583, 0.0
        %v3599 = vmax.f32 %v3587, 0.0
        %v3600 = vmax.f32 %v3589, 0.0
        %v3601 = vmax.f32 %v3591, 0.0
        %v3602 = vmax.f32 %v3593, 0.0
        %v3603 = vpack.c.bf16 %v3597, %v3595
        %v3604 = vpack.c.bf16 %v3598, %v3596
        %v3605 = vpack.c.bf16 %v3601, %v3599
        %v3606 = vpack.c.bf16 %v3602, %v3600
        %3607 = vmatprep.subr.bf16.mxu0 %v3604
        %3608 = vmatpush1.bf16.msra.mxu0 %v3603
        %3609 = vmatprep.subr.bf16.mxu0 %v3606
        %3610 = vmatpush1.bf16.msra.mxu0 %v3605
        %3611 = vmatprep.subr.bf16.mxu0 0
        %3612 = vmatpush1.bf16.msra.mxu0 0
        %3613 = vmatprep.subr.bf16.mxu0 0
        %3614 = vmatpush1.bf16.msra.mxu0 0
        %3615 = vmatprep.subr.bf16.mxu0 0
        %3616 = vmatpush1.bf16.msra.mxu0 0
        %3617 = vmatprep.subr.bf16.mxu0 0
        %3618 = vmatpush1.bf16.msra.mxu0 0
        %3619 = vmatprep.subr.bf16.mxu0 0
        %3620 = vmatpush1.bf16.msra.mxu0 0
        %3621 = vmatprep.subr.bf16.mxu0 0
        %3622 = vmatpush1.bf16.msra.mxu0 0
        %3623 = vmatprep.subr.bf16.mxu0 0
        %3624 = vmatpush1.bf16.msra.mxu0 0
        %3625 = vmatprep.subr.bf16.mxu0 0
        %3626 = vmatpush1.bf16.msra.mxu0 0
        %3627 = vmatprep.subr.bf16.mxu0 0
        %3628 = vmatpush1.bf16.msra.mxu0 0
        %3629 = vmatprep.subr.bf16.mxu0 0
        %3630 = vmatpush1.bf16.msra.mxu0 0
        %3631 = vmatprep.subr.bf16.mxu0 0
        %3632 = vmatpush1.bf16.msra.mxu0 0
        %3633 = vmatprep.subr.bf16.mxu0 0
        %3634 = vmatpush1.bf16.msra.mxu0 0
        %3635 = vmatprep.subr.bf16.mxu0 0
        %3636 = vmatpush1.bf16.msra.mxu0 0
        %3637 = vmatprep.subr.bf16.mxu0 0
        %3638 = vmatpush1.bf16.msra.mxu0 0
        %3639 = vmatprep.mubr.bf16.mxu0 0
        %3640 = vmatmul.mubr.bf16.gmra.mrb[0].mxu0 %v633
        %v3641 = vpop.f32.mrb[0].mxu0
        %v3642 = vadd.f32 0.0, %v3641
        %v3643 = vpop.f32.mrb[0].mxu0
        %v3644 = vadd.f32 0.0, %v3643
        %v3645 = vpop.f32.mrb[0].mxu0
        %v3646 = vadd.f32 0.0, %v3645
        %v3647 = vpop.f32.mrb[0].mxu0
        %v3648 = vadd.f32 0.0, %v3647
        %3649 = vmatprep.mubr.bf16.mxu0 0
        %3650 = vmatmul.mubr.bf16.gmra.mrb[0].mxu0 %v636
        %v3651 = vpop.f32.mrb[0].mxu0
        %v3652 = vadd.f32 0.0, %v3651
        %v3653 = vpop.f32.mrb[0].mxu0
        %v3654 = vadd.f32 0.0, %v3653
        %v3655 = vpop.f32.mrb[0].mxu0
        %v3656 = vadd.f32 0.0, %v3655
        %v3657 = vpop.f32.mrb[0].mxu0
        %v3658 = vadd.f32 0.0, %v3657
        %3659 = vdwg.mxu0
        %v3660 = vmax.f32 %v3642, 0.0
        %v3661 = vmax.f32 %v3644, 0.0
        %v3662 = vmax.f32 %v3646, 0.0
        %v3663 = vmax.f32 %v3648, 0.0
        %v3664 = vmax.f32 %v3652, 0.0
        %v3665 = vmax.f32 %v3654, 0.0
        %v3666 = vmax.f32 %v3656, 0.0
        %v3667 = vmax.f32 %v3658, 0.0
        %v3668 = vpack.c.bf16 %v3662, %v3660
        %v3669 = vpack.c.bf16 %v3663, %v3661
        %v3670 = vpack.c.bf16 %v3666, %v3664
        %v3671 = vpack.c.bf16 %v3667, %v3665
        %v3680 = vunpack.c.l.b16 %v450
        %v3681 = vunpack.c.l.b16 %v451
        %v3682 = vunpack.c.l.b16 %v452
        %v3683 = vunpack.c.l.b16 %v453
        %v3684 = vunpack.c.l.b16 %v454
        %v3685 = vunpack.c.l.b16 %v455
        %v3686 = vunpack.c.l.b16 %v456
        %v3687 = vunpack.c.l.b16 %v457
        %v3688 = vpack.c.b16 %v3681, %v3680
        %v3689 = vpack.c.b16 %v3683, %v3682
        %v3690 = vpack.c.b16 %v3685, %v3684
        %v3691 = vpack.c.b16 %v3687, %v3686
        %v3693 = vsel %vm545, %v3688, 0
        %v3696 = vsel %vm545, %v3689, 0
        %v3699 = vsel %vm545, %v3690, 0
        %v3702 = vsel %vm545, %v3691, 0
        %3704 = vmatprep.subr.bf16.mxu0 %v3669
        %3705 = vmatpush1.bf16.msra.mxu0 %v3668
        %3706 = vmatprep.subr.bf16.mxu0 %v3671
        %3707 = vmatpush1.bf16.msra.mxu0 %v3670
        %3708 = vmatprep.subr.bf16.mxu0 0
        %3709 = vmatpush1.bf16.msra.mxu0 0
        %3710 = vmatprep.subr.bf16.mxu0 0
        %3711 = vmatpush1.bf16.msra.mxu0 0
        %3712 = vmatprep.subr.bf16.mxu0 0
        %3713 = vmatpush1.bf16.msra.mxu0 0
        %3714 = vmatprep.subr.bf16.mxu0 0
        %3715 = vmatpush1.bf16.msra.mxu0 0
        %3716 = vmatprep.subr.bf16.mxu0 0
        %3717 = vmatpush1.bf16.msra.mxu0 0
        %3718 = vmatprep.subr.bf16.mxu0 0
        %3719 = vmatpush1.bf16.msra.mxu0 0
        %3720 = vmatprep.subr.bf16.mxu0 0
        %3721 = vmatpush1.bf16.msra.mxu0 0
        %3722 = vmatprep.subr.bf16.mxu0 0
        %3723 = vmatpush1.bf16.msra.mxu0 0
        %3724 = vmatprep.subr.bf16.mxu0 0
        %3725 = vmatpush1.bf16.msra.mxu0 0
        %3726 = vmatprep.subr.bf16.mxu0 0
        %3727 = vmatpush1.bf16.msra.mxu0 0
        %3728 = vmatprep.subr.bf16.mxu0 0
        %3729 = vmatpush1.bf16.msra.mxu0 0
        %3730 = vmatprep.subr.bf16.mxu0 0
        %3731 = vmatpush1.bf16.msra.mxu0 0
        %3732 = vmatprep.subr.bf16.mxu0 0
        %3733 = vmatpush1.bf16.msra.mxu0 0
        %3734 = vmatprep.subr.bf16.mxu0 0
        %3735 = vmatpush1.bf16.msra.mxu0 0
        %3736 = vmatprep.mubr.bf16.mxu0 0
        %3737 = vmatmul.mubr.bf16.gmra.mrb[0].mxu0 %v3693
        %v3738 = vpop.f32.mrb[0].mxu0
        %v3739 = vadd.f32 0.0, %v3738
        %v3740 = vpop.f32.mrb[0].mxu0
        %v3741 = vadd.f32 0.0, %v3740
        %v3742 = vpop.f32.mrb[0].mxu0
        %v3743 = vadd.f32 0.0, %v3742
        %v3744 = vpop.f32.mrb[0].mxu0
        %v3745 = vadd.f32 0.0, %v3744
        %3746 = vmatprep.mubr.bf16.mxu0 0
        %3747 = vmatmul.mubr.bf16.gmra.mrb[0].mxu0 %v3696
        %v3748 = vpop.f32.mrb[0].mxu0
        %v3749 = vadd.f32 0.0, %v3748
        %v3750 = vpop.f32.mrb[0].mxu0
        %v3751 = vadd.f32 0.0, %v3750
        %v3752 = vpop.f32.mrb[0].mxu0
        %v3753 = vadd.f32 0.0, %v3752
        %v3754 = vpop.f32.mrb[0].mxu0
        %v3755 = vadd.f32 0.0, %v3754
        %3756 = vmatprep.mubr.bf16.mxu0 0
        %3757 = vmatmul.mubr.bf16.gmra.mrb[0].mxu0 %v3699
        %v3758 = vpop.f32.mrb[0].mxu0
        %v3759 = vadd.f32 0.0, %v3758
        %v3760 = vpop.f32.mrb[0].mxu0
        %v3761 = vadd.f32 0.0, %v3760
        %v3762 = vpop.f32.mrb[0].mxu0
        %v3763 = vadd.f32 0.0, %v3762
        %v3764 = vpop.f32.mrb[0].mxu0
        %v3765 = vadd.f32 0.0, %v3764
        %3766 = vmatprep.mubr.bf16.mxu0 0
        %3767 = vmatmul.mubr.bf16.gmra.mrb[0].mxu0 %v3702
        %v3768 = vpop.f32.mrb[0].mxu0
        %v3769 = vadd.f32 0.0, %v3768
        %v3770 = vpop.f32.mrb[0].mxu0
        %v3771 = vadd.f32 0.0, %v3770
        %v3772 = vpop.f32.mrb[0].mxu0
        %v3773 = vadd.f32 0.0, %v3772
        %v3774 = vpop.f32.mrb[0].mxu0
        %v3775 = vadd.f32 0.0, %v3774
        %3776 = vdwg.mxu0
        %v3777 = vmax.f32 %v3739, 0.0
        %v3778 = vmax.f32 %v3741, 0.0
        %v3779 = vmax.f32 %v3743, 0.0
        %v3780 = vmax.f32 %v3745, 0.0
        %v3781 = vmax.f32 %v3749, 0.0
        %v3782 = vmax.f32 %v3751, 0.0
        %v3783 = vmax.f32 %v3753, 0.0
        %v3784 = vmax.f32 %v3755, 0.0
        %v3785 = vmax.f32 %v3759, 0.0
        %v3786 = vmax.f32 %v3761, 0.0
        %v3787 = vmax.f32 %v3763, 0.0
        %v3788 = vmax.f32 %v3765, 0.0
        %v3789 = vmax.f32 %v3769, 0.0
        %v3790 = vmax.f32 %v3771, 0.0
        %v3791 = vmax.f32 %v3773, 0.0
        %v3792 = vmax.f32 %v3775, 0.0
        %v3793 = vpack.c.bf16 %v3779, %v3777
        %v3794 = vpack.c.bf16 %v3780, %v3778
        %v3795 = vpack.c.bf16 %v3783, %v3781
        %v3796 = vpack.c.bf16 %v3784, %v3782
        %v3797 = vpack.c.bf16 %v3787, %v3785
        %v3798 = vpack.c.bf16 %v3788, %v3786
        %v3799 = vpack.c.bf16 %v3791, %v3789
        %v3800 = vpack.c.bf16 %v3792, %v3790
        %v3808 = vunpack.c.l.b16 %v458
        %v3809 = vunpack.c.l.b16 %v459
        %v3810 = vunpack.c.l.b16 %v460
        %v3811 = vunpack.c.l.b16 %v461
        %v3812 = vunpack.c.l.b16 %v462
        %v3813 = vunpack.c.l.b16 %v463
        %v3814 = vunpack.c.l.b16 %v464
        %v3815 = vpack.c.b16 %v3809, %v3808
        %v3816 = vpack.c.b16 %v3811, %v3810
        %v3817 = vpack.c.b16 %v3813, %v3812
        %v3818 = vpack.c.b16 %v3814, %v3814
        %vm3819 = vcmask 523264
        %v3821 = vsel %vm3819, %v3815, 0
        %v3824 = vsel %vm3819, %v3816, 0
        %v3827 = vsel %vm3819, %v3817, 0
        %v3830 = vsel %vm3819, %v3818, 0
        %3832 = vmatprep.subr.bf16.mxu0 %v3794
        %3833 = vmatpush1.bf16.msra.mxu0 %v3793
        %3834 = vmatprep.subr.bf16.mxu0 %v3796
        %3835 = vmatpush1.bf16.msra.mxu0 %v3795
        %3836 = vmatprep.subr.bf16.mxu0 %v3798
        %3837 = vmatpush1.bf16.msra.mxu0 %v3797
        %3838 = vmatprep.subr.bf16.mxu0 %v3800
        %3839 = vmatpush1.bf16.msra.mxu0 %v3799
        %3840 = vmatprep.subr.bf16.mxu0 0
        %3841 = vmatpush1.bf16.msra.mxu0 0
        %3842 = vmatprep.subr.bf16.mxu0 0
        %3843 = vmatpush1.bf16.msra.mxu0 0
        %3844 = vmatprep.subr.bf16.mxu0 0
        %3845 = vmatpush1.bf16.msra.mxu0 0
        %3846 = vmatprep.subr.bf16.mxu0 0
        %3847 = vmatpush1.bf16.msra.mxu0 0
        %3848 = vmatprep.subr.bf16.mxu0 0
        %3849 = vmatpush1.bf16.msra.mxu0 0
        %3850 = vmatprep.subr.bf16.mxu0 0
        %3851 = vmatpush1.bf16.msra.mxu0 0
        %3852 = vmatprep.subr.bf16.mxu0 0
        %3853 = vmatpush1.bf16.msra.mxu0 0
        %3854 = vmatprep.subr.bf16.mxu0 0
        %3855 = vmatpush1.bf16.msra.mxu0 0
        %3856 = vmatprep.subr.bf16.mxu0 0
        %3857 = vmatpush1.bf16.msra.mxu0 0
        %3858 = vmatprep.subr.bf16.mxu0 0
        %3859 = vmatpush1.bf16.msra.mxu0 0
        %3860 = vmatprep.subr.bf16.mxu0 0
        %3861 = vmatpush1.bf16.msra.mxu0 0
        %3862 = vmatprep.subr.bf16.mxu0 0
        %3863 = vmatpush1.bf16.msra.mxu0 0
        %3864 = vmatprep.mubr.bf16.mxu0 0
        %3865 = vmatmul.mubr.bf16.gmra.mrb[0].mxu0 %v3821
        %v3866 = vpop.f32.mrb[0].mxu0
        %v3867 = vadd.f32 0.0, %v3866
        %v3868 = vpop.f32.mrb[0].mxu0
        %v3869 = vadd.f32 0.0, %v3868
        %v3870 = vpop.f32.mrb[0].mxu0
        %v3871 = vadd.f32 0.0, %v3870
        %v3872 = vpop.f32.mrb[0].mxu0
        %v3873 = vadd.f32 0.0, %v3872
        %3874 = vmatprep.mubr.bf16.mxu0 0
        %3875 = vmatmul.mubr.bf16.gmra.mrb[0].mxu0 %v3824
        %v3876 = vpop.f32.mrb[0].mxu0
        %v3877 = vadd.f32 0.0, %v3876
        %v3878 = vpop.f32.mrb[0].mxu0
        %v3879 = vadd.f32 0.0, %v3878
        %v3880 = vpop.f32.mrb[0].mxu0
        %v3881 = vadd.f32 0.0, %v3880
        %v3882 = vpop.f32.mrb[0].mxu0
        %v3883 = vadd.f32 0.0, %v3882
        %3884 = vmatprep.mubr.bf16.mxu0 0
        %3885 = vmatmul.mubr.bf16.gmra.mrb[0].mxu0 %v3827
        %v3886 = vpop.f32.mrb[0].mxu0
        %v3887 = vadd.f32 0.0, %v3886
        %v3888 = vpop.f32.mrb[0].mxu0
        %v3889 = vadd.f32 0.0, %v3888
        %v3890 = vpop.f32.mrb[0].mxu0
        %v3891 = vadd.f32 0.0, %v3890
        %v3892 = vpop.f32.mrb[0].mxu0
        %v3893 = vadd.f32 0.0, %v3892
        %3894 = vmatprep.mubr.bf16.mxu0 0
        %3895 = vmatmul.mubr.bf16.gmra.mrb[0].mxu0 %v3830
        %v3896 = vpop.f32.mrb[0].mxu0
        %v3897 = vadd.f32 0.0, %v3896
        %v3898 = vpop.f32.mrb[0].mxu0
        %v3899 = vadd.f32 0.0, %v3898
        %v3900 = vpop.f32.mrb[0].mxu0
        %v3901 = vpop.f32.mrb[0].mxu0
        %3902 = vdwg.mxu0
        %v3903 = vadd.f32 %v3867, %v3871
        %v3904 = vadd.f32 %v3903, %v3877
        %v3905 = vadd.f32 %v3904, %v3881
        %v3906 = vadd.f32 %v3905, %v3887
        %v3907 = vadd.f32 %v3906, %v3891
        %v3908 = vadd.f32 %v3907, %v3897
        %v3909 = vrot.slane %v3908, 4
        %v3910 = vadd.f32 %v3908, %v3909
        %v3911 = vrot.slane %v3910, 2
        %v3912 = vadd.f32 %v3910, %v3911
        %v3913 = vrot.slane %v3912, 1
        %v3914 = vadd.f32 %v3912, %v3913
        %v3915 = vadd.f32 %v3869, %v3873
        %v3916 = vadd.f32 %v3915, %v3879
        %v3917 = vadd.f32 %v3916, %v3883
        %v3918 = vadd.f32 %v3917, %v3889
        %v3919 = vadd.f32 %v3918, %v3893
        %v3920 = vadd.f32 %v3919, %v3899
        %v3921 = vrot.slane %v3920, 4
        %v3922 = vadd.f32 %v3920, %v3921
        %v3923 = vrot.slane %v3922, 2
        %v3924 = vadd.f32 %v3922, %v3923
        %v3925 = vrot.slane %v3924, 1
        %v3926 = vadd.f32 %v3924, %v3925
        %v3927 = vadd.f32 %v3914, 1e-05
        %v3928 = vadd.f32 %v3926, 1e-05
        %v3929 = vrcp.pop %v3927
        %v3930 = vmul.f32 1.0, %v3929
        %v3931 = vrcp.pop %v3928
        %v3932 = vmul.f32 1.0, %v3931
        %v3933 = vmul.f32 %v1470, %v3867
        %v3934 = vmul.f32 %v1471, %v3869
        %v3935 = vmul.f32 %v1472, %v3871
        %v3936 = vmul.f32 %v1473, %v3873
        %v3937 = vmul.f32 %v1474, %v3877
        %v3938 = vmul.f32 %v1475, %v3879
        %v3939 = vmul.f32 %v1476, %v3881
        %v3940 = vmul.f32 %v1477, %v3883
        %v3941 = vmul.f32 %v1478, %v3887
        %v3942 = vmul.f32 %v1479, %v3889
        %v3943 = vmul.f32 %v1480, %v3891
        %v3944 = vmul.f32 %v1481, %v3893
        %v3945 = vmul.f32 %v1482, %v3897
        %v3946 = vmul.f32 %v1483, %v3899
        %v3947 = vadd.f32 %v3933, %v3935
        %v3948 = vadd.f32 %v3947, %v3937
        %v3949 = vadd.f32 %v3948, %v3939
        %v3950 = vadd.f32 %v3949, %v3941
        %v3951 = vadd.f32 %v3950, %v3943
        %v3952 = vadd.f32 %v3951, %v3945
        %v3953 = vrot.slane %v3952, 4
        %v3954 = vadd.f32 %v3952, %v3953
        %v3955 = vrot.slane %v3954, 2
        %v3956 = vadd.f32 %v3954, %v3955
        %v3957 = vrot.slane %v3956, 1
        %v3958 = vadd.f32 %v3956, %v3957
        %v3959 = vadd.f32 %v3934, %v3936
        %v3960 = vadd.f32 %v3959, %v3938
        %v3961 = vadd.f32 %v3960, %v3940
        %v3962 = vadd.f32 %v3961, %v3942
        %v3963 = vadd.f32 %v3962, %v3944
        %v3964 = vadd.f32 %v3963, %v3946
        %v3965 = vrot.slane %v3964, 4
        %v3966 = vadd.f32 %v3964, %v3965
        %v3967 = vrot.slane %v3966, 2
        %v3968 = vadd.f32 %v3966, %v3967
        %v3969 = vrot.slane %v3968, 1
        %v3970 = vadd.f32 %v3968, %v3969
        %v3971 = vmul.f32 %v1523, %v3867
        %v3972 = vmul.f32 %v1524, %v3869
        %v3973 = vmul.f32 %v1525, %v3871
        %v3974 = vmul.f32 %v1526, %v3873
        %v3975 = vmul.f32 %v1527, %v3877
        %v3976 = vmul.f32 %v1528, %v3879
        %v3977 = vmul.f32 %v1529, %v3881
        %v3978 = vmul.f32 %v1530, %v3883
        %v3979 = vmul.f32 %v1531, %v3887
        %v3980 = vmul.f32 %v1532, %v3889
        %v3981 = vmul.f32 %v1533, %v3891
        %v3982 = vmul.f32 %v1534, %v3893
        %v3983 = vmul.f32 %v1535, %v3897
        %v3984 = vmul.f32 %v1536, %v3899
        %v3985 = vadd.f32 %v3971, %v3973
        %v3986 = vadd.f32 %v3985, %v3975
        %v3987 = vadd.f32 %v3986, %v3977
        %v3988 = vadd.f32 %v3987, %v3979
        %v3989 = vadd.f32 %v3988, %v3981
        %v3990 = vadd.f32 %v3989, %v3983
        %v3991 = vrot.slane %v3990, 4
        %v3992 = vadd.f32 %v3990, %v3991
        %v3993 = vrot.slane %v3992, 2
        %v3994 = vadd.f32 %v3992, %v3993
        %v3995 = vrot.slane %v3994, 1
        %v3996 = vadd.f32 %v3994, %v3995
        %v3997 = vadd.f32 %v3972, %v3974
        %v3998 = vadd.f32 %v3997, %v3976
        %v3999 = vadd.f32 %v3998, %v3978
        %v4000 = vadd.f32 %v3999, %v3980
        %v4001 = vadd.f32 %v4000, %v3982
        %v4002 = vadd.f32 %v4001, %v3984
        %v4003 = vrot.slane %v4002, 4
        %v4004 = vadd.f32 %v4002, %v4003
        %v4005 = vrot.slane %v4004, 2
        %v4006 = vadd.f32 %v4004, %v4005
        %v4007 = vrot.slane %v4006, 1
        %v4008 = vadd.f32 %v4006, %v4007
        %v4009 = vmul.f32 %v1576, %v3867
        %v4010 = vmul.f32 %v1577, %v3869
        %v4011 = vmul.f32 %v1578, %v3871
        %v4012 = vmul.f32 %v1579, %v3873
        %v4013 = vmul.f32 %v1580, %v3877
        %v4014 = vmul.f32 %v1581, %v3879
        %v4015 = vmul.f32 %v1582, %v3881
        %v4016 = vmul.f32 %v1583, %v3883
        %v4017 = vmul.f32 %v1584, %v3887
        %v4018 = vmul.f32 %v1585, %v3889
        %v4019 = vmul.f32 %v1586, %v3891
        %v4020 = vmul.f32 %v1587, %v3893
        %v4021 = vmul.f32 %v1588, %v3897
        %v4022 = vmul.f32 %v1589, %v3899
        %v4023 = vadd.f32 %v4009, %v4011
        %v4024 = vadd.f32 %v4023, %v4013
        %v4025 = vadd.f32 %v4024, %v4015
        %v4026 = vadd.f32 %v4025, %v4017
        %v4027 = vadd.f32 %v4026, %v4019
        %v4028 = vadd.f32 %v4027, %v4021
        %v4029 = vrot.slane %v4028, 4
        %v4030 = vadd.f32 %v4028, %v4029
        %v4031 = vrot.slane %v4030, 2
        %v4032 = vadd.f32 %v4030, %v4031
        %v4033 = vrot.slane %v4032, 1
        %v4034 = vadd.f32 %v4032, %v4033
        %v4035 = vadd.f32 %v4010, %v4012
        %v4036 = vadd.f32 %v4035, %v4014
        %v4037 = vadd.f32 %v4036, %v4016
        %v4038 = vadd.f32 %v4037, %v4018
        %v4039 = vadd.f32 %v4038, %v4020
        %v4040 = vadd.f32 %v4039, %v4022
        %v4041 = vrot.slane %v4040, 4
        %v4042 = vadd.f32 %v4040, %v4041
        %v4043 = vrot.slane %v4042, 2
        %v4044 = vadd.f32 %v4042, %v4043
        %v4045 = vrot.slane %v4044, 1
        %v4046 = vadd.f32 %v4044, %v4045
        %v4047 = vsel %vm1628, %v3958, %v3996
        %v4048 = vsel %vm1628, %v3970, %v4008
        %v4049 = vsel %vm1631, %v4047, %v4034
        %v4050 = vsel %vm1631, %v4048, %v4046
        %v4051 = vmul.f32 %v4049, %v3930
        %v4052 = vmul.f32 %v4050, %v3932
        %v4053 = vsel %vm1631, %v2640, %v2642
        %v4054 = vsel %vm1631, %v2641, %v2643
        %vm4055 = vcmask 1042432
        %v4056 = vsel %vm4055, %v4053, %v2642
        %v4057 = vsel %vm4055, %v4054, %v2643
        %vm4058 = vcmask 1043456
        %v4059 = vsel %vm4058, %v4056, %v2644
        %v4060 = vsel %vm4058, %v4057, %v2645
        %v4063 = vrot.slane %v3150, 5
        %v4064 = vrot.slane %v3151, 5
        %v4069 = vrot.slane %v4051, 2
        %v4070 = vrot.slane %v4052, 2
        %v4075 = vrot.slane %v4059, 7
        %v4076 = vrot.slane %v4060, 7
        %v4079 = vsel %vm4055, %v1642, %v4063
        %v4080 = vsel %vm4055, %v1643, %v4064
        %vm4081 = vcmask 1045504
        %v4082 = vsel %vm4081, %v4079, %v4069
        %v4083 = vsel %vm4081, %v4080, %v4070
        %v4084 = vsel %vm1628, %v4069, %v4075
        %v4085 = vsel %vm1628, %v4070, %v4076
        %v4086 = vsel %vm4081, %v4084, 0.0
        %v4087 = vsel %vm4081, %v4085, 0.0
        %4088 = vst [vmem:[%s429] sm:$0xff] %v4082
        %4089 = vst [vmem:[%s429 + $0x8] sm:$0xff] %v4083
        %4090 = vst [vmem:[%s429 + $0x10] sm:$0xff] %v4086
        %4091 = vst [vmem:[%s429 + $0x18] sm:$0xff] %v4087
        %s4092 = sand.u32 %s258, 1
        %s4093 = scalar_lea.sflag [#allocation4], %s4092
        %s4094 = sand.u32 %s258, 1
        %s4095 = smul.addr %s4094, 32
        %s4096 = scalar_lea.vmem [#allocation8], %s4095
        // Predicated region
        $region73: #{tpu_custom_call.1} parent=59 // pred_check
          %p4097 = pneg %p268
        $region74: #{tpu_custom_call.1} parent=59 // pred_check_branch
          %4099 = sbr.rel (%p4097) target = $region76
        $region75: #{tpu_custom_call.1} parent=59 // pred_region
          %s4100 = smul.u32 2, %s30
          %s4102 = ssub.s32 512, 512
          %4103 = vsyncadd %s4093, %s4102
          %s4104 = smul.addr %s4100, 128
          %s4105 = scalar_lea.hbm %s10, %s4104
          %s4106 = sshll.u32 %s4096, 4
          %s4107 = int_to_ptr.vmem [resolvable:$true] %s4106
          %4112 = dma.vmem_to_hbm [thread:$0]  %s4107, 512, %s4105, %s4093, 256, 1024, 16
        $region76: #{tpu_custom_call.1} parent=59 // pred_fallthru
          _
      $region60: #{tpu_custom_call.1} parent=5 // pred_fallthru
        _
      %p4113 = scmp.le.s32.totalorder 2, %s25
      // Predicated region
      $region77: #{tpu_custom_call.1} parent=5 // pred_check
        %p4114 = pneg %p4113
      $region78: #{tpu_custom_call.1} parent=5 // pred_check_branch
        %4116 = sbr.rel (%p4114) target = $region80
      $region79: #{tpu_custom_call.1} parent=5 // pred_region
        %s4117 = ssub.s32 %s25, 2
        // Predicated region
        $region81: #{tpu_custom_call.1} parent=79 // pred_check
          %p4118 = pneg %p274
        $region82: #{tpu_custom_call.1} parent=79 // pred_check_branch
          %4120 = sbr.rel (%p4118) target = $region84
        $region83: #{tpu_custom_call.1} parent=79 // pred_region
          %s4121 = sand.u32 %s259, 1
          %s4122 = scalar_lea.sflag [#allocation4], %s4121
          %s4123 = sand.u32 %s259, 1
          %s4124 = smul.addr %s4123, 32
          %s4125 = scalar_lea.vmem [#allocation8], %s4124
          %4126 = dma.done %s4122, 512
        $region84: #{tpu_custom_call.1} parent=79 // pred_fallthru
          _
      $region80: #{tpu_custom_call.1} parent=5 // pred_fallthru
        _
    $region6: #{tpu_custom_call.1} parent=1 // loop_footer
      %s29 = sadd.s32 1, %s25
    $region7: #{tpu_custom_call.1} parent=1 // loop_footer_branch
      %24 = sbr.rel target = $region3
    $region8: #{tpu_custom_call.1} parent=1 // loop_exit
      _
    %4127 = vsyncpa [#allocation3], 1
    %s4128 = scalar_lea.sflag [#allocation3], 1
    %4129 = vsyncpa %s4128, 1
    %4130 = vsyncpa [#allocation6], 1
    %s4131 = scalar_lea.sflag [#allocation6], 1
    %4132 = vsyncpa %s4131, 1
    %4133 = vsyncpa [#allocation4], 1
    %s4134 = scalar_lea.sflag [#allocation4], 1
    %4135 = vsyncpa %s4134, 1

</llo_original>
